<compile_context>
chip_gen: v7x
topology: tpu7x:2x2x1
jax: 0.10.0
libtpu: 0.0.40
codegen_flags: <defaults>
</compile_context>

<pallas_src>
import math

import jax
import jax.numpy as jnp
from jax.experimental import pallas as pl
from jax.experimental.pallas import tpu as pltpu

# ---------------- small synthetic DistilBERT config (lane-friendly dims) ----------------
B = 2             # batch
S = 8             # sequence length
H = 128           # hidden size          (real: 768)
NH = 4            # attention heads      (real: 12)
DH = H // NH      # head dim = 32
F = 256           # FFN size             (real: 3072)
L = 2             # encoder layers       (real: 6)
V = 100           # vocab size
M = B * S         # total tokens
LAST_STATES = 1   # matches ClassBertModel default
LN_EPS = 1e-12
ATTN_SCALE = 1.0 / math.sqrt(DH)


# ---------------- in-kernel helpers (all f32 elementwise math) ----------------
def _ln(x, g, b):
    mu = jnp.mean(x, axis=-1, keepdims=True)
    var = jnp.mean(jnp.square(x - mu), axis=-1, keepdims=True)
    return (x - mu) * jax.lax.rsqrt(var + LN_EPS) * g + b


def _gelu(x):  # erf-based GELU (torch.nn.GELU default used by DistilBERT)
    return 0.5 * x * (1.0 + jax.lax.erf(x * (1.0 / math.sqrt(2.0))))


# ---------------- one encoder layer per grid step (weights streamed over L) ----------------
def _encoder_layer_kernel(
    h0_ref, mask_ref,
    emb_g_ref, emb_b_ref,
    qkv_w_ref, qkv_b_ref,
    o_w_ref, o_b_ref,
    ln1_g_ref, ln1_b_ref,
    f1_w_ref, f1_b_ref,
    f2_w_ref, f2_b_ref,
    ln2_g_ref, ln2_b_ref,
    out_ref,                      # (M, H) f32: carried hidden state / final output
):
    bf16 = jnp.bfloat16
    l = pl.program_id(0)

    # Embedding LayerNorm only on the first grid step; hidden state then lives in out_ref.
    @pl.when(l == 0)
    def _():
        out_ref[...] = _ln(h0_ref[...].astype(jnp.float32),
                           emb_g_ref[...], emb_b_ref[...])

    h = out_ref[...]                                              # (M, H) f32

    # key-mask additive bias, built once per step: 0 keep, -1e9 masked.  (B, 1, S)
    mask = mask_ref[...].astype(jnp.float32)                      # (B, S)
    bias = ((mask - 1.0) * 1e9)[:, None, :]

    # ---- fused QKV projection: one (M,H) x (H,3H) bf16 MXU matmul; cast slab to bf16 once ----
    qkv = jnp.dot(h.astype(bf16), qkv_w_ref[0],
                  preferred_element_type=jnp.float32) + qkv_b_ref[0]
    qkv_bf = qkv.astype(bf16)                                     # (M, 3H) bf16
    q = qkv_bf[:, 0 * H:1 * H]
    k = qkv_bf[:, 1 * H:2 * H]
    v = qkv_bf[:, 2 * H:3 * H]

    # ---- multi-head attention: per head, one B-batched bf16 contraction pair ----
    # (no k.T materialization, no VMEM scratch, context merged in registers)
    ctx_parts = []
    for hd in range(NH):                                          # static, NH=4
        c0 = hd * DH
        qh = q[:, c0:c0 + DH].reshape(B, S, DH)
        kh = k[:, c0:c0 + DH].reshape(B, S, DH)
        vh = v[:, c0:c0 + DH].reshape(B, S, DH)
        s = jnp.einsum('bqd,bkd->bqk', qh, kh,
                       preferred_element_type=jnp.float32) * ATTN_SCALE + bias
        s = s - jnp.max(s, axis=-1, keepdims=True)                # f32 softmax
        p = jnp.exp(s)
        p = p * pl.reciprocal(jnp.sum(p, axis=-1, keepdims=True), approx=True)
        ctx_hd = jnp.einsum('bqk,bkd->bqd', p.astype(bf16), vh,
                            preferred_element_type=jnp.float32)   # (B, S, DH) f32
        ctx_parts.append(ctx_hd.reshape(M, DH))
    ctx = jnp.concatenate(ctx_parts, axis=-1)                     # (M, H) f32, registers

    # ---- output projection; residual add fused into LayerNorm ----
    attn_out = jnp.dot(ctx.astype(bf16), o_w_ref[0],
                       preferred_element_type=jnp.float32) + o_b_ref[0]
    h = _ln(h + attn_out, ln1_g_ref[0], ln1_b_ref[0])

    # ---- fused FFN: f1 -> GELU -> f2, intermediate stays on-chip ----
    ff = jnp.dot(h.astype(bf16), f1_w_ref[0],
                 preferred_element_type=jnp.float32) + f1_b_ref[0]
    ff = _gelu(ff)
    ff = jnp.dot(ff.astype(bf16), f2_w_ref[0],
                 preferred_element_type=jnp.float32) + f2_b_ref[0]
    h = _ln(h + ff, ln2_g_ref[0], ln2_b_ref[0])

    out_ref[...] = h.astype(out_ref.dtype)


def fused_encoder(h0, mask_f32, params):
    def const_spec(a):            # full array, constant block across the L grid axis
        return pl.BlockSpec(a.shape, lambda l: (0, 0))

    def layer_spec(a):            # (L, d1, d2): stream one layer's slab per grid step
        return pl.BlockSpec((1,) + a.shape[1:], lambda l: (l, 0, 0))

    const_args = [h0, mask_f32, params["emb_ln_g"], params["emb_ln_b"]]
    layer_args = [params[k] for k in ("qkv_w", "qkv_b", "o_w", "o_b",
                                      "ln1_g", "ln1_b", "f1_w", "f1_b",
                                      "f2_w", "f2_b", "ln2_g", "ln2_b")]
    args = const_args + layer_args
    specs = [const_spec(a) for a in const_args] + [layer_spec(a) for a in layer_args]

    return pl.pallas_call(
        _encoder_layer_kernel,
        out_shape=jax.ShapeDtypeStruct((M, H), jnp.float32),
        grid=(L,),
        in_specs=specs,
        # constant output block over the L axis -> hidden state stays VMEM-resident
        out_specs=pl.BlockSpec((M, H), lambda l: (0, 0)),
        compiler_params=pltpu.CompilerParams(
            dimension_semantics=("arbitrary",),
            vmem_limit_bytes=48 * 1024 * 1024,
        ),
    )(*args)


# ---------------- parameter init (deterministic, synthetic) ----------------
def init_params(key):
    ks = jax.random.split(key, 8)

    def w(k, shape, scale=0.02):
        return scale * jax.random.normal(k, shape, dtype=jnp.float32)

    return {
        "word_emb": w(ks[0], (V, H)),
        "pos_emb": w(ks[1], (S, H)),
        "emb_ln_g": jnp.ones((1, H), jnp.float32),
        "emb_ln_b": jnp.zeros((1, H), jnp.float32),
        # per-layer weights stacked over L; matmul weights stored bf16 for the MXU
        "qkv_w": w(ks[2], (L, H, 3 * H)).astype(jnp.bfloat16),   # fused q|k|v
        "qkv_b": jnp.zeros((L, 1, 3 * H), jnp.float32),
        "o_w": w(ks[3], (L, H, H)).astype(jnp.bfloat16),
        "o_b": jnp.zeros((L, 1, H), jnp.float32),
        "ln1_g": jnp.ones((L, 1, H), jnp.float32),
        "ln1_b": jnp.zeros((L, 1, H), jnp.float32),
        "f1_w": w(ks[4], (L, H, F)).astype(jnp.bfloat16),
        "f1_b": jnp.zeros((L, 1, F), jnp.float32),
        "f2_w": w(ks[5], (L, F, H)).astype(jnp.bfloat16),
        "f2_b": jnp.zeros((L, 1, H), jnp.float32),
        "ln2_g": jnp.ones((L, 1, H), jnp.float32),
        "ln2_b": jnp.zeros((L, 1, H), jnp.float32),
        "fc_w": w(ks[6], (H, 1)),
        "fc_b": jnp.zeros((1,), jnp.float32),
    }


# ---------------- model forward (ClassBertModel.forward semantics) ----------------
@jax.jit
def class_bert_forward(params, input_ids, attention_mask):
    # embeddings: token gather + position add are plain-JAX glue (data-dependent gather)
    tok = jnp.take(params["word_emb"], input_ids, axis=0)            # (B, S, H)
    h0 = (tok + params["pos_emb"][None, :, :]).reshape(M, H)
    mask_f32 = attention_mask.astype(jnp.float32)                    # (B, S)

    # one fused Pallas kernel: embedding-LN + all L encoder layers (weights streamed)
    hidden = fused_encoder(h0, mask_f32, params).reshape(B, S, H)

    # get_embedding: sum of the last LAST_STATES hidden states
    emb = hidden[:, S - 1, :]
    for sid in range(2, LAST_STATES + 1):
        emb = emb + hidden[:, S - sid, :]

    # classification head Linear(H,1) + .view(1,-1): a 2x128 dot with lane-width-1
    # output -> plain JAX (a dedicated kernel here would be pure launch overhead).
    out = emb @ params["fc_w"] + params["fc_b"]                      # (B, 1)
    return out.reshape(1, -1)                                        # (1, B)


# ---------------- main ----------------
if __name__ == "__main__":
    key = jax.random.PRNGKey(0)
    k_param, k_ids = jax.random.split(key)
    params = init_params(k_param)

    input_ids = jax.random.randint(k_ids, (B, S), 0, V, dtype=jnp.int32)
    attention_mask = jnp.ones((B, S), dtype=jnp.int32)

    out = class_bert_forward(params, input_ids, attention_mask)
    out = jax.block_until_ready(out)
    assert out.shape == (1, B), out.shape
    print("KERNEL_OK")
</pallas_src>

<mosaic_0001>
module attributes {stable_mosaic.version = 11 : i64} {
  func.func @_encoder_layer_kernel(%arg0: i32, %arg1: memref<16x128xf32, #tpu.memory_space<vmem>>, %arg2: memref<2x8xf32, #tpu.memory_space<vmem>>, %arg3: memref<1x128xf32, #tpu.memory_space<vmem>>, %arg4: memref<1x128xf32, #tpu.memory_space<vmem>>, %arg5: memref<1x128x384xbf16, #tpu.memory_space<vmem>>, %arg6: memref<1x1x384xf32, #tpu.memory_space<vmem>>, %arg7: memref<1x128x128xbf16, #tpu.memory_space<vmem>>, %arg8: memref<1x1x128xf32, #tpu.memory_space<vmem>>, %arg9: memref<1x1x128xf32, #tpu.memory_space<vmem>>, %arg10: memref<1x1x128xf32, #tpu.memory_space<vmem>>, %arg11: memref<1x128x256xbf16, #tpu.memory_space<vmem>>, %arg12: memref<1x1x256xf32, #tpu.memory_space<vmem>>, %arg13: memref<1x256x128xbf16, #tpu.memory_space<vmem>>, %arg14: memref<1x1x128xf32, #tpu.memory_space<vmem>>, %arg15: memref<1x1x128xf32, #tpu.memory_space<vmem>>, %arg16: memref<1x1x128xf32, #tpu.memory_space<vmem>>, %arg17: memref<16x128xf32, #tpu.memory_space<vmem>>) attributes {dimension_semantics = [#tpu.dimension_semantics<arbitrary>], iteration_bounds = array<i64: 2>, scalar_prefetch = 0 : i64, scratch_operands = 0 : i64, tpu.core_type = #tpu.core_type<tc>, window_params = [{pipeline_mode = #tpu.pipeline_mode<synchronous>, transform_indices = @transform_0, window_bounds = array<i64: 16, 128>}, {pipeline_mode = #tpu.pipeline_mode<synchronous>, transform_indices = @transform_1, window_bounds = array<i64: 2, 8>}, {pipeline_mode = #tpu.pipeline_mode<synchronous>, transform_indices = @transform_2, window_bounds = array<i64: 1, 128>}, {pipeline_mode = #tpu.pipeline_mode<synchronous>, transform_indices = @transform_3, window_bounds = array<i64: 1, 128>}, {transform_indices = @transform_4, window_bounds = array<i64: 1, 128, 384>}, {transform_indices = @transform_5, window_bounds = array<i64: 1, 1, 384>}, {transform_indices = @transform_6, window_bounds = array<i64: 1, 128, 128>}, {transform_indices = @transform_7, window_bounds = array<i64: 1, 1, 128>}, {transform_indices = @transform_8, window_bounds = array<i64: 1, 1, 128>}, {transform_indices = @transform_9, window_bounds = array<i64: 1, 1, 128>}, {transform_indices = @transform_10, window_bounds = array<i64: 1, 128, 256>}, {transform_indices = @transform_11, window_bounds = array<i64: 1, 1, 256>}, {transform_indices = @transform_12, window_bounds = array<i64: 1, 256, 128>}, {transform_indices = @transform_13, window_bounds = array<i64: 1, 1, 128>}, {transform_indices = @transform_14, window_bounds = array<i64: 1, 1, 128>}, {transform_indices = @transform_15, window_bounds = array<i64: 1, 1, 128>}, {pipeline_mode = #tpu.pipeline_mode<synchronous>, transform_indices = @transform_16, window_bounds = array<i64: 16, 128>}]} {
    %c0_i32 = arith.constant 0 : i32
    %0 = arith.cmpi eq, %arg0, %c0_i32 : i32
    %1 = arith.extui %0 : i1 to i32
    %c0_i32_0 = arith.constant 0 : i32
    %2 = arith.cmpi ne, %1, %c0_i32_0 : i32
    scf.if %2 {
      %c0_80 = arith.constant 0 : index
      %c0_81 = arith.constant 0 : index
      %206 = vector.load %arg1[%c0_80, %c0_81] : memref<16x128xf32, #tpu.memory_space<vmem>>, vector<16x128xf32>
      %c0_82 = arith.constant 0 : index
      %c0_83 = arith.constant 0 : index
      %207 = vector.load %arg3[%c0_82, %c0_83] : memref<1x128xf32, #tpu.memory_space<vmem>>, vector<1x128xf32>
      %c0_84 = arith.constant 0 : index
      %c0_85 = arith.constant 0 : index
      %208 = vector.load %arg4[%c0_84, %c0_85] : memref<1x128xf32, #tpu.memory_space<vmem>>, vector<1x128xf32>
      %cst_86 = arith.constant dense<0.000000e+00> : vector<16xf32>
      %209 = vector.multi_reduction <add>, %206, %cst_86 [1] : vector<16x128xf32> to vector<16xf32>
      %210 = vector.shape_cast %209 : vector<16xf32> to vector<16x1xf32>
      %cst_87 = arith.constant 1.280000e+02 : f32
      %211 = vector.broadcast %cst_87 : f32 to vector<16x1xf32>
      %212 = arith.divf %210, %211 : vector<16x1xf32>
      %213 = vector.broadcast %212 : vector<16x1xf32> to vector<16x128xf32>
      %214 = arith.subf %206, %213 : vector<16x128xf32>
      %215 = arith.mulf %214, %214 : vector<16x128xf32>
      %cst_88 = arith.constant dense<0.000000e+00> : vector<16xf32>
      %216 = vector.multi_reduction <add>, %215, %cst_88 [1] : vector<16x128xf32> to vector<16xf32>
      %217 = vector.shape_cast %216 : vector<16xf32> to vector<16x1xf32>
      %cst_89 = arith.constant 1.280000e+02 : f32
      %218 = vector.broadcast %cst_89 : f32 to vector<16x1xf32>
      %219 = arith.divf %217, %218 : vector<16x1xf32>
      %220 = vector.broadcast %212 : vector<16x1xf32> to vector<16x128xf32>
      %221 = arith.subf %206, %220 : vector<16x128xf32>
      %cst_90 = arith.constant 9.99999996E-13 : f32
      %222 = vector.broadcast %cst_90 : f32 to vector<16x1xf32>
      %223 = arith.addf %219, %222 : vector<16x1xf32>
      %224 = math.rsqrt %223 : vector<16x1xf32>
      %225 = vector.broadcast %224 : vector<16x1xf32> to vector<16x128xf32>
      %226 = arith.mulf %221, %225 : vector<16x128xf32>
      %227 = vector.broadcast %207 : vector<1x128xf32> to vector<16x128xf32>
      %228 = arith.mulf %226, %227 : vector<16x128xf32>
      %229 = vector.broadcast %208 : vector<1x128xf32> to vector<16x128xf32>
      %230 = arith.addf %228, %229 : vector<16x128xf32>
      %c0_91 = arith.constant 0 : index
      %c0_92 = arith.constant 0 : index
      %231 = vector.load %arg17[%c0_91, %c0_92] : memref<16x128xf32, #tpu.memory_space<vmem>>, vector<16x128xf32>
      tpu.vector_store %arg17[%c0_91, %c0_92], %230 {strides = array<i32>} : memref<16x128xf32, #tpu.memory_space<vmem>>, vector<16x128xf32>,
    } else {
    }
    %c0 = arith.constant 0 : index
    %c0_1 = arith.constant 0 : index
    %3 = vector.load %arg17[%c0, %c0_1] : memref<16x128xf32, #tpu.memory_space<vmem>>, vector<16x128xf32>
    %c0_2 = arith.constant 0 : index
    %c0_3 = arith.constant 0 : index
    %4 = vector.load %arg2[%c0_2, %c0_3] : memref<2x8xf32, #tpu.memory_space<vmem>>, vector<2x8xf32>
    %cst = arith.constant 1.000000e+00 : f32
    %5 = vector.broadcast %cst : f32 to vector<2x8xf32>
    %6 = arith.subf %4, %5 : vector<2x8xf32>
    %cst_4 = arith.constant 1.000000e+09 : f32
    %7 = vector.broadcast %cst_4 : f32 to vector<2x8xf32>
    %8 = arith.mulf %6, %7 : vector<2x8xf32>
    %9 = vector.shape_cast %8 : vector<2x8xf32> to vector<2x1x8xf32>
    %10 = arith.truncf %3 : vector<16x128xf32> to vector<16x128xbf16>
    %c0_5 = arith.constant 0 : index
    %c0_6 = arith.constant 0 : index
    %c0_7 = arith.constant 0 : index
    %11 = vector.load %arg5[%c0_5, %c0_6, %c0_7] : memref<1x128x384xbf16, #tpu.memory_space<vmem>>, vector<1x128x384xbf16>
    %12 = vector.shape_cast %11 : vector<1x128x384xbf16> to vector<128x384xbf16>
    %cst_8 = arith.constant dense<0.000000e+00> : vector<16x384xf32>
    %13 = tpu.matmul %10, %12, %cst_8 {dimension_numbers = #tpu.dot_dimension_numbers<[1], [0], [0], [1], [0, 0, 1, 1], [], []>} : vector<16x128xbf16>, vector<128x384xbf16>, vector<16x384xf32> -> vector<16x384xf32>
    %c0_9 = arith.constant 0 : index
    %c0_10 = arith.constant 0 : index
    %c0_11 = arith.constant 0 : index
    %14 = vector.load %arg6[%c0_9, %c0_10, %c0_11] : memref<1x1x384xf32, #tpu.memory_space<vmem>>, vector<1x1x384xf32>
    %15 = vector.shape_cast %14 : vector<1x1x384xf32> to vector<1x384xf32>
    %16 = vector.broadcast %15 : vector<1x384xf32> to vector<16x384xf32>
    %17 = arith.addf %13, %16 : vector<16x384xf32>
    %18 = arith.truncf %17 : vector<16x384xf32> to vector<16x384xbf16>
    %19 = vector.extract_strided_slice %18 {offsets = [0, 0], sizes = [16, 128], strides = [1, 1]} : vector<16x384xbf16> to vector<16x128xbf16>
    %20 = vector.extract_strided_slice %18 {offsets = [0, 128], sizes = [16, 128], strides = [1, 1]} : vector<16x384xbf16> to vector<16x128xbf16>
    %21 = vector.extract_strided_slice %18 {offsets = [0, 256], sizes = [16, 128], strides = [1, 1]} : vector<16x384xbf16> to vector<16x128xbf16>
    %22 = vector.extract_strided_slice %19 {offsets = [0, 0], sizes = [16, 32], strides = [1, 1]} : vector<16x128xbf16> to vector<16x32xbf16>
    %23 = vector.shape_cast %22 : vector<16x32xbf16> to vector<2x8x32xbf16>
    %24 = vector.extract_strided_slice %20 {offsets = [0, 0], sizes = [16, 32], strides = [1, 1]} : vector<16x128xbf16> to vector<16x32xbf16>
    %25 = vector.shape_cast %24 : vector<16x32xbf16> to vector<2x8x32xbf16>
    %26 = vector.extract_strided_slice %21 {offsets = [0, 0], sizes = [16, 32], strides = [1, 1]} : vector<16x128xbf16> to vector<16x32xbf16>
    %27 = vector.shape_cast %26 : vector<16x32xbf16> to vector<2x8x32xbf16>
    "tpu.trace_start"() <{level = 10 : i32, message = "bqd,bkd->bqk"}> : () -> ()
    %cst_12 = arith.constant dense<0.000000e+00> : vector<2x8x8xf32>
    %28 = tpu.matmul %23, %25, %cst_12 {dimension_numbers = #tpu.dot_dimension_numbers<[2], [2], [1], [1], [0, 0, 0, 1, 1, 1], [0], [0]>} : vector<2x8x32xbf16>, vector<2x8x32xbf16>, vector<2x8x8xf32> -> vector<2x8x8xf32>
    "tpu.trace_stop"() : () -> ()
    %cst_13 = arith.constant 0.176776692 : f32
    %29 = vector.broadcast %cst_13 : f32 to vector<2x8x8xf32>
    %30 = arith.mulf %28, %29 : vector<2x8x8xf32>
    %31 = vector.broadcast %9 : vector<2x1x8xf32> to vector<2x8x8xf32>
    %32 = arith.addf %30, %31 : vector<2x8x8xf32>
    %cst_14 = arith.constant dense<0xFF800000> : vector<2x8xf32>
    %33 = vector.multi_reduction <maximumf>, %32, %cst_14 [2] : vector<2x8x8xf32> to vector<2x8xf32>
    %34 = vector.shape_cast %33 : vector<2x8xf32> to vector<2x8x1xf32>
    %35 = vector.broadcast %34 : vector<2x8x1xf32> to vector<2x8x8xf32>
    %36 = arith.subf %32, %35 : vector<2x8x8xf32>
    %37 = math.exp %36 : vector<2x8x8xf32>
    %cst_15 = arith.constant dense<0.000000e+00> : vector<2x8xf32>
    %38 = vector.multi_reduction <add>, %37, %cst_15 [2] : vector<2x8x8xf32> to vector<2x8xf32>
    %39 = vector.shape_cast %38 : vector<2x8xf32> to vector<2x8x1xf32>
    %40 = tpu.reciprocal %39 {approx = true} : vector<2x8x1xf32> -> vector<2x8x1xf32>
    %41 = vector.broadcast %40 : vector<2x8x1xf32> to vector<2x8x8xf32>
    %42 = arith.mulf %37, %41 : vector<2x8x8xf32>
    %43 = arith.truncf %42 : vector<2x8x8xf32> to vector<2x8x8xbf16>
    "tpu.trace_start"() <{level = 10 : i32, message = "bqk,bkd->bqd"}> : () -> ()
    %cst_16 = arith.constant dense<0.000000e+00> : vector<2x8x32xf32>
    %44 = tpu.matmul %43, %27, %cst_16 {dimension_numbers = #tpu.dot_dimension_numbers<[2], [1], [1], [2], [0, 0, 0, 1, 1, 2], [0], [0]>} : vector<2x8x8xbf16>, vector<2x8x32xbf16>, vector<2x8x32xf32> -> vector<2x8x32xf32>
    "tpu.trace_stop"() : () -> ()
    %45 = vector.shape_cast %44 : vector<2x8x32xf32> to vector<16x32xf32>
    %46 = vector.extract_strided_slice %19 {offsets = [0, 32], sizes = [16, 32], strides = [1, 1]} : vector<16x128xbf16> to vector<16x32xbf16>
    %47 = vector.shape_cast %46 : vector<16x32xbf16> to vector<2x8x32xbf16>
    %48 = vector.extract_strided_slice %20 {offsets = [0, 32], sizes = [16, 32], strides = [1, 1]} : vector<16x128xbf16> to vector<16x32xbf16>
    %49 = vector.shape_cast %48 : vector<16x32xbf16> to vector<2x8x32xbf16>
    %50 = vector.extract_strided_slice %21 {offsets = [0, 32], sizes = [16, 32], strides = [1, 1]} : vector<16x128xbf16> to vector<16x32xbf16>
    %51 = vector.shape_cast %50 : vector<16x32xbf16> to vector<2x8x32xbf16>
    "tpu.trace_start"() <{level = 10 : i32, message = "bqd,bkd->bqk"}> : () -> ()
    %cst_17 = arith.constant dense<0.000000e+00> : vector<2x8x8xf32>
    %52 = tpu.matmul %47, %49, %cst_17 {dimension_numbers = #tpu.dot_dimension_numbers<[2], [2], [1], [1], [0, 0, 0, 1, 1, 1], [0], [0]>} : vector<2x8x32xbf16>, vector<2x8x32xbf16>, vector<2x8x8xf32> -> vector<2x8x8xf32>
    "tpu.trace_stop"() : () -> ()
    %cst_18 = arith.constant 0.176776692 : f32
    %53 = vector.broadcast %cst_18 : f32 to vector<2x8x8xf32>
    %54 = arith.mulf %52, %53 : vector<2x8x8xf32>
    %55 = vector.broadcast %9 : vector<2x1x8xf32> to vector<2x8x8xf32>
    %56 = arith.addf %54, %55 : vector<2x8x8xf32>
    %cst_19 = arith.constant dense<0xFF800000> : vector<2x8xf32>
    %57 = vector.multi_reduction <maximumf>, %56, %cst_19 [2] : vector<2x8x8xf32> to vector<2x8xf32>
    %58 = vector.shape_cast %57 : vector<2x8xf32> to vector<2x8x1xf32>
    %59 = vector.broadcast %58 : vector<2x8x1xf32> to vector<2x8x8xf32>
    %60 = arith.subf %56, %59 : vector<2x8x8xf32>
    %61 = math.exp %60 : vector<2x8x8xf32>
    %cst_20 = arith.constant dense<0.000000e+00> : vector<2x8xf32>
    %62 = vector.multi_reduction <add>, %61, %cst_20 [2] : vector<2x8x8xf32> to vector<2x8xf32>
    %63 = vector.shape_cast %62 : vector<2x8xf32> to vector<2x8x1xf32>
    %64 = tpu.reciprocal %63 {approx = true} : vector<2x8x1xf32> -> vector<2x8x1xf32>
    %65 = vector.broadcast %64 : vector<2x8x1xf32> to vector<2x8x8xf32>
    %66 = arith.mulf %61, %65 : vector<2x8x8xf32>
    %67 = arith.truncf %66 : vector<2x8x8xf32> to vector<2x8x8xbf16>
    "tpu.trace_start"() <{level = 10 : i32, message = "bqk,bkd->bqd"}> : () -> ()
    %cst_21 = arith.constant dense<0.000000e+00> : vector<2x8x32xf32>
    %68 = tpu.matmul %67, %51, %cst_21 {dimension_numbers = #tpu.dot_dimension_numbers<[2], [1], [1], [2], [0, 0, 0, 1, 1, 2], [0], [0]>} : vector<2x8x8xbf16>, vector<2x8x32xbf16>, vector<2x8x32xf32> -> vector<2x8x32xf32>
    "tpu.trace_stop"() : () -> ()
    %69 = vector.shape_cast %68 : vector<2x8x32xf32> to vector<16x32xf32>
    %70 = vector.extract_strided_slice %19 {offsets = [0, 64], sizes = [16, 32], strides = [1, 1]} : vector<16x128xbf16> to vector<16x32xbf16>
    %71 = vector.shape_cast %70 : vector<16x32xbf16> to vector<2x8x32xbf16>
    %72 = vector.extract_strided_slice %20 {offsets = [0, 64], sizes = [16, 32], strides = [1, 1]} : vector<16x128xbf16> to vector<16x32xbf16>
    %73 = vector.shape_cast %72 : vector<16x32xbf16> to vector<2x8x32xbf16>
    %74 = vector.extract_strided_slice %21 {offsets = [0, 64], sizes = [16, 32], strides = [1, 1]} : vector<16x128xbf16> to vector<16x32xbf16>
    %75 = vector.shape_cast %74 : vector<16x32xbf16> to vector<2x8x32xbf16>
    "tpu.trace_start"() <{level = 10 : i32, message = "bqd,bkd->bqk"}> : () -> ()
    %cst_22 = arith.constant dense<0.000000e+00> : vector<2x8x8xf32>
    %76 = tpu.matmul %71, %73, %cst_22 {dimension_numbers = #tpu.dot_dimension_numbers<[2], [2], [1], [1], [0, 0, 0, 1, 1, 1], [0], [0]>} : vector<2x8x32xbf16>, vector<2x8x32xbf16>, vector<2x8x8xf32> -> vector<2x8x8xf32>
    "tpu.trace_stop"() : () -> ()
    %cst_23 = arith.constant 0.176776692 : f32
    %77 = vector.broadcast %cst_23 : f32 to vector<2x8x8xf32>
    %78 = arith.mulf %76, %77 : vector<2x8x8xf32>
    %79 = vector.broadcast %9 : vector<2x1x8xf32> to vector<2x8x8xf32>
    %80 = arith.addf %78, %79 : vector<2x8x8xf32>
    %cst_24 = arith.constant dense<0xFF800000> : vector<2x8xf32>
    %81 = vector.multi_reduction <maximumf>, %80, %cst_24 [2] : vector<2x8x8xf32> to vector<2x8xf32>
    %82 = vector.shape_cast %81 : vector<2x8xf32> to vector<2x8x1xf32>
    %83 = vector.broadcast %82 : vector<2x8x1xf32> to vector<2x8x8xf32>
    %84 = arith.subf %80, %83 : vector<2x8x8xf32>
    %85 = math.exp %84 : vector<2x8x8xf32>
    %cst_25 = arith.constant dense<0.000000e+00> : vector<2x8xf32>
    %86 = vector.multi_reduction <add>, %85, %cst_25 [2] : vector<2x8x8xf32> to vector<2x8xf32>
    %87 = vector.shape_cast %86 : vector<2x8xf32> to vector<2x8x1xf32>
    %88 = tpu.reciprocal %87 {approx = true} : vector<2x8x1xf32> -> vector<2x8x1xf32>
    %89 = vector.broadcast %88 : vector<2x8x1xf32> to vector<2x8x8xf32>
    %90 = arith.mulf %85, %89 : vector<2x8x8xf32>
    %91 = arith.truncf %90 : vector<2x8x8xf32> to vector<2x8x8xbf16>
    "tpu.trace_start"() <{level = 10 : i32, message = "bqk,bkd->bqd"}> : () -> ()
    %cst_26 = arith.constant dense<0.000000e+00> : vector<2x8x32xf32>
    %92 = tpu.matmul %91, %75, %cst_26 {dimension_numbers = #tpu.dot_dimension_numbers<[2], [1], [1], [2], [0, 0, 0, 1, 1, 2], [0], [0]>} : vector<2x8x8xbf16>, vector<2x8x32xbf16>, vector<2x8x32xf32> -> vector<2x8x32xf32>
    "tpu.trace_stop"() : () -> ()
    %93 = vector.shape_cast %92 : vector<2x8x32xf32> to vector<16x32xf32>
    %94 = vector.extract_strided_slice %19 {offsets = [0, 96], sizes = [16, 32], strides = [1, 1]} : vector<16x128xbf16> to vector<16x32xbf16>
    %95 = vector.shape_cast %94 : vector<16x32xbf16> to vector<2x8x32xbf16>
    %96 = vector.extract_strided_slice %20 {offsets = [0, 96], sizes = [16, 32], strides = [1, 1]} : vector<16x128xbf16> to vector<16x32xbf16>
    %97 = vector.shape_cast %96 : vector<16x32xbf16> to vector<2x8x32xbf16>
    %98 = vector.extract_strided_slice %21 {offsets = [0, 96], sizes = [16, 32], strides = [1, 1]} : vector<16x128xbf16> to vector<16x32xbf16>
    %99 = vector.shape_cast %98 : vector<16x32xbf16> to vector<2x8x32xbf16>
    "tpu.trace_start"() <{level = 10 : i32, message = "bqd,bkd->bqk"}> : () -> ()
    %cst_27 = arith.constant dense<0.000000e+00> : vector<2x8x8xf32>
    %100 = tpu.matmul %95, %97, %cst_27 {dimension_numbers = #tpu.dot_dimension_numbers<[2], [2], [1], [1], [0, 0, 0, 1, 1, 1], [0], [0]>} : vector<2x8x32xbf16>, vector<2x8x32xbf16>, vector<2x8x8xf32> -> vector<2x8x8xf32>
    "tpu.trace_stop"() : () -> ()
    %cst_28 = arith.constant 0.176776692 : f32
    %101 = vector.broadcast %cst_28 : f32 to vector<2x8x8xf32>
    %102 = arith.mulf %100, %101 : vector<2x8x8xf32>
    %103 = vector.broadcast %9 : vector<2x1x8xf32> to vector<2x8x8xf32>
    %104 = arith.addf %102, %103 : vector<2x8x8xf32>
    %cst_29 = arith.constant dense<0xFF800000> : vector<2x8xf32>
    %105 = vector.multi_reduction <maximumf>, %104, %cst_29 [2] : vector<2x8x8xf32> to vector<2x8xf32>
    %106 = vector.shape_cast %105 : vector<2x8xf32> to vector<2x8x1xf32>
    %107 = vector.broadcast %106 : vector<2x8x1xf32> to vector<2x8x8xf32>
    %108 = arith.subf %104, %107 : vector<2x8x8xf32>
    %109 = math.exp %108 : vector<2x8x8xf32>
    %cst_30 = arith.constant dense<0.000000e+00> : vector<2x8xf32>
    %110 = vector.multi_reduction <add>, %109, %cst_30 [2] : vector<2x8x8xf32> to vector<2x8xf32>
    %111 = vector.shape_cast %110 : vector<2x8xf32> to vector<2x8x1xf32>
    %112 = tpu.reciprocal %111 {approx = true} : vector<2x8x1xf32> -> vector<2x8x1xf32>
    %113 = vector.broadcast %112 : vector<2x8x1xf32> to vector<2x8x8xf32>
    %114 = arith.mulf %109, %113 : vector<2x8x8xf32>
    %115 = arith.truncf %114 : vector<2x8x8xf32> to vector<2x8x8xbf16>
    "tpu.trace_start"() <{level = 10 : i32, message = "bqk,bkd->bqd"}> : () -> ()
    %cst_31 = arith.constant dense<0.000000e+00> : vector<2x8x32xf32>
    %116 = tpu.matmul %115, %99, %cst_31 {dimension_numbers = #tpu.dot_dimension_numbers<[2], [1], [1], [2], [0, 0, 0, 1, 1, 2], [0], [0]>} : vector<2x8x8xbf16>, vector<2x8x32xbf16>, vector<2x8x32xf32> -> vector<2x8x32xf32>
    "tpu.trace_stop"() : () -> ()
    %117 = vector.shape_cast %116 : vector<2x8x32xf32> to vector<16x32xf32>
    %118 = tpu.concatenate %45, %69, %93, %117 in 1 : vector<16x32xf32>, vector<16x32xf32>, vector<16x32xf32>, vector<16x32xf32> -> vector<16x128xf32>
    %119 = arith.truncf %118 : vector<16x128xf32> to vector<16x128xbf16>
    %c0_32 = arith.constant 0 : index
    %c0_33 = arith.constant 0 : index
    %c0_34 = arith.constant 0 : index
    %120 = vector.load %arg7[%c0_32, %c0_33, %c0_34] : memref<1x128x128xbf16, #tpu.memory_space<vmem>>, vector<1x128x128xbf16>
    %121 = vector.shape_cast %120 : vector<1x128x128xbf16> to vector<128x128xbf16>
    %cst_35 = arith.constant dense<0.000000e+00> : vector<16x128xf32>
    %122 = tpu.matmul %119, %121, %cst_35 {dimension_numbers = #tpu.dot_dimension_numbers<[1], [0], [0], [1], [0, 0, 1, 1], [], []>} : vector<16x128xbf16>, vector<128x128xbf16>, vector<16x128xf32> -> vector<16x128xf32>
    %c0_36 = arith.constant 0 : index
    %c0_37 = arith.constant 0 : index
    %c0_38 = arith.constant 0 : index
    %123 = vector.load %arg8[%c0_36, %c0_37, %c0_38] : memref<1x1x128xf32, #tpu.memory_space<vmem>>, vector<1x1x128xf32>
    %124 = vector.shape_cast %123 : vector<1x1x128xf32> to vector<1x128xf32>
    %125 = vector.broadcast %124 : vector<1x128xf32> to vector<16x128xf32>
    %126 = arith.addf %122, %125 : vector<16x128xf32>
    %127 = arith.addf %3, %126 : vector<16x128xf32>
    %c0_39 = arith.constant 0 : index
    %c0_40 = arith.constant 0 : index
    %c0_41 = arith.constant 0 : index
    %128 = vector.load %arg9[%c0_39, %c0_40, %c0_41] : memref<1x1x128xf32, #tpu.memory_space<vmem>>, vector<1x1x128xf32>
    %129 = vector.shape_cast %128 : vector<1x1x128xf32> to vector<1x128xf32>
    %c0_42 = arith.constant 0 : index
    %c0_43 = arith.constant 0 : index
    %c0_44 = arith.constant 0 : index
    %130 = vector.load %arg10[%c0_42, %c0_43, %c0_44] : memref<1x1x128xf32, #tpu.memory_space<vmem>>, vector<1x1x128xf32>
    %131 = vector.shape_cast %130 : vector<1x1x128xf32> to vector<1x128xf32>
    %cst_45 = arith.constant dense<0.000000e+00> : vector<16xf32>
    %132 = vector.multi_reduction <add>, %127, %cst_45 [1] : vector<16x128xf32> to vector<16xf32>
    %133 = vector.shape_cast %132 : vector<16xf32> to vector<16x1xf32>
    %cst_46 = arith.constant 1.280000e+02 : f32
    %134 = vector.broadcast %cst_46 : f32 to vector<16x1xf32>
    %135 = arith.divf %133, %134 : vector<16x1xf32>
    %136 = vector.broadcast %135 : vector<16x1xf32> to vector<16x128xf32>
    %137 = arith.subf %127, %136 : vector<16x128xf32>
    %138 = arith.mulf %137, %137 : vector<16x128xf32>
    %cst_47 = arith.constant dense<0.000000e+00> : vector<16xf32>
    %139 = vector.multi_reduction <add>, %138, %cst_47 [1] : vector<16x128xf32> to vector<16xf32>
    %140 = vector.shape_cast %139 : vector<16xf32> to vector<16x1xf32>
    %cst_48 = arith.constant 1.280000e+02 : f32
    %141 = vector.broadcast %cst_48 : f32 to vector<16x1xf32>
    %142 = arith.divf %140, %141 : vector<16x1xf32>
    %143 = vector.broadcast %135 : vector<16x1xf32> to vector<16x128xf32>
    %144 = arith.subf %127, %143 : vector<16x128xf32>
    %cst_49 = arith.constant 9.99999996E-13 : f32
    %145 = vector.broadcast %cst_49 : f32 to vector<16x1xf32>
    %146 = arith.addf %142, %145 : vector<16x1xf32>
    %147 = math.rsqrt %146 : vector<16x1xf32>
    %148 = vector.broadcast %147 : vector<16x1xf32> to vector<16x128xf32>
    %149 = arith.mulf %144, %148 : vector<16x128xf32>
    %150 = vector.broadcast %129 : vector<1x128xf32> to vector<16x128xf32>
    %151 = arith.mulf %149, %150 : vector<16x128xf32>
    %152 = vector.broadcast %131 : vector<1x128xf32> to vector<16x128xf32>
    %153 = arith.addf %151, %152 : vector<16x128xf32>
    %154 = arith.truncf %153 : vector<16x128xf32> to vector<16x128xbf16>
    %c0_50 = arith.constant 0 : index
    %c0_51 = arith.constant 0 : index
    %c0_52 = arith.constant 0 : index
    %155 = vector.load %arg11[%c0_50, %c0_51, %c0_52] : memref<1x128x256xbf16, #tpu.memory_space<vmem>>, vector<1x128x256xbf16>
    %156 = vector.shape_cast %155 : vector<1x128x256xbf16> to vector<128x256xbf16>
    %cst_53 = arith.constant dense<0.000000e+00> : vector<16x256xf32>
    %157 = tpu.matmul %154, %156, %cst_53 {dimension_numbers = #tpu.dot_dimension_numbers<[1], [0], [0], [1], [0, 0, 1, 1], [], []>} : vector<16x128xbf16>, vector<128x256xbf16>, vector<16x256xf32> -> vector<16x256xf32>
    %c0_54 = arith.constant 0 : index
    %c0_55 = arith.constant 0 : index
    %c0_56 = arith.constant 0 : index
    %158 = vector.load %arg12[%c0_54, %c0_55, %c0_56] : memref<1x1x256xf32, #tpu.memory_space<vmem>>, vector<1x1x256xf32>
    %159 = vector.shape_cast %158 : vector<1x1x256xf32> to vector<1x256xf32>
    %160 = vector.broadcast %159 : vector<1x256xf32> to vector<16x256xf32>
    %161 = arith.addf %157, %160 : vector<16x256xf32>
    %cst_57 = arith.constant 5.000000e-01 : f32
    %162 = vector.broadcast %cst_57 : f32 to vector<16x256xf32>
    %163 = arith.mulf %162, %161 : vector<16x256xf32>
    %cst_58 = arith.constant 0.707106769 : f32
    %164 = vector.broadcast %cst_58 : f32 to vector<16x256xf32>
    %165 = arith.mulf %161, %164 : vector<16x256xf32>
    %166 = math.erf %165 : vector<16x256xf32>
    %cst_59 = arith.constant 1.000000e+00 : f32
    %167 = vector.broadcast %cst_59 : f32 to vector<16x256xf32>
    %168 = arith.addf %167, %166 : vector<16x256xf32>
    %169 = arith.mulf %163, %168 : vector<16x256xf32>
    %170 = arith.truncf %169 : vector<16x256xf32> to vector<16x256xbf16>
    %c0_60 = arith.constant 0 : index
    %c0_61 = arith.constant 0 : index
    %c0_62 = arith.constant 0 : index
    %171 = vector.load %arg13[%c0_60, %c0_61, %c0_62] : memref<1x256x128xbf16, #tpu.memory_space<vmem>>, vector<1x256x128xbf16>
    %172 = vector.shape_cast %171 : vector<1x256x128xbf16> to vector<256x128xbf16>
    %cst_63 = arith.constant dense<0.000000e+00> : vector<16x128xf32>
    %173 = tpu.matmul %170, %172, %cst_63 {dimension_numbers = #tpu.dot_dimension_numbers<[1], [0], [0], [1], [0, 0, 1, 1], [], []>} : vector<16x256xbf16>, vector<256x128xbf16>, vector<16x128xf32> -> vector<16x128xf32>
    %c0_64 = arith.constant 0 : index
    %c0_65 = arith.constant 0 : index
    %c0_66 = arith.constant 0 : index
    %174 = vector.load %arg14[%c0_64, %c0_65, %c0_66] : memref<1x1x128xf32, #tpu.memory_space<vmem>>, vector<1x1x128xf32>
    %175 = vector.shape_cast %174 : vector<1x1x128xf32> to vector<1x128xf32>
    %176 = vector.broadcast %175 : vector<1x128xf32> to vector<16x128xf32>
    %177 = arith.addf %173, %176 : vector<16x128xf32>
    %178 = arith.addf %153, %177 : vector<16x128xf32>
    %c0_67 = arith.constant 0 : index
    %c0_68 = arith.constant 0 : index
    %c0_69 = arith.constant 0 : index
    %179 = vector.load %arg15[%c0_67, %c0_68, %c0_69] : memref<1x1x128xf32, #tpu.memory_space<vmem>>, vector<1x1x128xf32>
    %180 = vector.shape_cast %179 : vector<1x1x128xf32> to vector<1x128xf32>
    %c0_70 = arith.constant 0 : index
    %c0_71 = arith.constant 0 : index
    %c0_72 = arith.constant 0 : index
    %181 = vector.load %arg16[%c0_70, %c0_71, %c0_72] : memref<1x1x128xf32, #tpu.memory_space<vmem>>, vector<1x1x128xf32>
    %182 = vector.shape_cast %181 : vector<1x1x128xf32> to vector<1x128xf32>
    %cst_73 = arith.constant dense<0.000000e+00> : vector<16xf32>
    %183 = vector.multi_reduction <add>, %178, %cst_73 [1] : vector<16x128xf32> to vector<16xf32>
    %184 = vector.shape_cast %183 : vector<16xf32> to vector<16x1xf32>
    %cst_74 = arith.constant 1.280000e+02 : f32
    %185 = vector.broadcast %cst_74 : f32 to vector<16x1xf32>
    %186 = arith.divf %184, %185 : vector<16x1xf32>
    %187 = vector.broadcast %186 : vector<16x1xf32> to vector<16x128xf32>
    %188 = arith.subf %178, %187 : vector<16x128xf32>
    %189 = arith.mulf %188, %188 : vector<16x128xf32>
    %cst_75 = arith.constant dense<0.000000e+00> : vector<16xf32>
    %190 = vector.multi_reduction <add>, %189, %cst_75 [1] : vector<16x128xf32> to vector<16xf32>
    %191 = vector.shape_cast %190 : vector<16xf32> to vector<16x1xf32>
    %cst_76 = arith.constant 1.280000e+02 : f32
    %192 = vector.broadcast %cst_76 : f32 to vector<16x1xf32>
    %193 = arith.divf %191, %192 : vector<16x1xf32>
    %194 = vector.broadcast %186 : vector<16x1xf32> to vector<16x128xf32>
    %195 = arith.subf %178, %194 : vector<16x128xf32>
    %cst_77 = arith.constant 9.99999996E-13 : f32
    %196 = vector.broadcast %cst_77 : f32 to vector<16x1xf32>
    %197 = arith.addf %193, %196 : vector<16x1xf32>
    %198 = math.rsqrt %197 : vector<16x1xf32>
    %199 = vector.broadcast %198 : vector<16x1xf32> to vector<16x128xf32>
    %200 = arith.mulf %195, %199 : vector<16x128xf32>
    %201 = vector.broadcast %180 : vector<1x128xf32> to vector<16x128xf32>
    %202 = arith.mulf %200, %201 : vector<16x128xf32>
    %203 = vector.broadcast %182 : vector<1x128xf32> to vector<16x128xf32>
    %204 = arith.addf %202, %203 : vector<16x128xf32>
    %c0_78 = arith.constant 0 : index
    %c0_79 = arith.constant 0 : index
    %205 = vector.load %arg17[%c0_78, %c0_79] : memref<16x128xf32, #tpu.memory_space<vmem>>, vector<16x128xf32>
    tpu.vector_store %arg17[%c0_78, %c0_79], %204 {strides = array<i32>} : memref<16x128xf32, #tpu.memory_space<vmem>>, vector<16x128xf32>,
    return
  }
  func.func @transform_0(%arg0: i32) -> (i32, i32) {
    %c0_i32 = arith.constant 0 : i32
    %c0_i32_0 = arith.constant 0 : i32
    %c0_i32_1 = arith.constant 0 : i32
    return %c0_i32, %c0_i32_0 : i32, i32
  }
  func.func @transform_1(%arg0: i32) -> (i32, i32) {
    %c0_i32 = arith.constant 0 : i32
    %c0_i32_0 = arith.constant 0 : i32
    %c0_i32_1 = arith.constant 0 : i32
    return %c0_i32, %c0_i32_0 : i32, i32
  }
  func.func @transform_2(%arg0: i32) -> (i32, i32) {
    %c0_i32 = arith.constant 0 : i32
    %c0_i32_0 = arith.constant 0 : i32
    %c0_i32_1 = arith.constant 0 : i32
    return %c0_i32, %c0_i32_0 : i32, i32
  }
  func.func @transform_3(%arg0: i32) -> (i32, i32) {
    %c0_i32 = arith.constant 0 : i32
    %c0_i32_0 = arith.constant 0 : i32
    %c0_i32_1 = arith.constant 0 : i32
    return %c0_i32, %c0_i32_0 : i32, i32
  }
  func.func @transform_4(%arg0: i32) -> (i32, i32, i32) {
    %c0_i32 = arith.constant 0 : i32
    %c0_i32_0 = arith.constant 0 : i32
    %c0_i32_1 = arith.constant 0 : i32
    return %arg0, %c0_i32, %c0_i32_0 : i32, i32, i32
  }
  func.func @transform_5(%arg0: i32) -> (i32, i32, i32) {
    %c0_i32 = arith.constant 0 : i32
    %c0_i32_0 = arith.constant 0 : i32
    %c0_i32_1 = arith.constant 0 : i32
    return %arg0, %c0_i32, %c0_i32_0 : i32, i32, i32
  }
  func.func @transform_6(%arg0: i32) -> (i32, i32, i32) {
    %c0_i32 = arith.constant 0 : i32
    %c0_i32_0 = arith.constant 0 : i32
    %c0_i32_1 = arith.constant 0 : i32
    return %arg0, %c0_i32, %c0_i32_0 : i32, i32, i32
  }
  func.func @transform_7(%arg0: i32) -> (i32, i32, i32) {
    %c0_i32 = arith.constant 0 : i32
    %c0_i32_0 = arith.constant 0 : i32
    %c0_i32_1 = arith.constant 0 : i32
    return %arg0, %c0_i32, %c0_i32_0 : i32, i32, i32
  }
  func.func @transform_8(%arg0: i32) -> (i32, i32, i32) {
    %c0_i32 = arith.constant 0 : i32
    %c0_i32_0 = arith.constant 0 : i32
    %c0_i32_1 = arith.constant 0 : i32
    return %arg0, %c0_i32, %c0_i32_0 : i32, i32, i32
  }
  func.func @transform_9(%arg0: i32) -> (i32, i32, i32) {
    %c0_i32 = arith.constant 0 : i32
    %c0_i32_0 = arith.constant 0 : i32
    %c0_i32_1 = arith.constant 0 : i32
    return %arg0, %c0_i32, %c0_i32_0 : i32, i32, i32
  }
  func.func @transform_10(%arg0: i32) -> (i32, i32, i32) {
    %c0_i32 = arith.constant 0 : i32
    %c0_i32_0 = arith.constant 0 : i32
    %c0_i32_1 = arith.constant 0 : i32
    return %arg0, %c0_i32, %c0_i32_0 : i32, i32, i32
  }
  func.func @transform_11(%arg0: i32) -> (i32, i32, i32) {
    %c0_i32 = arith.constant 0 : i32
    %c0_i32_0 = arith.constant 0 : i32
    %c0_i32_1 = arith.constant 0 : i32
    return %arg0, %c0_i32, %c0_i32_0 : i32, i32, i32
  }
  func.func @transform_12(%arg0: i32) -> (i32, i32, i32) {
    %c0_i32 = arith.constant 0 : i32
    %c0_i32_0 = arith.constant 0 : i32
    %c0_i32_1 = arith.constant 0 : i32
    return %arg0, %c0_i32, %c0_i32_0 : i32, i32, i32
  }
  func.func @transform_13(%arg0: i32) -> (i32, i32, i32) {
    %c0_i32 = arith.constant 0 : i32
    %c0_i32_0 = arith.constant 0 : i32
    %c0_i32_1 = arith.constant 0 : i32
    return %arg0, %c0_i32, %c0_i32_0 : i32, i32, i32
  }
  func.func @transform_14(%arg0: i32) -> (i32, i32, i32) {
    %c0_i32 = arith.constant 0 : i32
    %c0_i32_0 = arith.constant 0 : i32
    %c0_i32_1 = arith.constant 0 : i32
    return %arg0, %c0_i32, %c0_i32_0 : i32, i32, i32
  }
  func.func @transform_15(%arg0: i32) -> (i32, i32, i32) {
    %c0_i32 = arith.constant 0 : i32
    %c0_i32_0 = arith.constant 0 : i32
    %c0_i32_1 = arith.constant 0 : i32
    return %arg0, %c0_i32, %c0_i32_0 : i32, i32, i32
  }
  func.func @transform_16(%arg0: i32) -> (i32, i32) {
    %c0_i32 = arith.constant 0 : i32
    %c0_i32_0 = arith.constant 0 : i32
    %c0_i32_1 = arith.constant 0 : i32
    return %c0_i32, %c0_i32_0 : i32, i32
  }
}

</mosaic_0001>

<llo_original>
// kernel: class_bert_forward.1
$region0: #{class_bert_forward.1}
  #allocation0 [shape = 'u32[]', space=smem, size = 0x4, offset = 0x4, fixed_abs, tag = 'smem constant byte address 0x4 - core index']
  #allocation1 [shape = 'u32[144,128]{1,0:T(1,128)}', space=vmem, size = 0x12000, scoped, tag = 'internal scratch']
  %s0 = inlined_call_operand.vmem [shape: f32[16,128], index: 0, kind: input, shape index: {}]
  %s1 = inlined_call_operand.vmem [shape: f32[2,8], index: 1, kind: input, shape index: {}]
  %s2 = inlined_call_operand.hbm [shape: f32[1,128], index: 2, kind: input, shape index: {}]
  %s3 = inlined_call_operand.hbm [shape: f32[1,128], index: 3, kind: input, shape index: {}]
  %s4 = inlined_call_operand.hbm [shape: bf16[2,128,384], index: 4, kind: input, shape index: {}]
  %s5 = inlined_call_operand.hbm [shape: f32[2,1,384], index: 5, kind: input, shape index: {}]
  %s6 = inlined_call_operand.hbm [shape: bf16[2,128,128], index: 6, kind: input, shape index: {}]
  %s7 = inlined_call_operand.hbm [shape: f32[2,1,128], index: 7, kind: input, shape index: {}]
  %s8 = inlined_call_operand.hbm [shape: f32[2,1,128], index: 8, kind: input, shape index: {}]
  %s9 = inlined_call_operand.hbm [shape: f32[2,1,128], index: 9, kind: input, shape index: {}]
  %s10 = inlined_call_operand.vmem [shape: bf16[2,128,256], index: 10, kind: input, shape index: {}]
  %s11 = inlined_call_operand.hbm [shape: f32[2,1,256], index: 11, kind: input, shape index: {}]
  %s12 = inlined_call_operand.hbm [shape: bf16[2,256,128], index: 12, kind: input, shape index: {}]
  %s13 = inlined_call_operand.hbm [shape: f32[2,1,128], index: 13, kind: input, shape index: {}]
  %s14 = inlined_call_operand.hbm [shape: f32[2,1,128], index: 14, kind: input, shape index: {}]
  %s15 = inlined_call_operand.hbm [shape: f32[2,1,128], index: 15, kind: input, shape index: {}]
  %s16 = inlined_call_operand.vmem [shape: f32[16,128], index: 16, kind: output, shape index: {}]
  %s17 = sld [smem:[#allocation0]]
  $region153: #{class_bert_forward.1} parent=0
    _
  %s19 = ssub.s32 1, %s17
  %s20 = scalar_select 0, %s19, %s17
  $region1: #{class_bert_forward.1} parent=0
    #allocation2 [shape = 'u8[512]{0}', space=vmem, size = 0x400, scoped, tag = 'input window, operand 2, single buffered']
    #allocation3 [shape = 's32[2]{0}', space=sflag, size = 0x8, scoped, tag = 'scoped memory for class_bert_forward.1']
    #allocation4 [shape = 'u8[512]{0}', space=vmem, size = 0x400, scoped, tag = 'input window, operand 3, single buffered']
    #allocation5 [shape = 's32[1]{0}', space=sflag, size = 0x4, scoped, tag = 'scoped memory for class_bert_forward.1']
    #allocation6 [shape = 'u8[196608]{0}', space=vmem, size = 0x30000, scoped, tag = 'input window, operand 4']
    #allocation7 [shape = 'u8[3072]{0}', space=vmem, size = 0xc00, scoped, tag = 'input window, operand 5']
    #allocation8 [shape = 'u8[65536]{0}', space=vmem, size = 0x10000, scoped, tag = 'input window, operand 6']
    #allocation9 [shape = 'u8[1024]{0}', space=vmem, size = 0x400, scoped, tag = 'input window, operand 7']
    #allocation10 [shape = 'u8[1024]{0}', space=vmem, size = 0x400, scoped, tag = 'input window, operand 8']
    #allocation11 [shape = 'u8[1024]{0}', space=vmem, size = 0x400, scoped, tag = 'input window, operand 9']
    #allocation12 [shape = 'u8[2048]{0}', space=vmem, size = 0x800, scoped, tag = 'input window, operand 11']
    #allocation13 [shape = 'u8[131072]{0}', space=vmem, size = 0x20000, scoped, tag = 'input window, operand 12']
    #allocation14 [shape = 'u8[1024]{0}', space=vmem, size = 0x400, scoped, tag = 'input window, operand 13']
    #allocation15 [shape = 'u8[1024]{0}', space=vmem, size = 0x400, scoped, tag = 'input window, operand 14']
    #allocation16 [shape = 'u8[1024]{0}', space=vmem, size = 0x400, scoped, tag = 'input window, operand 15']
    %21 = vsyncpa [#allocation3], 0
    %22 = vsyncpa [#allocation5], 0
    loop: start=0, step=1, limit=4
    $region2: #{class_bert_forward.1} parent=1 // loop_pre_header
      _
    $region3: #{class_bert_forward.1} parent=1 // loop_header
      %s24 = sphi 0, %s28
      %p25 = scmp.ge.s32.totalorder %s24, 4
      %s32 = sphi 0, %s32
      %s34 = sphi 0, %s32
      %s35 = sphi 0, %s34
      %s49 = sphi 0, %s35
      %s53 = sphi 0, %s53
      %s55 = sphi 0, %s53
      %s56 = sphi 0, %s55
      %s70 = sphi 0, %s56
      %s74 = sphi 0, %s74
      %s76 = sphi 0, %s74
      %s77 = sphi 0, %s76
      %s91 = sphi 0, %s77
      %s95 = sphi 0, %s95
      %s97 = sphi 0, %s95
      %s98 = sphi 0, %s97
      %s112 = sphi 0, %s98
      %s118 = sphi 0, %s120
      %s121 = sphi 0, %s118
      %s122 = sphi 0, %s121
      %s138 = sphi 0, %s122
      %s144 = sphi 0, %s146
      %s147 = sphi 0, %s144
      %s148 = sphi 0, %s147
      %s164 = sphi 0, %s148
      %s170 = sphi 0, %s172
      %s173 = sphi 0, %s170
      %s174 = sphi 0, %s173
      %s190 = sphi 0, %s174
      %s196 = sphi 0, %s198
      %s199 = sphi 0, %s196
      %s200 = sphi 0, %s199
      %s216 = sphi 0, %s200
      %s222 = sphi 0, %s224
      %s225 = sphi 0, %s222
      %s226 = sphi 0, %s225
      %s242 = sphi 0, %s226
      %s248 = sphi 0, %s250
      %s251 = sphi 0, %s248
      %s252 = sphi 0, %s251
      %s268 = sphi 0, %s252
      %s274 = sphi 0, %s276
      %s277 = sphi 0, %s274
      %s278 = sphi 0, %s277
      %s294 = sphi 0, %s278
      %s300 = sphi 0, %s302
      %s303 = sphi 0, %s300
      %s304 = sphi 0, %s303
      %s320 = sphi 0, %s304
      %s326 = sphi 0, %s328
      %s329 = sphi 0, %s326
      %s330 = sphi 0, %s329
      %s346 = sphi 0, %s330
      %s352 = sphi 0, %s354
      %s355 = sphi 0, %s352
      %s356 = sphi 0, %s355
      %s372 = sphi 0, %s356
      %s378 = sphi 0, %s380
      %s381 = sphi 0, %s378
      %s382 = sphi 0, %s381
      %s398 = sphi 0, %s382
      %s404 = sphi 0, %s406
      %s407 = sphi 0, %s404
      %s408 = sphi 0, %s407
      %s424 = sphi 0, %s408
      %s428 = sphi 0, %s428
      %s430 = sphi 0, %s428
      %s431 = sphi 0, %s430
      %s445 = sphi 0, %s431
    $region4: #{class_bert_forward.1} parent=1 // loop_header_branch
      %27 = sbr.rel (%p25) target = $region8
    $region5: #{class_bert_forward.1} parent=1 // loop_body
      %s29 = ssub.s32 %s24, 1
      %s30 = ssub.s32 %s24, 2
      %s31 = sadd.s32 %s24, 1
      %s33 = sadd.s32 %s32, 1
      %p36 = scmp.eq.s32.totalorder %s24, 1
      %p37 = scmp.ne.s32.totalorder %s32, %s34
      %p38 = scmp.eq.s32.totalorder %s24, 0
      %p39 = por %p37, %p38
      %p40 = scmp.ne.s32.totalorder %s32, %s34
      %p41 = scmp.eq.s32.totalorder %s29, 1
      %p42 = por %p40, %p41
      %p43 = scmp.ne.s32.totalorder %s34, %s35
      %p44 = scmp.eq.s32.totalorder %s29, 0
      %p45 = por %p43, %p44
      %p46 = scmp.ne.s32.totalorder %s34, %s35
      %p47 = scmp.eq.s32.totalorder %s30, 1
      %p48 = por %p46, %p47
      %p50 = scmp.ne.s32.totalorder %s35, %s49
      %p51 = scmp.eq.s32.totalorder %s30, 0
      %p52 = por %p50, %p51
      %s54 = sadd.s32 %s53, 1
      %p57 = scmp.eq.s32.totalorder %s24, 1
      %p58 = scmp.ne.s32.totalorder %s53, %s55
      %p59 = scmp.eq.s32.totalorder %s24, 0
      %p60 = por %p58, %p59
      %p61 = scmp.ne.s32.totalorder %s53, %s55
      %p62 = scmp.eq.s32.totalorder %s29, 1
      %p63 = por %p61, %p62
      %p64 = scmp.ne.s32.totalorder %s55, %s56
      %p65 = scmp.eq.s32.totalorder %s29, 0
      %p66 = por %p64, %p65
      %p67 = scmp.ne.s32.totalorder %s55, %s56
      %p68 = scmp.eq.s32.totalorder %s30, 1
      %p69 = por %p67, %p68
      %p71 = scmp.ne.s32.totalorder %s56, %s70
      %p72 = scmp.eq.s32.totalorder %s30, 0
      %p73 = por %p71, %p72
      %s75 = sadd.s32 %s74, 1
      %p78 = scmp.eq.s32.totalorder %s24, 1
      %p79 = scmp.ne.s32.totalorder %s74, %s76
      %p80 = scmp.eq.s32.totalorder %s24, 0
      %p81 = por %p79, %p80
      %p82 = scmp.ne.s32.totalorder %s74, %s76
      %p83 = scmp.eq.s32.totalorder %s29, 1
      %p84 = por %p82, %p83
      %p85 = scmp.ne.s32.totalorder %s76, %s77
      %p86 = scmp.eq.s32.totalorder %s29, 0
      %p87 = por %p85, %p86
      %p88 = scmp.ne.s32.totalorder %s76, %s77
      %p89 = scmp.eq.s32.totalorder %s30, 1
      %p90 = por %p88, %p89
      %p92 = scmp.ne.s32.totalorder %s77, %s91
      %p93 = scmp.eq.s32.totalorder %s30, 0
      %p94 = por %p92, %p93
      %s96 = sadd.s32 %s95, 1
      %p99 = scmp.eq.s32.totalorder %s24, 1
      %p100 = scmp.ne.s32.totalorder %s95, %s97
      %p101 = scmp.eq.s32.totalorder %s24, 0
      %p102 = por %p100, %p101
      %p103 = scmp.ne.s32.totalorder %s95, %s97
      %p104 = scmp.eq.s32.totalorder %s29, 1
      %p105 = por %p103, %p104
      %p106 = scmp.ne.s32.totalorder %s97, %s98
      %p107 = scmp.eq.s32.totalorder %s29, 0
      %p108 = por %p106, %p107
      %p109 = scmp.ne.s32.totalorder %s97, %s98
      %p110 = scmp.eq.s32.totalorder %s30, 1
      %p111 = por %p109, %p110
      %p113 = scmp.ne.s32.totalorder %s98, %s112
      %p114 = scmp.eq.s32.totalorder %s30, 0
      %p115 = por %p113, %p114
      %s116 = ssub.s32 %s24, %s31
      %p117 = scmp.eq.s32.totalorder %s116, 0
      %s119 = sadd.s32 %s118, 1
      %s120 = scalar_select %p117, %s118, %s119
      %p123 = pneg %p117
      %p124 = scmp.eq.s32.totalorder %s24, 1
      %p125 = por %p123, %p124
      %p126 = scmp.ne.s32.totalorder %s118, %s121
      %p127 = scmp.eq.s32.totalorder %s24, 0
      %p128 = por %p126, %p127
      %p129 = scmp.ne.s32.totalorder %s118, %s121
      %p130 = scmp.eq.s32.totalorder %s29, 1
      %p131 = por %p129, %p130
      %p132 = scmp.ne.s32.totalorder %s121, %s122
      %p133 = scmp.eq.s32.totalorder %s29, 0
      %p134 = por %p132, %p133
      %p135 = scmp.ne.s32.totalorder %s121, %s122
      %p136 = scmp.eq.s32.totalorder %s30, 1
      %p137 = por %p135, %p136
      %p139 = scmp.ne.s32.totalorder %s122, %s138
      %p140 = scmp.eq.s32.totalorder %s30, 0
      %p141 = por %p139, %p140
      %s142 = ssub.s32 %s24, %s31
      %p143 = scmp.eq.s32.totalorder %s142, 0
      %s145 = sadd.s32 %s144, 1
      %s146 = scalar_select %p143, %s144, %s145
      %p149 = pneg %p143
      %p150 = scmp.eq.s32.totalorder %s24, 1
      %p151 = por %p149, %p150
      %p152 = scmp.ne.s32.totalorder %s144, %s147
      %p153 = scmp.eq.s32.totalorder %s24, 0
      %p154 = por %p152, %p153
      %p155 = scmp.ne.s32.totalorder %s144, %s147
      %p156 = scmp.eq.s32.totalorder %s29, 1
      %p157 = por %p155, %p156
      %p158 = scmp.ne.s32.totalorder %s147, %s148
      %p159 = scmp.eq.s32.totalorder %s29, 0
      %p160 = por %p158, %p159
      %p161 = scmp.ne.s32.totalorder %s147, %s148
      %p162 = scmp.eq.s32.totalorder %s30, 1
      %p163 = por %p161, %p162
      %p165 = scmp.ne.s32.totalorder %s148, %s164
      %p166 = scmp.eq.s32.totalorder %s30, 0
      %p167 = por %p165, %p166
      %s168 = ssub.s32 %s24, %s31
      %p169 = scmp.eq.s32.totalorder %s168, 0
      %s171 = sadd.s32 %s170, 1
      %s172 = scalar_select %p169, %s170, %s171
      %p175 = pneg %p169
      %p176 = scmp.eq.s32.totalorder %s24, 1
      %p177 = por %p175, %p176
      %p178 = scmp.ne.s32.totalorder %s170, %s173
      %p179 = scmp.eq.s32.totalorder %s24, 0
      %p180 = por %p178, %p179
      %p181 = scmp.ne.s32.totalorder %s170, %s173
      %p182 = scmp.eq.s32.totalorder %s29, 1
      %p183 = por %p181, %p182
      %p184 = scmp.ne.s32.totalorder %s173, %s174
      %p185 = scmp.eq.s32.totalorder %s29, 0
      %p186 = por %p184, %p185
      %p187 = scmp.ne.s32.totalorder %s173, %s174
      %p188 = scmp.eq.s32.totalorder %s30, 1
      %p189 = por %p187, %p188
      %p191 = scmp.ne.s32.totalorder %s174, %s190
      %p192 = scmp.eq.s32.totalorder %s30, 0
      %p193 = por %p191, %p192
      %s194 = ssub.s32 %s24, %s31
      %p195 = scmp.eq.s32.totalorder %s194, 0
      %s197 = sadd.s32 %s196, 1
      %s198 = scalar_select %p195, %s196, %s197
      %p201 = pneg %p195
      %p202 = scmp.eq.s32.totalorder %s24, 1
      %p203 = por %p201, %p202
      %p204 = scmp.ne.s32.totalorder %s196, %s199
      %p205 = scmp.eq.s32.totalorder %s24, 0
      %p206 = por %p204, %p205
      %p207 = scmp.ne.s32.totalorder %s196, %s199
      %p208 = scmp.eq.s32.totalorder %s29, 1
      %p209 = por %p207, %p208
      %p210 = scmp.ne.s32.totalorder %s199, %s200
      %p211 = scmp.eq.s32.totalorder %s29, 0
      %p212 = por %p210, %p211
      %p213 = scmp.ne.s32.totalorder %s199, %s200
      %p214 = scmp.eq.s32.totalorder %s30, 1
      %p215 = por %p213, %p214
      %p217 = scmp.ne.s32.totalorder %s200, %s216
      %p218 = scmp.eq.s32.totalorder %s30, 0
      %p219 = por %p217, %p218
      %s220 = ssub.s32 %s24, %s31
      %p221 = scmp.eq.s32.totalorder %s220, 0
      %s223 = sadd.s32 %s222, 1
      %s224 = scalar_select %p221, %s222, %s223
      %p227 = pneg %p221
      %p228 = scmp.eq.s32.totalorder %s24, 1
      %p229 = por %p227, %p228
      %p230 = scmp.ne.s32.totalorder %s222, %s225
      %p231 = scmp.eq.s32.totalorder %s24, 0
      %p232 = por %p230, %p231
      %p233 = scmp.ne.s32.totalorder %s222, %s225
      %p234 = scmp.eq.s32.totalorder %s29, 1
      %p235 = por %p233, %p234
      %p236 = scmp.ne.s32.totalorder %s225, %s226
      %p237 = scmp.eq.s32.totalorder %s29, 0
      %p238 = por %p236, %p237
      %p239 = scmp.ne.s32.totalorder %s225, %s226
      %p240 = scmp.eq.s32.totalorder %s30, 1
      %p241 = por %p239, %p240
      %p243 = scmp.ne.s32.totalorder %s226, %s242
      %p244 = scmp.eq.s32.totalorder %s30, 0
      %p245 = por %p243, %p244
      %s246 = ssub.s32 %s24, %s31
      %p247 = scmp.eq.s32.totalorder %s246, 0
      %s249 = sadd.s32 %s248, 1
      %s250 = scalar_select %p247, %s248, %s249
      %p253 = pneg %p247
      %p254 = scmp.eq.s32.totalorder %s24, 1
      %p255 = por %p253, %p254
      %p256 = scmp.ne.s32.totalorder %s248, %s251
      %p257 = scmp.eq.s32.totalorder %s24, 0
      %p258 = por %p256, %p257
      %p259 = scmp.ne.s32.totalorder %s248, %s251
      %p260 = scmp.eq.s32.totalorder %s29, 1
      %p261 = por %p259, %p260
      %p262 = scmp.ne.s32.totalorder %s251, %s252
      %p263 = scmp.eq.s32.totalorder %s29, 0
      %p264 = por %p262, %p263
      %p265 = scmp.ne.s32.totalorder %s251, %s252
      %p266 = scmp.eq.s32.totalorder %s30, 1
      %p267 = por %p265, %p266
      %p269 = scmp.ne.s32.totalorder %s252, %s268
      %p270 = scmp.eq.s32.totalorder %s30, 0
      %p271 = por %p269, %p270
      %s272 = ssub.s32 %s24, %s31
      %p273 = scmp.eq.s32.totalorder %s272, 0
      %s275 = sadd.s32 %s274, 1
      %s276 = scalar_select %p273, %s274, %s275
      %p279 = pneg %p273
      %p280 = scmp.eq.s32.totalorder %s24, 1
      %p281 = por %p279, %p280
      %p282 = scmp.ne.s32.totalorder %s274, %s277
      %p283 = scmp.eq.s32.totalorder %s24, 0
      %p284 = por %p282, %p283
      %p285 = scmp.ne.s32.totalorder %s274, %s277
      %p286 = scmp.eq.s32.totalorder %s29, 1
      %p287 = por %p285, %p286
      %p288 = scmp.ne.s32.totalorder %s277, %s278
      %p289 = scmp.eq.s32.totalorder %s29, 0
      %p290 = por %p288, %p289
      %p291 = scmp.ne.s32.totalorder %s277, %s278
      %p292 = scmp.eq.s32.totalorder %s30, 1
      %p293 = por %p291, %p292
      %p295 = scmp.ne.s32.totalorder %s278, %s294
      %p296 = scmp.eq.s32.totalorder %s30, 0
      %p297 = por %p295, %p296
      %s298 = ssub.s32 %s24, %s31
      %p299 = scmp.eq.s32.totalorder %s298, 0
      %s301 = sadd.s32 %s300, 1
      %s302 = scalar_select %p299, %s300, %s301
      %p305 = pneg %p299
      %p306 = scmp.eq.s32.totalorder %s24, 1
      %p307 = por %p305, %p306
      %p308 = scmp.ne.s32.totalorder %s300, %s303
      %p309 = scmp.eq.s32.totalorder %s24, 0
      %p310 = por %p308, %p309
      %p311 = scmp.ne.s32.totalorder %s300, %s303
      %p312 = scmp.eq.s32.totalorder %s29, 1
      %p313 = por %p311, %p312
      %p314 = scmp.ne.s32.totalorder %s303, %s304
      %p315 = scmp.eq.s32.totalorder %s29, 0
      %p316 = por %p314, %p315
      %p317 = scmp.ne.s32.totalorder %s303, %s304
      %p318 = scmp.eq.s32.totalorder %s30, 1
      %p319 = por %p317, %p318
      %p321 = scmp.ne.s32.totalorder %s304, %s320
      %p322 = scmp.eq.s32.totalorder %s30, 0
      %p323 = por %p321, %p322
      %s324 = ssub.s32 %s24, %s31
      %p325 = scmp.eq.s32.totalorder %s324, 0
      %s327 = sadd.s32 %s326, 1
      %s328 = scalar_select %p325, %s326, %s327
      %p331 = pneg %p325
      %p332 = scmp.eq.s32.totalorder %s24, 1
      %p333 = por %p331, %p332
      %p334 = scmp.ne.s32.totalorder %s326, %s329
      %p335 = scmp.eq.s32.totalorder %s24, 0
      %p336 = por %p334, %p335
      %p337 = scmp.ne.s32.totalorder %s326, %s329
      %p338 = scmp.eq.s32.totalorder %s29, 1
      %p339 = por %p337, %p338
      %p340 = scmp.ne.s32.totalorder %s329, %s330
      %p341 = scmp.eq.s32.totalorder %s29, 0
      %p342 = por %p340, %p341
      %p343 = scmp.ne.s32.totalorder %s329, %s330
      %p344 = scmp.eq.s32.totalorder %s30, 1
      %p345 = por %p343, %p344
      %p347 = scmp.ne.s32.totalorder %s330, %s346
      %p348 = scmp.eq.s32.totalorder %s30, 0
      %p349 = por %p347, %p348
      %s350 = ssub.s32 %s24, %s31
      %p351 = scmp.eq.s32.totalorder %s350, 0
      %s353 = sadd.s32 %s352, 1
      %s354 = scalar_select %p351, %s352, %s353
      %p357 = pneg %p351
      %p358 = scmp.eq.s32.totalorder %s24, 1
      %p359 = por %p357, %p358
      %p360 = scmp.ne.s32.totalorder %s352, %s355
      %p361 = scmp.eq.s32.totalorder %s24, 0
      %p362 = por %p360, %p361
      %p363 = scmp.ne.s32.totalorder %s352, %s355
      %p364 = scmp.eq.s32.totalorder %s29, 1
      %p365 = por %p363, %p364
      %p366 = scmp.ne.s32.totalorder %s355, %s356
      %p367 = scmp.eq.s32.totalorder %s29, 0
      %p368 = por %p366, %p367
      %p369 = scmp.ne.s32.totalorder %s355, %s356
      %p370 = scmp.eq.s32.totalorder %s30, 1
      %p371 = por %p369, %p370
      %p373 = scmp.ne.s32.totalorder %s356, %s372
      %p374 = scmp.eq.s32.totalorder %s30, 0
      %p375 = por %p373, %p374
      %s376 = ssub.s32 %s24, %s31
      %p377 = scmp.eq.s32.totalorder %s376, 0
      %s379 = sadd.s32 %s378, 1
      %s380 = scalar_select %p377, %s378, %s379
      %p383 = pneg %p377
      %p384 = scmp.eq.s32.totalorder %s24, 1
      %p385 = por %p383, %p384
      %p386 = scmp.ne.s32.totalorder %s378, %s381
      %p387 = scmp.eq.s32.totalorder %s24, 0
      %p388 = por %p386, %p387
      %p389 = scmp.ne.s32.totalorder %s378, %s381
      %p390 = scmp.eq.s32.totalorder %s29, 1
      %p391 = por %p389, %p390
      %p392 = scmp.ne.s32.totalorder %s381, %s382
      %p393 = scmp.eq.s32.totalorder %s29, 0
      %p394 = por %p392, %p393
      %p395 = scmp.ne.s32.totalorder %s381, %s382
      %p396 = scmp.eq.s32.totalorder %s30, 1
      %p397 = por %p395, %p396
      %p399 = scmp.ne.s32.totalorder %s382, %s398
      %p400 = scmp.eq.s32.totalorder %s30, 0
      %p401 = por %p399, %p400
      %s402 = ssub.s32 %s24, %s31
      %p403 = scmp.eq.s32.totalorder %s402, 0
      %s405 = sadd.s32 %s404, 1
      %s406 = scalar_select %p403, %s404, %s405
      %p409 = pneg %p403
      %p410 = scmp.eq.s32.totalorder %s24, 1
      %p411 = por %p409, %p410
      %p412 = scmp.ne.s32.totalorder %s404, %s407
      %p413 = scmp.eq.s32.totalorder %s24, 0
      %p414 = por %p412, %p413
      %p415 = scmp.ne.s32.totalorder %s404, %s407
      %p416 = scmp.eq.s32.totalorder %s29, 1
      %p417 = por %p415, %p416
      %p418 = scmp.ne.s32.totalorder %s407, %s408
      %p419 = scmp.eq.s32.totalorder %s29, 0
      %p420 = por %p418, %p419
      %p421 = scmp.ne.s32.totalorder %s407, %s408
      %p422 = scmp.eq.s32.totalorder %s30, 1
      %p423 = por %p421, %p422
      %p425 = scmp.ne.s32.totalorder %s408, %s424
      %p426 = scmp.eq.s32.totalorder %s30, 0
      %p427 = por %p425, %p426
      %s429 = sadd.s32 %s428, 1
      %p432 = scmp.eq.s32.totalorder %s24, 1
      %p433 = scmp.ne.s32.totalorder %s428, %s430
      %p434 = scmp.eq.s32.totalorder %s24, 0
      %p435 = por %p433, %p434
      %p436 = scmp.ne.s32.totalorder %s428, %s430
      %p437 = scmp.eq.s32.totalorder %s29, 1
      %p438 = por %p436, %p437
      %p439 = scmp.ne.s32.totalorder %s430, %s431
      %p440 = scmp.eq.s32.totalorder %s29, 0
      %p441 = por %p439, %p440
      %p442 = scmp.ne.s32.totalorder %s430, %s431
      %p443 = scmp.eq.s32.totalorder %s30, 1
      %p444 = por %p442, %p443
      %p446 = scmp.ne.s32.totalorder %s431, %s445
      %p447 = scmp.eq.s32.totalorder %s30, 0
      %p448 = por %p446, %p447
      %p449 = scmp.le.s32.totalorder 1, %s24
      %p450 = scmp.lt.s32.totalorder %s24, 3
      %p451 = pnand %p449, %p450
      %p452 = pneg %p451
      // Predicated region
      $region9: #{class_bert_forward.1} parent=5 // pred_check
        _
      $region10: #{class_bert_forward.1} parent=5 // pred_check_branch
        %454 = sbr.rel (%p451) target = $region12
      $region11: #{class_bert_forward.1} parent=5 // pred_region
        %s455 = ssub.s32 %s24, 1
        // Predicated region
        $region13: #{class_bert_forward.1} parent=11 // pred_check
          %p456 = pneg %p45
        $region14: #{class_bert_forward.1} parent=11 // pred_check_branch
          %458 = sbr.rel (%p456) target = $region16
        $region15: #{class_bert_forward.1} parent=11 // pred_region
          _
        $region16: #{class_bert_forward.1} parent=11 // pred_fallthru
          _
        // Predicated region
        $region17: #{class_bert_forward.1} parent=11 // pred_check
          %p459 = pneg %p66
        $region18: #{class_bert_forward.1} parent=11 // pred_check_branch
          %461 = sbr.rel (%p459) target = $region20
        $region19: #{class_bert_forward.1} parent=11 // pred_region
          _
        $region20: #{class_bert_forward.1} parent=11 // pred_fallthru
          _
        // Predicated region
        $region21: #{class_bert_forward.1} parent=11 // pred_check
          %p462 = pneg %p87
        $region22: #{class_bert_forward.1} parent=11 // pred_check_branch
          %464 = sbr.rel (%p462) target = $region24
        $region23: #{class_bert_forward.1} parent=11 // pred_region
          %s466 = ssub.s32 16, 16
          %467 = vsyncadd [#allocation3], %s466
          %s469 = sshll.u32 [#allocation2], 4
          %s470 = int_to_ptr.vmem [resolvable:$true] %s469
          %472 = dma.hbm_to_vmem [thread:$0]  %s2, 16, %s470, [#allocation3]
        $region24: #{class_bert_forward.1} parent=11 // pred_fallthru
          _
        // Predicated region
        $region25: #{class_bert_forward.1} parent=11 // pred_check
          %p473 = pneg %p108
        $region26: #{class_bert_forward.1} parent=11 // pred_check_branch
          %475 = sbr.rel (%p473) target = $region28
        $region27: #{class_bert_forward.1} parent=11 // pred_region
          %s477 = ssub.s32 16, 16
          %478 = vsyncadd [#allocation5], %s477
          %s480 = sshll.u32 [#allocation4], 4
          %s481 = int_to_ptr.vmem [resolvable:$true] %s480
          %483 = dma.hbm_to_vmem [thread:$0]  %s3, 16, %s481, [#allocation5]
        $region28: #{class_bert_forward.1} parent=11 // pred_fallthru
          _
      $region12: #{class_bert_forward.1} parent=5 // pred_fallthru
        _
      %p484 = scmp.lt.s32.totalorder %s24, 2
      // Predicated region
      $region29: #{class_bert_forward.1} parent=5 // pred_check
        %p485 = pneg %p484
      $region30: #{class_bert_forward.1} parent=5 // pred_check_branch
        %487 = sbr.rel (%p485) target = $region32
      $region31: #{class_bert_forward.1} parent=5 // pred_region
        // Predicated region
        $region33: #{class_bert_forward.1} parent=31 // pred_check
          %p488 = pneg %p128
        $region34: #{class_bert_forward.1} parent=31 // pred_check_branch
          %490 = sbr.rel (%p488) target = $region36
        $region35: #{class_bert_forward.1} parent=31 // pred_region
          %s491 = sand.u32 %s24, 1
          %s492 = scalar_lea.sflag [#allocation3], %s491
          %s493 = sand.u32 %s118, 1
          %s494 = smul.addr %s493, 192
          %s495 = scalar_lea.vmem [#allocation6], %s494
          %s497 = ssub.s32 3072, 3072
          %498 = vsyncadd %s492, %s497
          %s499 = smul.addr %s24, 48
          %s500 = smul.addr %s499, 64
          %s501 = scalar_lea.hbm %s4, %s500
          %s502 = sshll.u32 %s495, 4
          %s503 = int_to_ptr.vmem [resolvable:$true] %s502
          %508 = dma.hbm_to_vmem [thread:$0]  %s501, 3072, %s503, %s492, 192, 192, 12
        $region36: #{class_bert_forward.1} parent=31 // pred_fallthru
          _
        // Predicated region
        $region37: #{class_bert_forward.1} parent=31 // pred_check
          %p509 = pneg %p154
        $region38: #{class_bert_forward.1} parent=31 // pred_check_branch
          %511 = sbr.rel (%p509) target = $region40
        $region39: #{class_bert_forward.1} parent=31 // pred_region
          %s512 = sand.u32 %s24, 1
          %s513 = scalar_lea.sflag [#allocation3], %s512
          %s514 = sand.u32 %s144, 1
          %s515 = smul.addr %s514, 3
          %s516 = scalar_lea.vmem [#allocation7], %s515
          %s518 = ssub.s32 48, 48
          %519 = vsyncadd %s513, %s518
          %s520 = smul.addr %s24, 3
          %s521 = smul.addr %s520, 16
          %s522 = scalar_lea.hbm %s5, %s521
          %s524 = sshll.u32 %s516, 4
          %s525 = int_to_ptr.vmem [resolvable:$true] %s524
          %527 = dma.hbm_to_vmem [thread:$0]  %s522, 48, %s525, %s513
        $region40: #{class_bert_forward.1} parent=31 // pred_fallthru
          _
        // Predicated region
        $region41: #{class_bert_forward.1} parent=31 // pred_check
          %p528 = pneg %p180
        $region42: #{class_bert_forward.1} parent=31 // pred_check_branch
          %530 = sbr.rel (%p528) target = $region44
        $region43: #{class_bert_forward.1} parent=31 // pred_region
          %s531 = sand.u32 %s24, 1
          %s532 = scalar_lea.sflag [#allocation3], %s531
          %s533 = sand.u32 %s170, 1
          %s534 = smul.addr %s533, 64
          %s535 = scalar_lea.vmem [#allocation8], %s534
          %s537 = ssub.s32 1024, 1024
          %538 = vsyncadd %s532, %s537
          %s539 = smul.addr %s24, 16
          %s540 = smul.addr %s539, 64
          %s541 = scalar_lea.hbm %s6, %s540
          %s542 = sshll.u32 %s535, 4
          %s543 = int_to_ptr.vmem [resolvable:$true] %s542
          %548 = dma.hbm_to_vmem [thread:$0]  %s541, 1024, %s543, %s532, 64, 64, 4
        $region44: #{class_bert_forward.1} parent=31 // pred_fallthru
          _
        // Predicated region
        $region45: #{class_bert_forward.1} parent=31 // pred_check
          %p549 = pneg %p206
        $region46: #{class_bert_forward.1} parent=31 // pred_check_branch
          %551 = sbr.rel (%p549) target = $region48
        $region47: #{class_bert_forward.1} parent=31 // pred_region
          %s552 = sand.u32 %s24, 1
          %s553 = scalar_lea.sflag [#allocation3], %s552
          %s554 = sand.u32 %s196, 1
          %s555 = scalar_lea.vmem [#allocation9], %s554
          %s557 = ssub.s32 16, 16
          %558 = vsyncadd %s553, %s557
          %s559 = smul.addr %s24, 16
          %s560 = scalar_lea.hbm %s7, %s559
          %s562 = sshll.u32 %s555, 4
          %s563 = int_to_ptr.vmem [resolvable:$true] %s562
          %565 = dma.hbm_to_vmem [thread:$0]  %s560, 16, %s563, %s553
        $region48: #{class_bert_forward.1} parent=31 // pred_fallthru
          _
        // Predicated region
        $region49: #{class_bert_forward.1} parent=31 // pred_check
          %p566 = pneg %p232
        $region50: #{class_bert_forward.1} parent=31 // pred_check_branch
          %568 = sbr.rel (%p566) target = $region52
        $region51: #{class_bert_forward.1} parent=31 // pred_region
          %s569 = sand.u32 %s24, 1
          %s570 = scalar_lea.sflag [#allocation3], %s569
          %s571 = sand.u32 %s222, 1
          %s572 = scalar_lea.vmem [#allocation10], %s571
          %s574 = ssub.s32 16, 16
          %575 = vsyncadd %s570, %s574
          %s576 = smul.addr %s24, 16
          %s577 = scalar_lea.hbm %s8, %s576
          %s579 = sshll.u32 %s572, 4
          %s580 = int_to_ptr.vmem [resolvable:$true] %s579
          %582 = dma.hbm_to_vmem [thread:$0]  %s577, 16, %s580, %s570
        $region52: #{class_bert_forward.1} parent=31 // pred_fallthru
          _
        // Predicated region
        $region53: #{class_bert_forward.1} parent=31 // pred_check
          %p583 = pneg %p258
        $region54: #{class_bert_forward.1} parent=31 // pred_check_branch
          %585 = sbr.rel (%p583) target = $region56
        $region55: #{class_bert_forward.1} parent=31 // pred_region
          %s586 = sand.u32 %s24, 1
          %s587 = scalar_lea.sflag [#allocation3], %s586
          %s588 = sand.u32 %s248, 1
          %s589 = scalar_lea.vmem [#allocation11], %s588
          %s591 = ssub.s32 16, 16
          %592 = vsyncadd %s587, %s591
          %s593 = smul.addr %s24, 16
          %s594 = scalar_lea.hbm %s9, %s593
          %s596 = sshll.u32 %s589, 4
          %s597 = int_to_ptr.vmem [resolvable:$true] %s596
          %599 = dma.hbm_to_vmem [thread:$0]  %s594, 16, %s597, %s587
        $region56: #{class_bert_forward.1} parent=31 // pred_fallthru
          _
        // Predicated region
        $region57: #{class_bert_forward.1} parent=31 // pred_check
          %p600 = pneg %p284
        $region58: #{class_bert_forward.1} parent=31 // pred_check_branch
          %602 = sbr.rel (%p600) target = $region60
        $region59: #{class_bert_forward.1} parent=31 // pred_region
          %p603 = scmp.lt.s32.totalorder %s24, 1
          %s604 = scalar_select %p603, %s24, 1
          %s605 = smul.addr %s604, 32
          %s606 = smul.addr %s605, 4
          %s607 = scalar_lea.vmem %s10, %s606
        $region60: #{class_bert_forward.1} parent=31 // pred_fallthru
          _
        // Predicated region
        $region61: #{class_bert_forward.1} parent=31 // pred_check
          %p608 = pneg %p310
        $region62: #{class_bert_forward.1} parent=31 // pred_check_branch
          %610 = sbr.rel (%p608) target = $region64
        $region63: #{class_bert_forward.1} parent=31 // pred_region
          %s611 = sand.u32 %s24, 1
          %s612 = scalar_lea.sflag [#allocation3], %s611
          %s613 = sand.u32 %s300, 1
          %s614 = smul.addr %s613, 2
          %s615 = scalar_lea.vmem [#allocation12], %s614
          %s617 = ssub.s32 32, 32
          %618 = vsyncadd %s612, %s617
          %s619 = smul.addr %s24, 2
          %s620 = smul.addr %s619, 16
          %s621 = scalar_lea.hbm %s11, %s620
          %s623 = sshll.u32 %s615, 4
          %s624 = int_to_ptr.vmem [resolvable:$true] %s623
          %626 = dma.hbm_to_vmem [thread:$0]  %s621, 32, %s624, %s612
        $region64: #{class_bert_forward.1} parent=31 // pred_fallthru
          _
        // Predicated region
        $region65: #{class_bert_forward.1} parent=31 // pred_check
          %p627 = pneg %p336
        $region66: #{class_bert_forward.1} parent=31 // pred_check_branch
          %629 = sbr.rel (%p627) target = $region68
        $region67: #{class_bert_forward.1} parent=31 // pred_region
          %s630 = sand.u32 %s24, 1
          %s631 = scalar_lea.sflag [#allocation3], %s630
          %s632 = sand.u32 %s326, 1
          %s633 = smul.addr %s632, 128
          %s634 = scalar_lea.vmem [#allocation13], %s633
          %s636 = ssub.s32 2048, 2048
          %637 = vsyncadd %s631, %s636
          %s638 = smul.addr %s24, 32
          %s639 = smul.addr %s638, 64
          %s640 = scalar_lea.hbm %s12, %s639
          %s641 = sshll.u32 %s634, 4
          %s642 = int_to_ptr.vmem [resolvable:$true] %s641
          %647 = dma.hbm_to_vmem [thread:$0]  %s640, 2048, %s642, %s631, 64, 64, 4
        $region68: #{class_bert_forward.1} parent=31 // pred_fallthru
          _
        // Predicated region
        $region69: #{class_bert_forward.1} parent=31 // pred_check
          %p648 = pneg %p362
        $region70: #{class_bert_forward.1} parent=31 // pred_check_branch
          %650 = sbr.rel (%p648) target = $region72
        $region71: #{class_bert_forward.1} parent=31 // pred_region
          %s651 = sand.u32 %s24, 1
          %s652 = scalar_lea.sflag [#allocation3], %s651
          %s653 = sand.u32 %s352, 1
          %s654 = scalar_lea.vmem [#allocation14], %s653
          %s656 = ssub.s32 16, 16
          %657 = vsyncadd %s652, %s656
          %s658 = smul.addr %s24, 16
          %s659 = scalar_lea.hbm %s13, %s658
          %s661 = sshll.u32 %s654, 4
          %s662 = int_to_ptr.vmem [resolvable:$true] %s661
          %664 = dma.hbm_to_vmem [thread:$0]  %s659, 16, %s662, %s652
        $region72: #{class_bert_forward.1} parent=31 // pred_fallthru
          _
        // Predicated region
        $region73: #{class_bert_forward.1} parent=31 // pred_check
          %p665 = pneg %p388
        $region74: #{class_bert_forward.1} parent=31 // pred_check_branch
          %667 = sbr.rel (%p665) target = $region76
        $region75: #{class_bert_forward.1} parent=31 // pred_region
          %s668 = sand.u32 %s24, 1
          %s669 = scalar_lea.sflag [#allocation3], %s668
          %s670 = sand.u32 %s378, 1
          %s671 = scalar_lea.vmem [#allocation15], %s670
          %s673 = ssub.s32 16, 16
          %674 = vsyncadd %s669, %s673
          %s675 = smul.addr %s24, 16
          %s676 = scalar_lea.hbm %s14, %s675
          %s678 = sshll.u32 %s671, 4
          %s679 = int_to_ptr.vmem [resolvable:$true] %s678
          %681 = dma.hbm_to_vmem [thread:$0]  %s676, 16, %s679, %s669
        $region76: #{class_bert_forward.1} parent=31 // pred_fallthru
          _
        // Predicated region
        $region77: #{class_bert_forward.1} parent=31 // pred_check
          %p682 = pneg %p414
        $region78: #{class_bert_forward.1} parent=31 // pred_check_branch
          %684 = sbr.rel (%p682) target = $region80
        $region79: #{class_bert_forward.1} parent=31 // pred_region
          %s685 = sand.u32 %s24, 1
          %s686 = scalar_lea.sflag [#allocation3], %s685
          %s687 = sand.u32 %s404, 1
          %s688 = scalar_lea.vmem [#allocation16], %s687
          %s690 = ssub.s32 16, 16
          %691 = vsyncadd %s686, %s690
          %s692 = smul.addr %s24, 16
          %s693 = scalar_lea.hbm %s15, %s692
          %s695 = sshll.u32 %s688, 4
          %s696 = int_to_ptr.vmem [resolvable:$true] %s695
          %698 = dma.hbm_to_vmem [thread:$0]  %s693, 16, %s696, %s686
        $region80: #{class_bert_forward.1} parent=31 // pred_fallthru
          _
      $region32: #{class_bert_forward.1} parent=5 // pred_fallthru
        _
      %p699 = scmp.le.s32.totalorder 1, %s24
      %p700 = scmp.lt.s32.totalorder %s24, 3
      %p701 = pnand %p699, %p700
      %p702 = pneg %p701
      // Predicated region
      $region81: #{class_bert_forward.1} parent=5 // pred_check
        _
      $region82: #{class_bert_forward.1} parent=5 // pred_check_branch
        %704 = sbr.rel (%p701) target = $region84
      $region83: #{class_bert_forward.1} parent=5 // pred_region
        %s705 = ssub.s32 %s24, 1
        // Predicated region
        $region85: #{class_bert_forward.1} parent=83 // pred_check
          %p706 = pneg %p87
        $region86: #{class_bert_forward.1} parent=83 // pred_check_branch
          %708 = sbr.rel (%p706) target = $region88
        $region87: #{class_bert_forward.1} parent=83 // pred_region
          %709 = dma.done [#allocation3], 16
        $region88: #{class_bert_forward.1} parent=83 // pred_fallthru
          _
        // Predicated region
        $region89: #{class_bert_forward.1} parent=83 // pred_check
          %p710 = pneg %p108
        $region90: #{class_bert_forward.1} parent=83 // pred_check_branch
          %712 = sbr.rel (%p710) target = $region92
        $region91: #{class_bert_forward.1} parent=83 // pred_region
          %713 = dma.done [#allocation5], 16
        $region92: #{class_bert_forward.1} parent=83 // pred_fallthru
          _
        %s714 = sand.u32 %s29, 1
        %s715 = scalar_lea.sflag [#allocation3], %s714
        %s716 = sand.u32 %s121, 1
        %s717 = smul.addr %s716, 192
        %s718 = scalar_lea.vmem [#allocation6], %s717
        // Predicated region
        $region93: #{class_bert_forward.1} parent=83 // pred_check
          %p719 = pneg %p134
        $region94: #{class_bert_forward.1} parent=83 // pred_check_branch
          %721 = sbr.rel (%p719) target = $region96
        $region95: #{class_bert_forward.1} parent=83 // pred_region
          %722 = dma.done %s715, 3072
        $region96: #{class_bert_forward.1} parent=83 // pred_fallthru
          _
        %s723 = sand.u32 %s29, 1
        %s724 = scalar_lea.sflag [#allocation3], %s723
        %s725 = sand.u32 %s147, 1
        %s726 = smul.addr %s725, 3
        %s727 = scalar_lea.vmem [#allocation7], %s726
        // Predicated region
        $region97: #{class_bert_forward.1} parent=83 // pred_check
          %p728 = pneg %p160
        $region98: #{class_bert_forward.1} parent=83 // pred_check_branch
          %730 = sbr.rel (%p728) target = $region100
        $region99: #{class_bert_forward.1} parent=83 // pred_region
          %731 = dma.done %s724, 48
        $region100: #{class_bert_forward.1} parent=83 // pred_fallthru
          _
        %s732 = sand.u32 %s29, 1
        %s733 = scalar_lea.sflag [#allocation3], %s732
        %s734 = sand.u32 %s173, 1
        %s735 = smul.addr %s734, 64
        %s736 = scalar_lea.vmem [#allocation8], %s735
        // Predicated region
        $region101: #{class_bert_forward.1} parent=83 // pred_check
          %p737 = pneg %p186
        $region102: #{class_bert_forward.1} parent=83 // pred_check_branch
          %739 = sbr.rel (%p737) target = $region104
        $region103: #{class_bert_forward.1} parent=83 // pred_region
          %740 = dma.done %s733, 1024
        $region104: #{class_bert_forward.1} parent=83 // pred_fallthru
          _
        %s741 = sand.u32 %s29, 1
        %s742 = scalar_lea.sflag [#allocation3], %s741
        %s743 = sand.u32 %s199, 1
        %s744 = scalar_lea.vmem [#allocation9], %s743
        // Predicated region
        $region105: #{class_bert_forward.1} parent=83 // pred_check
          %p745 = pneg %p212
        $region106: #{class_bert_forward.1} parent=83 // pred_check_branch
          %747 = sbr.rel (%p745) target = $region108
        $region107: #{class_bert_forward.1} parent=83 // pred_region
          %748 = dma.done %s742, 16
        $region108: #{class_bert_forward.1} parent=83 // pred_fallthru
          _
        %s749 = sand.u32 %s29, 1
        %s750 = scalar_lea.sflag [#allocation3], %s749
        %s751 = sand.u32 %s225, 1
        %s752 = scalar_lea.vmem [#allocation10], %s751
        // Predicated region
        $region109: #{class_bert_forward.1} parent=83 // pred_check
          %p753 = pneg %p238
        $region110: #{class_bert_forward.1} parent=83 // pred_check_branch
          %755 = sbr.rel (%p753) target = $region112
        $region111: #{class_bert_forward.1} parent=83 // pred_region
          %756 = dma.done %s750, 16
        $region112: #{class_bert_forward.1} parent=83 // pred_fallthru
          _
        %s757 = sand.u32 %s29, 1
        %s758 = scalar_lea.sflag [#allocation3], %s757
        %s759 = sand.u32 %s251, 1
        %s760 = scalar_lea.vmem [#allocation11], %s759
        // Predicated region
        $region113: #{class_bert_forward.1} parent=83 // pred_check
          %p761 = pneg %p264
        $region114: #{class_bert_forward.1} parent=83 // pred_check_branch
          %763 = sbr.rel (%p761) target = $region116
        $region115: #{class_bert_forward.1} parent=83 // pred_region
          %764 = dma.done %s758, 16
        $region116: #{class_bert_forward.1} parent=83 // pred_fallthru
          _
        %s765 = sand.u32 %s29, 1
        %s766 = scalar_lea.sflag [#allocation3], %s765
        %s767 = sand.u32 %s303, 1
        %s768 = smul.addr %s767, 2
        %s769 = scalar_lea.vmem [#allocation12], %s768
        // Predicated region
        $region117: #{class_bert_forward.1} parent=83 // pred_check
          %p770 = pneg %p316
        $region118: #{class_bert_forward.1} parent=83 // pred_check_branch
          %772 = sbr.rel (%p770) target = $region120
        $region119: #{class_bert_forward.1} parent=83 // pred_region
          %773 = dma.done %s766, 32
        $region120: #{class_bert_forward.1} parent=83 // pred_fallthru
          _
        %s774 = sand.u32 %s29, 1
        %s775 = scalar_lea.sflag [#allocation3], %s774
        %s776 = sand.u32 %s329, 1
        %s777 = smul.addr %s776, 128
        %s778 = scalar_lea.vmem [#allocation13], %s777
        // Predicated region
        $region121: #{class_bert_forward.1} parent=83 // pred_check
          %p779 = pneg %p342
        $region122: #{class_bert_forward.1} parent=83 // pred_check_branch
          %781 = sbr.rel (%p779) target = $region124
        $region123: #{class_bert_forward.1} parent=83 // pred_region
          %782 = dma.done %s775, 2048
        $region124: #{class_bert_forward.1} parent=83 // pred_fallthru
          _
        %s783 = sand.u32 %s29, 1
        %s784 = scalar_lea.sflag [#allocation3], %s783
        %s785 = sand.u32 %s355, 1
        %s786 = scalar_lea.vmem [#allocation14], %s785
        // Predicated region
        $region125: #{class_bert_forward.1} parent=83 // pred_check
          %p787 = pneg %p368
        $region126: #{class_bert_forward.1} parent=83 // pred_check_branch
          %789 = sbr.rel (%p787) target = $region128
        $region127: #{class_bert_forward.1} parent=83 // pred_region
          %790 = dma.done %s784, 16
        $region128: #{class_bert_forward.1} parent=83 // pred_fallthru
          _
        %s791 = sand.u32 %s29, 1
        %s792 = scalar_lea.sflag [#allocation3], %s791
        %s793 = sand.u32 %s381, 1
        %s794 = scalar_lea.vmem [#allocation15], %s793
        // Predicated region
        $region129: #{class_bert_forward.1} parent=83 // pred_check
          %p795 = pneg %p394
        $region130: #{class_bert_forward.1} parent=83 // pred_check_branch
          %797 = sbr.rel (%p795) target = $region132
        $region131: #{class_bert_forward.1} parent=83 // pred_region
          %798 = dma.done %s792, 16
        $region132: #{class_bert_forward.1} parent=83 // pred_fallthru
          _
        %s799 = sand.u32 %s29, 1
        %s800 = scalar_lea.sflag [#allocation3], %s799
        %s801 = sand.u32 %s407, 1
        %s802 = scalar_lea.vmem [#allocation16], %s801
        // Predicated region
        $region133: #{class_bert_forward.1} parent=83 // pred_check
          %p803 = pneg %p420
        $region134: #{class_bert_forward.1} parent=83 // pred_check_branch
          %805 = sbr.rel (%p803) target = $region136
        $region135: #{class_bert_forward.1} parent=83 // pred_region
          %806 = dma.done %s800, 16
        $region136: #{class_bert_forward.1} parent=83 // pred_fallthru
          _
        %p807 = pneg %p45
        %p808 = pneg %p42
        %p809 = pneg %p66
        %p810 = pneg %p63
        %p811 = pneg %p87
        %p812 = pneg %p84
        %p813 = pneg %p108
        %p814 = pneg %p105
        %s815 = sand.u32 %s29, 1
        %s816 = scalar_lea.sflag [#allocation3], %s815
        %s817 = sand.u32 %s121, 1
        %s818 = smul.addr %s817, 192
        %s819 = scalar_lea.vmem [#allocation6], %s818
        %p820 = pneg %p134
        %p821 = pneg %p131
        %s822 = sand.u32 %s29, 1
        %s823 = scalar_lea.sflag [#allocation3], %s822
        %s824 = sand.u32 %s147, 1
        %s825 = smul.addr %s824, 3
        %s826 = scalar_lea.vmem [#allocation7], %s825
        %p827 = pneg %p160
        %p828 = pneg %p157
        %s829 = sand.u32 %s29, 1
        %s830 = scalar_lea.sflag [#allocation3], %s829
        %s831 = sand.u32 %s173, 1
        %s832 = smul.addr %s831, 64
        %s833 = scalar_lea.vmem [#allocation8], %s832
        %p834 = pneg %p186
        %p835 = pneg %p183
        %s836 = sand.u32 %s29, 1
        %s837 = scalar_lea.sflag [#allocation3], %s836
        %s838 = sand.u32 %s199, 1
        %s839 = scalar_lea.vmem [#allocation9], %s838
        %p840 = pneg %p212
        %p841 = pneg %p209
        %s842 = sand.u32 %s29, 1
        %s843 = scalar_lea.sflag [#allocation3], %s842
        %s844 = sand.u32 %s225, 1
        %s845 = scalar_lea.vmem [#allocation10], %s844
        %p846 = pneg %p238
        %p847 = pneg %p235
        %s848 = sand.u32 %s29, 1
        %s849 = scalar_lea.sflag [#allocation3], %s848
        %s850 = sand.u32 %s251, 1
        %s851 = scalar_lea.vmem [#allocation11], %s850
        %p852 = pneg %p264
        %p853 = pneg %p261
        %p854 = scmp.lt.s32.totalorder %s29, 1
        %s855 = scalar_select %p854, %s29, 1
        %s856 = smul.addr %s855, 32
        %s857 = smul.addr %s856, 4
        %s858 = scalar_lea.vmem %s10, %s857
        %p859 = pneg %p290
        %p860 = pneg %p287
        %s861 = sand.u32 %s29, 1
        %s862 = scalar_lea.sflag [#allocation3], %s861
        %s863 = sand.u32 %s303, 1
        %s864 = smul.addr %s863, 2
        %s865 = scalar_lea.vmem [#allocation12], %s864
        %p866 = pneg %p316
        %p867 = pneg %p313
        %s868 = sand.u32 %s29, 1
        %s869 = scalar_lea.sflag [#allocation3], %s868
        %s870 = sand.u32 %s329, 1
        %s871 = smul.addr %s870, 128
        %s872 = scalar_lea.vmem [#allocation13], %s871
        %p873 = pneg %p342
        %p874 = pneg %p339
        %s875 = sand.u32 %s29, 1
        %s876 = scalar_lea.sflag [#allocation3], %s875
        %s877 = sand.u32 %s355, 1
        %s878 = scalar_lea.vmem [#allocation14], %s877
        %p879 = pneg %p368
        %p880 = pneg %p365
        %s881 = sand.u32 %s29, 1
        %s882 = scalar_lea.sflag [#allocation3], %s881
        %s883 = sand.u32 %s381, 1
        %s884 = scalar_lea.vmem [#allocation15], %s883
        %p885 = pneg %p394
        %p886 = pneg %p391
        %s887 = sand.u32 %s29, 1
        %s888 = scalar_lea.sflag [#allocation3], %s887
        %s889 = sand.u32 %s407, 1
        %s890 = scalar_lea.vmem [#allocation16], %s889
        %p891 = pneg %p420
        %p892 = pneg %p417
        %p893 = pneg %p441
        %p894 = pneg %p438
        %p895 = scmp.lt.s32.totalorder %s29, 1
        %s896 = scalar_select %p895, %s29, 1
        %s897 = smul.addr %s896, 32
        %s898 = smul.addr %s897, 4
        %s899 = scalar_lea.vmem %s10, %s898
        %p901 = scmp.eq.s32.totalorder %s29, 0
        // Predicated region
        $region137: #{class_bert_forward.1} parent=83 // pred_check
          %p902 = pneg %p901
        $region138: #{class_bert_forward.1} parent=83 // pred_check_branch
          %904 = sbr.rel (%p902) target = $region140
        $region139: #{class_bert_forward.1} parent=83 // pred_region
          %v905 = vld [vmem:[%s0] sm:$0xff]
          %v906 = vld [vmem:[%s0 + $0x8] sm:$0xff]
          %v907 = vld [vmem:[#allocation2] sm:$0x1]
          %v908 = vld [vmem:[#allocation4] sm:$0x1]
          %909 = vadd.xlane.f32.xlu0 %v905
          %v910 = vpop.xlane.xlu0 %909
          %911 = vadd.xlane.f32.xlu0 %v906
          %v912 = vpop.xlane.xlu0 %911
          %v913 = vrcp.pop 128.0
          %v914 = vmul.f32 %v910, %v913
          %v915 = vmul.f32 %v912, %v913
          %v916 = vsub.f32 %v905, %v914
          %v917 = vsub.f32 %v906, %v915
          %v918 = vmul.f32 %v916, %v916
          %v919 = vmul.f32 %v917, %v917
          %920 = vadd.xlane.f32.xlu0 %v918
          %v921 = vpop.xlane.xlu0 %920
          %922 = vadd.xlane.f32.xlu0 %v919
          %v923 = vpop.xlane.xlu0 %922
          %v924 = vmul.f32 %v921, %v913
          %v925 = vmul.f32 %v923, %v913
          %v926 = vadd.f32 %v924, 1e-12
          %v927 = vadd.f32 %v925, 1e-12
          %v928 = vrsqrt.pop %v926
          %v929 = vrsqrt.pop %v927
          %v930 = vmul.f32 %v916, %v928
          %v931 = vmul.f32 %v917, %v929
          %v933 = vlaneseq
          %v934 = vshrl.u32 %v933, 7
          %v935 = vsub.s32 0, %v934
          %v936 = vrot.slane %v907, %v935
          %v938 = vmul.f32 %v930, %v936
          %v939 = vmul.f32 %v931, %v936
          %v941 = vlaneseq
          %v942 = vshrl.u32 %v941, 7
          %v943 = vsub.s32 0, %v942
          %v944 = vrot.slane %v908, %v943
          %v946 = vadd.f32 %v938, %v944
          %v947 = vadd.f32 %v939, %v944
          %948 = vst [vmem:[%s16] sm:$0xff] %v946
          %949 = vst [vmem:[%s16 + $0x8] sm:$0xff] %v947
        $region140: #{class_bert_forward.1} parent=83 // pred_fallthru
          _
        %v950 = vld [vmem:[%s16] sm:$0xff]
        %v951 = vld [vmem:[%s16 + $0x8] sm:$0xff]
        %v952 = vld [vmem:[%s1] sm:$0x3]
        %v953 = vsub.f32 %v952, 1.0
        %v954 = vmul.f32 %v953, 1e+09
        %v957 = vunpack.c.l.s4 1966171168
        %v958 = vunpack.c.0.s8 %v957
        %v959 = vlaneseq
        %v960 = vshrl.u32 %v959, 7
        %v961 = vsub.s32 %v958, %v960
        %v962 = vrot.slane %v954, %v961
        %v963 = vcombine.high %v962, %v962
        %v965 = vunpack.c.l.s4 1966171168
        %v966 = vunpack.c.0.s8 %v965
        %v967 = vlaneseq
        %v968 = vshrl.u32 %v967, 7
        %v969 = vsub.s32 %v966, %v968
        %v970 = vrot.slane %v962, %v969
        %v972 = vunpack.c.l.s4 1966171168
        %v973 = vunpack.c.0.s8 %v972
        %v974 = vlaneseq
        %v975 = vshrl.u32 %v974, 7
        %v976 = vsub.s32 %v973, %v975
        %v977 = vrot.slane %v963, %v976
        %v978 = vpack.c.bf16 %v951, %v950
        %v979 = vld [vmem:[%s718] sm:$0xff]
        %v980 = vld [vmem:[%s718 + $0x8] sm:$0xf]
        %v981 = vld [vmem:[%s718 + $0xc] sm:$0xff]
        %v982 = vld [vmem:[%s718 + $0x14] sm:$0xf]
        %v983 = vld [vmem:[%s718 + $0x18] sm:$0xff]
        %v984 = vld [vmem:[%s718 + $0x20] sm:$0xf]
        %v985 = vld [vmem:[%s718 + $0x24] sm:$0xff]
        %v986 = vld [vmem:[%s718 + $0x2c] sm:$0xf]
        %v987 = vld [vmem:[%s718 + $0x30] sm:$0xff]
        %v988 = vld [vmem:[%s718 + $0x38] sm:$0xf]
        %v989 = vld [vmem:[%s718 + $0x3c] sm:$0xff]
        %v990 = vld [vmem:[%s718 + $0x44] sm:$0xf]
        %v991 = vld [vmem:[%s718 + $0x48] sm:$0xff]
        %v992 = vld [vmem:[%s718 + $0x50] sm:$0xf]
        %v993 = vld [vmem:[%s718 + $0x54] sm:$0xff]
        %v994 = vld [vmem:[%s718 + $0x5c] sm:$0xf]
        %v995 = vld [vmem:[%s718 + $0x60] sm:$0xff]
        %v996 = vld [vmem:[%s718 + $0x68] sm:$0xf]
        %v997 = vld [vmem:[%s718 + $0x6c] sm:$0xff]
        %v998 = vld [vmem:[%s718 + $0x74] sm:$0xf]
        %v999 = vld [vmem:[%s718 + $0x78] sm:$0xff]
        %v1000 = vld [vmem:[%s718 + $0x80] sm:$0xf]
        %v1001 = vld [vmem:[%s718 + $0x84] sm:$0xff]
        %v1002 = vld [vmem:[%s718 + $0x8c] sm:$0xf]
        %v1003 = vld [vmem:[%s718 + $0x90] sm:$0xff]
        %v1004 = vld [vmem:[%s718 + $0x98] sm:$0xf]
        %v1005 = vld [vmem:[%s718 + $0x9c] sm:$0xff]
        %v1006 = vld [vmem:[%s718 + $0xa4] sm:$0xf]
        %v1007 = vld [vmem:[%s718 + $0xa8] sm:$0xff]
        %v1008 = vld [vmem:[%s718 + $0xb0] sm:$0xf]
        %v1009 = vld [vmem:[%s718 + $0xb4] sm:$0xff]
        %v1010 = vld [vmem:[%s718 + $0xbc] sm:$0xf]
        %v1011 = vld [vmem:[%s727] sm:$0x7]
        %v1013 = vlaneseq
        %v1014 = vshrl.u32 %v1013, 7
        %v1015 = vsub.s32 0, %v1014
        %v1016 = vrot.slane %v1011, %v1015
        %v1017 = vlaneseq
        %v1018 = vshrl.u32 %v1017, 7
        %v1019 = vsub.s32 1, %v1018
        %v1020 = vrot.slane %v1011, %v1019
        %v1021 = vlaneseq
        %v1022 = vshrl.u32 %v1021, 7
        %v1023 = vsub.s32 2, %v1022
        %v1024 = vrot.slane %v1011, %v1023
        %v1060 = vunpack.c.l.b16 %v979
        %v1061 = vunpack.c.h.b16 %v979
        %v1062 = vunpack.c.l.b16 %v980
        %v1063 = vunpack.c.l.b16 %v981
        %v1064 = vunpack.c.h.b16 %v981
        %v1065 = vunpack.c.l.b16 %v982
        %v1066 = vunpack.c.l.b16 %v983
        %v1067 = vunpack.c.h.b16 %v983
        %v1068 = vunpack.c.l.b16 %v984
        %v1069 = vunpack.c.l.b16 %v985
        %v1070 = vunpack.c.h.b16 %v985
        %v1071 = vunpack.c.l.b16 %v986
        %v1072 = vunpack.c.l.b16 %v987
        %v1073 = vunpack.c.h.b16 %v987
        %v1074 = vunpack.c.l.b16 %v988
        %v1075 = vunpack.c.l.b16 %v989
        %v1076 = vunpack.c.h.b16 %v989
        %v1077 = vunpack.c.l.b16 %v990
        %v1078 = vunpack.c.l.b16 %v991
        %v1079 = vunpack.c.h.b16 %v991
        %v1080 = vunpack.c.l.b16 %v992
        %v1081 = vunpack.c.l.b16 %v993
        %v1082 = vunpack.c.h.b16 %v993
        %v1083 = vunpack.c.l.b16 %v994
        %v1084 = vunpack.c.l.b16 %v995
        %v1085 = vunpack.c.h.b16 %v995
        %v1086 = vunpack.c.l.b16 %v996
        %v1087 = vunpack.c.l.b16 %v997
        %v1088 = vunpack.c.h.b16 %v997
        %v1089 = vunpack.c.l.b16 %v998
        %v1090 = vunpack.c.l.b16 %v999
        %v1091 = vunpack.c.h.b16 %v999
        %v1092 = vunpack.c.l.b16 %v1000
        %v1093 = vunpack.c.l.b16 %v1001
        %v1094 = vunpack.c.h.b16 %v1001
        %v1095 = vunpack.c.l.b16 %v1002
        %v1096 = vunpack.c.l.b16 %v1003
        %v1097 = vunpack.c.h.b16 %v1003
        %v1098 = vunpack.c.l.b16 %v1004
        %v1099 = vunpack.c.l.b16 %v1005
        %v1100 = vunpack.c.h.b16 %v1005
        %v1101 = vunpack.c.l.b16 %v1006
        %v1102 = vunpack.c.l.b16 %v1007
        %v1103 = vunpack.c.h.b16 %v1007
        %v1104 = vunpack.c.l.b16 %v1008
        %v1105 = vunpack.c.l.b16 %v1009
        %v1106 = vunpack.c.h.b16 %v1009
        %v1107 = vunpack.c.l.b16 %v1010
        %v1108 = vpack.c.b16 %v1063, %v1060
        %v1109 = vpack.c.b16 %v1064, %v1061
        %v1110 = vpack.c.b16 %v1065, %v1062
        %v1111 = vpack.c.b16 %v1069, %v1066
        %v1112 = vpack.c.b16 %v1070, %v1067
        %v1113 = vpack.c.b16 %v1071, %v1068
        %v1114 = vpack.c.b16 %v1075, %v1072
        %v1115 = vpack.c.b16 %v1076, %v1073
        %v1116 = vpack.c.b16 %v1077, %v1074
        %v1117 = vpack.c.b16 %v1081, %v1078
        %v1118 = vpack.c.b16 %v1082, %v1079
        %v1119 = vpack.c.b16 %v1083, %v1080
        %v1120 = vpack.c.b16 %v1087, %v1084
        %v1121 = vpack.c.b16 %v1088, %v1085
        %v1122 = vpack.c.b16 %v1089, %v1086
        %v1123 = vpack.c.b16 %v1093, %v1090
        %v1124 = vpack.c.b16 %v1094, %v1091
        %v1125 = vpack.c.b16 %v1095, %v1092
        %v1126 = vpack.c.b16 %v1099, %v1096
        %v1127 = vpack.c.b16 %v1100, %v1097
        %v1128 = vpack.c.b16 %v1101, %v1098
        %v1129 = vpack.c.b16 %v1105, %v1102
        %v1130 = vpack.c.b16 %v1106, %v1103
        %v1131 = vpack.c.b16 %v1107, %v1104
        %1156 = vmatprep.subr.bf16.mxu0 %v1109
        %1157 = vmatpush1.bf16.msra.mxu0 %v1108
        %1158 = vmatprep.subr.bf16.mxu0 %v1112
        %1159 = vmatpush1.bf16.msra.mxu0 %v1111
        %1160 = vmatprep.subr.bf16.mxu0 %v1115
        %1161 = vmatpush1.bf16.msra.mxu0 %v1114
        %1162 = vmatprep.subr.bf16.mxu0 %v1118
        %1163 = vmatpush1.bf16.msra.mxu0 %v1117
        %1164 = vmatprep.subr.bf16.mxu0 %v1121
        %1165 = vmatpush1.bf16.msra.mxu0 %v1120
        %1166 = vmatprep.subr.bf16.mxu0 %v1124
        %1167 = vmatpush1.bf16.msra.mxu0 %v1123
        %1168 = vmatprep.subr.bf16.mxu0 %v1127
        %1169 = vmatpush1.bf16.msra.mxu0 %v1126
        %1170 = vmatprep.subr.bf16.mxu0 %v1130
        %1171 = vmatpush1.bf16.msra.mxu0 %v1129
        %1172 = vmatprep.subr.bf16.mxu0 0
        %1173 = vmatpush1.bf16.msra.mxu0 0
        %1174 = vmatprep.subr.bf16.mxu0 0
        %1175 = vmatpush1.bf16.msra.mxu0 0
        %1176 = vmatprep.subr.bf16.mxu0 0
        %1177 = vmatpush1.bf16.msra.mxu0 0
        %1178 = vmatprep.subr.bf16.mxu0 0
        %1179 = vmatpush1.bf16.msra.mxu0 0
        %1180 = vmatprep.subr.bf16.mxu0 0
        %1181 = vmatpush1.bf16.msra.mxu0 0
        %1182 = vmatprep.subr.bf16.mxu0 0
        %1183 = vmatpush1.bf16.msra.mxu0 0
        %1184 = vmatprep.subr.bf16.mxu0 0
        %1185 = vmatpush1.bf16.msra.mxu0 0
        %1186 = vmatprep.subr.bf16.mxu0 0
        %1187 = vmatpush1.bf16.msra.mxu0 0
        %1188 = vmatprep.mubr.bf16.mxu0 0
        %1189 = vmatmul.mubr.bf16.gmra.mrb[0].mxu0 %v978
        %v1190 = vpop.f32.mrb[0].mxu0
        %v1191 = vadd.f32 %v1016, %v1190
        %v1192 = vpop.f32.mrb[0].mxu0
        %v1193 = vadd.f32 %v1020, %v1192
        %v1194 = vpop.f32.mrb[0].mxu0
        %v1195 = vadd.f32 %v1016, %v1194
        %v1196 = vpop.f32.mrb[0].mxu0
        %v1197 = vadd.f32 %v1020, %v1196
        %1198 = vdwg.mxu0
        %1199 = vmatprep.subr.bf16.mxu0 0
        %1200 = vmatpush1.bf16.msra.mxu0 %v1110
        %1201 = vmatprep.subr.bf16.mxu0 0
        %1202 = vmatpush1.bf16.msra.mxu0 %v1113
        %1203 = vmatprep.subr.bf16.mxu0 0
        %1204 = vmatpush1.bf16.msra.mxu0 %v1116
        %1205 = vmatprep.subr.bf16.mxu0 0
        %1206 = vmatpush1.bf16.msra.mxu0 %v1119
        %1207 = vmatprep.subr.bf16.mxu0 0
        %1208 = vmatpush1.bf16.msra.mxu0 %v1122
        %1209 = vmatprep.subr.bf16.mxu0 0
        %1210 = vmatpush1.bf16.msra.mxu0 %v1125
        %1211 = vmatprep.subr.bf16.mxu0 0
        %1212 = vmatpush1.bf16.msra.mxu0 %v1128
        %1213 = vmatprep.subr.bf16.mxu0 0
        %1214 = vmatpush1.bf16.msra.mxu0 %v1131
        %1215 = vmatprep.subr.bf16.mxu0 0
        %1216 = vmatpush1.bf16.msra.mxu0 0
        %1217 = vmatprep.subr.bf16.mxu0 0
        %1218 = vmatpush1.bf16.msra.mxu0 0
        %1219 = vmatprep.subr.bf16.mxu0 0
        %1220 = vmatpush1.bf16.msra.mxu0 0
        %1221 = vmatprep.subr.bf16.mxu0 0
        %1222 = vmatpush1.bf16.msra.mxu0 0
        %1223 = vmatprep.subr.bf16.mxu0 0
        %1224 = vmatpush1.bf16.msra.mxu0 0
        %1225 = vmatprep.subr.bf16.mxu0 0
        %1226 = vmatpush1.bf16.msra.mxu0 0
        %1227 = vmatprep.subr.bf16.mxu0 0
        %1228 = vmatpush1.bf16.msra.mxu0 0
        %1229 = vmatprep.subr.bf16.mxu0 0
        %1230 = vmatpush1.bf16.msra.mxu0 0
        %1231 = vmatprep.mubr.bf16.mxu0 0
        %1232 = vmatmul.mubr.bf16.gmra.mrb[0].mxu0 %v978
        %v1233 = vpop.f32.mrb[0].mxu0
        %v1234 = vadd.f32 %v1024, %v1233
        %v1235 = vpop.f32.mrb[0].mxu0
        %v1236 = vpop.f32.mrb[0].mxu0
        %v1237 = vadd.f32 %v1024, %v1236
        %v1238 = vpop.f32.mrb[0].mxu0
        %1239 = vdwg.mxu0
        %v1240 = vpack.c.bf16 %v1195, %v1191
        %v1241 = vpack.c.bf16 %v1197, %v1193
        %v1242 = vpack.c.bf16 %v1237, %v1234
        %v1244 = vunpack.c.l.b16 %v1240
        %v1245 = vunpack.c.h.b16 %v1240
        %v1246 = vpack.c.b16 %v1244, %v1244
        %v1247 = vpack.c.b16 %v1245, %v1245
        %v1249 = vunpack.c.l.b16 %v1241
        %v1250 = vunpack.c.h.b16 %v1241
        %v1251 = vpack.c.b16 %v1249, %v1249
        %v1252 = vpack.c.b16 %v1250, %v1250
        %v1254 = vunpack.c.l.b16 %v1242
        %v1255 = vunpack.c.h.b16 %v1242
        %v1256 = vpack.c.b16 %v1254, %v1254
        %v1257 = vpack.c.b16 %v1255, %v1255
        %vm1258 = vcmask 261120
        %v1260 = vsel %vm1258, %v1246, 0
        %v1263 = vsel %vm1258, %v1251, 0
        %1265 = vmatprep.subr.bf16.mxu0 0
        %1266 = vmatpush1.bf16.xpose.msra.mxu0 %v1263
        %1267 = vmatprep.subr.bf16.mxu0 0
        %1268 = vmatpush1.bf16.xpose.msra.mxu0 0
        %1269 = vmatprep.subr.bf16.mxu0 0
        %1270 = vmatpush1.bf16.xpose.msra.mxu0 0
        %1271 = vmatprep.subr.bf16.mxu0 0
        %1272 = vmatpush1.bf16.xpose.msra.mxu0 0
        %1273 = vmatprep.subr.bf16.mxu0 0
        %1274 = vmatpush1.bf16.xpose.msra.mxu0 0
        %1275 = vmatprep.subr.bf16.mxu0 0
        %1276 = vmatpush1.bf16.xpose.msra.mxu0 0
        %1277 = vmatprep.subr.bf16.mxu0 0
        %1278 = vmatpush1.bf16.xpose.msra.mxu0 0
        %1279 = vmatprep.subr.bf16.mxu0 0
        %1280 = vmatpush1.bf16.xpose.msra.mxu0 0
        %1281 = vmatprep.subr.bf16.mxu0 0
        %1282 = vmatpush1.bf16.xpose.msra.mxu0 0
        %1283 = vmatprep.subr.bf16.mxu0 0
        %1284 = vmatpush1.bf16.xpose.msra.mxu0 0
        %1285 = vmatprep.subr.bf16.mxu0 0
        %1286 = vmatpush1.bf16.xpose.msra.mxu0 0
        %1287 = vmatprep.subr.bf16.mxu0 0
        %1288 = vmatpush1.bf16.xpose.msra.mxu0 0
        %1289 = vmatprep.subr.bf16.mxu0 0
        %1290 = vmatpush1.bf16.xpose.msra.mxu0 0
        %1291 = vmatprep.subr.bf16.mxu0 0
        %1292 = vmatpush1.bf16.xpose.msra.mxu0 0
        %1293 = vmatprep.subr.bf16.mxu0 0
        %1294 = vmatpush1.bf16.xpose.msra.mxu0 0
        %1295 = vmatprep.subr.bf16.mxu0 0
        %1296 = vmatpush1.bf16.xpose.msra.mxu0 0
        %1297 = vmatprep.mubr.bf16.mxu0 0
        %1298 = vmatmul.mubr.bf16.gmra.mrb[0].mxu0 %v1260
        %v1299 = vpop.f32.mrb[0].mxu0
        %v1300 = vadd.f32 0.0, %v1299
        %v1301 = vpop.f32.mrb[0].mxu0
        %v1302 = vpop.f32.mrb[0].mxu0
        %v1303 = vpop.f32.mrb[0].mxu0
        %1304 = vdwg.mxu0
        %v1306 = vsel %vm1258, %v1247, 0
        %v1309 = vsel %vm1258, %v1252, 0
        %1311 = vmatprep.subr.bf16.mxu0 0
        %1312 = vmatpush1.bf16.xpose.msra.mxu0 %v1309
        %1313 = vmatprep.subr.bf16.mxu0 0
        %1314 = vmatpush1.bf16.xpose.msra.mxu0 0
        %1315 = vmatprep.subr.bf16.mxu0 0
        %1316 = vmatpush1.bf16.xpose.msra.mxu0 0
        %1317 = vmatprep.subr.bf16.mxu0 0
        %1318 = vmatpush1.bf16.xpose.msra.mxu0 0
        %1319 = vmatprep.subr.bf16.mxu0 0
        %1320 = vmatpush1.bf16.xpose.msra.mxu0 0
        %1321 = vmatprep.subr.bf16.mxu0 0
        %1322 = vmatpush1.bf16.xpose.msra.mxu0 0
        %1323 = vmatprep.subr.bf16.mxu0 0
        %1324 = vmatpush1.bf16.xpose.msra.mxu0 0
        %1325 = vmatprep.subr.bf16.mxu0 0
        %1326 = vmatpush1.bf16.xpose.msra.mxu0 0
        %1327 = vmatprep.subr.bf16.mxu0 0
        %1328 = vmatpush1.bf16.xpose.msra.mxu0 0
        %1329 = vmatprep.subr.bf16.mxu0 0
        %1330 = vmatpush1.bf16.xpose.msra.mxu0 0
        %1331 = vmatprep.subr.bf16.mxu0 0
        %1332 = vmatpush1.bf16.xpose.msra.mxu0 0
        %1333 = vmatprep.subr.bf16.mxu0 0
        %1334 = vmatpush1.bf16.xpose.msra.mxu0 0
        %1335 = vmatprep.subr.bf16.mxu0 0
        %1336 = vmatpush1.bf16.xpose.msra.mxu0 0
        %1337 = vmatprep.subr.bf16.mxu0 0
        %1338 = vmatpush1.bf16.xpose.msra.mxu0 0
        %1339 = vmatprep.subr.bf16.mxu0 0
        %1340 = vmatpush1.bf16.xpose.msra.mxu0 0
        %1341 = vmatprep.subr.bf16.mxu0 0
        %1342 = vmatpush1.bf16.xpose.msra.mxu0 0
        %1343 = vmatprep.mubr.bf16.mxu0 0
        %1344 = vmatmul.mubr.bf16.gmra.mrb[0].mxu0 %v1306
        %v1345 = vpop.f32.mrb[0].mxu0
        %v1346 = vadd.f32 0.0, %v1345
        %v1347 = vpop.f32.mrb[0].mxu0
        %v1348 = vpop.f32.mrb[0].mxu0
        %v1349 = vpop.f32.mrb[0].mxu0
        %1350 = vdwg.mxu0
        %v1351 = vmul.f32 %v1300, 0.17677669
        %v1352 = vmul.f32 %v1346, 0.17677669
        %v1353 = vlaneseq
        %v1354 = vshrl.u32 %v1353, 7
        %v1355 = vsub.s32 0, %v1354
        %v1356 = vrot.slane %v970, %v1355
        %v1357 = vlaneseq
        %v1358 = vshrl.u32 %v1357, 7
        %v1359 = vsub.s32 0, %v1358
        %v1360 = vrot.slane %v977, %v1359
        %v1363 = vadd.f32 %v1351, %v1356
        %v1364 = vadd.f32 %v1352, %v1360
        %vm1365 = vcmask 64512
        %v1366 = vsel %vm1365, %v1363, -inf
        %1367 = vmax.xlane.f32.xlu0 %v1366
        %v1368 = vpop.xlane.xlu0 %1367
        %v1369 = vsel %vm1365, %v1364, -inf
        %1370 = vmax.xlane.f32.xlu0 %v1369
        %v1371 = vpop.xlane.xlu0 %1370
        %v1372 = vsub.f32 %v1363, %v1368
        %v1373 = vsub.f32 %v1364, %v1371
        %v1374 = vmul.f32 %v1372, 1.442695
        %v1375 = vpow.pop %v1374
        %v1376 = vmul.f32 %v1373, 1.442695
        %v1377 = vpow.pop %v1376
        %v1378 = vsel %vm1365, %v1375, 0.0
        %1379 = vadd.xlane.f32.xlu0 %v1378
        %v1380 = vpop.xlane.xlu0 %1379
        %v1381 = vsel %vm1365, %v1377, 0.0
        %1382 = vadd.xlane.f32.xlu0 %v1381
        %v1383 = vpop.xlane.xlu0 %1382
        %v1384 = vrcp.pop %v1380
        %v1385 = vrcp.pop %v1383
        %v1386 = vmul.f32 %v1375, %v1384
        %v1387 = vmul.f32 %v1377, %v1385
        %v1388 = vpack.c.bf16 %v1386, %v1386
        %v1389 = vpack.c.bf16 %v1387, %v1387
        %v1391 = vsel %vm1365, %v1388, 0
        %vm1393 = vcmask 1043456
        %v1395 = vsel %vm1393, %v1256, 0
        %1397 = vmatprep.subr.bf16.mxu0 0
        %1398 = vmatpush1.bf16.msra.mxu0 %v1395
        %1399 = vmatprep.subr.bf16.mxu0 0
        %1400 = vmatpush1.bf16.msra.mxu0 0
        %1401 = vmatprep.subr.bf16.mxu0 0
        %1402 = vmatpush1.bf16.msra.mxu0 0
        %1403 = vmatprep.subr.bf16.mxu0 0
        %1404 = vmatpush1.bf16.msra.mxu0 0
        %1405 = vmatprep.subr.bf16.mxu0 0
        %1406 = vmatpush1.bf16.msra.mxu0 0
        %1407 = vmatprep.subr.bf16.mxu0 0
        %1408 = vmatpush1.bf16.msra.mxu0 0
        %1409 = vmatprep.subr.bf16.mxu0 0
        %1410 = vmatpush1.bf16.msra.mxu0 0
        %1411 = vmatprep.subr.bf16.mxu0 0
        %1412 = vmatpush1.bf16.msra.mxu0 0
        %1413 = vmatprep.subr.bf16.mxu0 0
        %1414 = vmatpush1.bf16.msra.mxu0 0
        %1415 = vmatprep.subr.bf16.mxu0 0
        %1416 = vmatpush1.bf16.msra.mxu0 0
        %1417 = vmatprep.subr.bf16.mxu0 0
        %1418 = vmatpush1.bf16.msra.mxu0 0
        %1419 = vmatprep.subr.bf16.mxu0 0
        %1420 = vmatpush1.bf16.msra.mxu0 0
        %1421 = vmatprep.subr.bf16.mxu0 0
        %1422 = vmatpush1.bf16.msra.mxu0 0
        %1423 = vmatprep.subr.bf16.mxu0 0
        %1424 = vmatpush1.bf16.msra.mxu0 0
        %1425 = vmatprep.subr.bf16.mxu0 0
        %1426 = vmatpush1.bf16.msra.mxu0 0
        %1427 = vmatprep.subr.bf16.mxu0 0
        %1428 = vmatpush1.bf16.msra.mxu0 0
        %1429 = vmatprep.mubr.bf16.mxu0 0
        %1430 = vmatmul.mubr.bf16.gmra.mrb[0].mxu0 %v1391
        %v1431 = vpop.f32.mrb[0].mxu0
        %v1432 = vadd.f32 0.0, %v1431
        %v1433 = vpop.f32.mrb[0].mxu0
        %v1434 = vpop.f32.mrb[0].mxu0
        %v1435 = vpop.f32.mrb[0].mxu0
        %1436 = vdwg.mxu0
        %v1438 = vsel %vm1365, %v1389, 0
        %v1441 = vsel %vm1393, %v1257, 0
        %1443 = vmatprep.subr.bf16.mxu0 0
        %1444 = vmatpush1.bf16.msra.mxu0 %v1441
        %1445 = vmatprep.subr.bf16.mxu0 0
        %1446 = vmatpush1.bf16.msra.mxu0 0
        %1447 = vmatprep.subr.bf16.mxu0 0
        %1448 = vmatpush1.bf16.msra.mxu0 0
        %1449 = vmatprep.subr.bf16.mxu0 0
        %1450 = vmatpush1.bf16.msra.mxu0 0
        %1451 = vmatprep.subr.bf16.mxu0 0
        %1452 = vmatpush1.bf16.msra.mxu0 0
        %1453 = vmatprep.subr.bf16.mxu0 0
        %1454 = vmatpush1.bf16.msra.mxu0 0
        %1455 = vmatprep.subr.bf16.mxu0 0
        %1456 = vmatpush1.bf16.msra.mxu0 0
        %1457 = vmatprep.subr.bf16.mxu0 0
        %1458 = vmatpush1.bf16.msra.mxu0 0
        %1459 = vmatprep.subr.bf16.mxu0 0
        %1460 = vmatpush1.bf16.msra.mxu0 0
        %1461 = vmatprep.subr.bf16.mxu0 0
        %1462 = vmatpush1.bf16.msra.mxu0 0
        %1463 = vmatprep.subr.bf16.mxu0 0
        %1464 = vmatpush1.bf16.msra.mxu0 0
        %1465 = vmatprep.subr.bf16.mxu0 0
        %1466 = vmatpush1.bf16.msra.mxu0 0
        %1467 = vmatprep.subr.bf16.mxu0 0
        %1468 = vmatpush1.bf16.msra.mxu0 0
        %1469 = vmatprep.subr.bf16.mxu0 0
        %1470 = vmatpush1.bf16.msra.mxu0 0
        %1471 = vmatprep.subr.bf16.mxu0 0
        %1472 = vmatpush1.bf16.msra.mxu0 0
        %1473 = vmatprep.subr.bf16.mxu0 0
        %1474 = vmatpush1.bf16.msra.mxu0 0
        %1475 = vmatprep.mubr.bf16.mxu0 0
        %1476 = vmatmul.mubr.bf16.gmra.mrb[0].mxu0 %v1438
        %v1477 = vpop.f32.mrb[0].mxu0
        %v1478 = vadd.f32 0.0, %v1477
        %v1479 = vpop.f32.mrb[0].mxu0
        %v1480 = vpop.f32.mrb[0].mxu0
        %v1481 = vpop.f32.mrb[0].mxu0
        %1482 = vdwg.mxu0
        %1483 = vrot.lane.b32.xlu0 %v1246, 96
        %v1484 = vpop.permute.xlu0 %1483
        %1485 = vrot.lane.b32.xlu0 %v1251, 96
        %v1486 = vpop.permute.xlu0 %1485
        %v1488 = vsel %vm1258, %v1484, 0
        %v1491 = vsel %vm1258, %v1486, 0
        %1493 = vmatprep.subr.bf16.mxu0 0
        %1494 = vmatpush1.bf16.xpose.msra.mxu0 %v1491
        %1495 = vmatprep.subr.bf16.mxu0 0
        %1496 = vmatpush1.bf16.xpose.msra.mxu0 0
        %1497 = vmatprep.subr.bf16.mxu0 0
        %1498 = vmatpush1.bf16.xpose.msra.mxu0 0
        %1499 = vmatprep.subr.bf16.mxu0 0
        %1500 = vmatpush1.bf16.xpose.msra.mxu0 0
        %1501 = vmatprep.subr.bf16.mxu0 0
        %1502 = vmatpush1.bf16.xpose.msra.mxu0 0
        %1503 = vmatprep.subr.bf16.mxu0 0
        %1504 = vmatpush1.bf16.xpose.msra.mxu0 0
        %1505 = vmatprep.subr.bf16.mxu0 0
        %1506 = vmatpush1.bf16.xpose.msra.mxu0 0
        %1507 = vmatprep.subr.bf16.mxu0 0
        %1508 = vmatpush1.bf16.xpose.msra.mxu0 0
        %1509 = vmatprep.subr.bf16.mxu0 0
        %1510 = vmatpush1.bf16.xpose.msra.mxu0 0
        %1511 = vmatprep.subr.bf16.mxu0 0
        %1512 = vmatpush1.bf16.xpose.msra.mxu0 0
        %1513 = vmatprep.subr.bf16.mxu0 0
        %1514 = vmatpush1.bf16.xpose.msra.mxu0 0
        %1515 = vmatprep.subr.bf16.mxu0 0
        %1516 = vmatpush1.bf16.xpose.msra.mxu0 0
        %1517 = vmatprep.subr.bf16.mxu0 0
        %1518 = vmatpush1.bf16.xpose.msra.mxu0 0
        %1519 = vmatprep.subr.bf16.mxu0 0
        %1520 = vmatpush1.bf16.xpose.msra.mxu0 0
        %1521 = vmatprep.subr.bf16.mxu0 0
        %1522 = vmatpush1.bf16.xpose.msra.mxu0 0
        %1523 = vmatprep.subr.bf16.mxu0 0
        %1524 = vmatpush1.bf16.xpose.msra.mxu0 0
        %1525 = vmatprep.mubr.bf16.mxu0 0
        %1526 = vmatmul.mubr.bf16.gmra.mrb[0].mxu0 %v1488
        %v1527 = vpop.f32.mrb[0].mxu0
        %v1528 = vadd.f32 0.0, %v1527
        %v1529 = vpop.f32.mrb[0].mxu0
        %v1530 = vpop.f32.mrb[0].mxu0
        %v1531 = vpop.f32.mrb[0].mxu0
        %1532 = vdwg.mxu0
        %1533 = vrot.lane.b32.xlu0 %v1247, 96
        %v1534 = vpop.permute.xlu0 %1533
        %1535 = vrot.lane.b32.xlu0 %v1252, 96
        %v1536 = vpop.permute.xlu0 %1535
        %v1538 = vsel %vm1258, %v1534, 0
        %v1541 = vsel %vm1258, %v1536, 0
        %1543 = vmatprep.subr.bf16.mxu0 0
        %1544 = vmatpush1.bf16.xpose.msra.mxu0 %v1541
        %1545 = vmatprep.subr.bf16.mxu0 0
        %1546 = vmatpush1.bf16.xpose.msra.mxu0 0
        %1547 = vmatprep.subr.bf16.mxu0 0
        %1548 = vmatpush1.bf16.xpose.msra.mxu0 0
        %1549 = vmatprep.subr.bf16.mxu0 0
        %1550 = vmatpush1.bf16.xpose.msra.mxu0 0
        %1551 = vmatprep.subr.bf16.mxu0 0
        %1552 = vmatpush1.bf16.xpose.msra.mxu0 0
        %1553 = vmatprep.subr.bf16.mxu0 0
        %1554 = vmatpush1.bf16.xpose.msra.mxu0 0
        %1555 = vmatprep.subr.bf16.mxu0 0
        %1556 = vmatpush1.bf16.xpose.msra.mxu0 0
        %1557 = vmatprep.subr.bf16.mxu0 0
        %1558 = vmatpush1.bf16.xpose.msra.mxu0 0
        %1559 = vmatprep.subr.bf16.mxu0 0
        %1560 = vmatpush1.bf16.xpose.msra.mxu0 0
        %1561 = vmatprep.subr.bf16.mxu0 0
        %1562 = vmatpush1.bf16.xpose.msra.mxu0 0
        %1563 = vmatprep.subr.bf16.mxu0 0
        %1564 = vmatpush1.bf16.xpose.msra.mxu0 0
        %1565 = vmatprep.subr.bf16.mxu0 0
        %1566 = vmatpush1.bf16.xpose.msra.mxu0 0
        %1567 = vmatprep.subr.bf16.mxu0 0
        %1568 = vmatpush1.bf16.xpose.msra.mxu0 0
        %1569 = vmatprep.subr.bf16.mxu0 0
        %1570 = vmatpush1.bf16.xpose.msra.mxu0 0
        %1571 = vmatprep.subr.bf16.mxu0 0
        %1572 = vmatpush1.bf16.xpose.msra.mxu0 0
        %1573 = vmatprep.subr.bf16.mxu0 0
        %1574 = vmatpush1.bf16.xpose.msra.mxu0 0
        %1575 = vmatprep.mubr.bf16.mxu0 0
        %1576 = vmatmul.mubr.bf16.gmra.mrb[0].mxu0 %v1538
        %v1577 = vpop.f32.mrb[0].mxu0
        %v1578 = vadd.f32 0.0, %v1577
        %v1579 = vpop.f32.mrb[0].mxu0
        %v1580 = vpop.f32.mrb[0].mxu0
        %v1581 = vpop.f32.mrb[0].mxu0
        %1582 = vdwg.mxu0
        %v1583 = vmul.f32 %v1528, 0.17677669
        %v1584 = vmul.f32 %v1578, 0.17677669
        %v1585 = vadd.f32 %v1583, %v1356
        %v1586 = vadd.f32 %v1584, %v1360
        %v1587 = vsel %vm1365, %v1585, -inf
        %1588 = vmax.xlane.f32.xlu0 %v1587
        %v1589 = vpop.xlane.xlu0 %1588
        %v1590 = vsel %vm1365, %v1586, -inf
        %1591 = vmax.xlane.f32.xlu0 %v1590
        %v1592 = vpop.xlane.xlu0 %1591
        %v1593 = vsub.f32 %v1585, %v1589
        %v1594 = vsub.f32 %v1586, %v1592
        %v1595 = vmul.f32 %v1593, 1.442695
        %v1596 = vpow.pop %v1595
        %v1597 = vmul.f32 %v1594, 1.442695
        %v1598 = vpow.pop %v1597
        %v1599 = vsel %vm1365, %v1596, 0.0
        %1600 = vadd.xlane.f32.xlu0 %v1599
        %v1601 = vpop.xlane.xlu0 %1600
        %v1602 = vsel %vm1365, %v1598, 0.0
        %1603 = vadd.xlane.f32.xlu0 %v1602
        %v1604 = vpop.xlane.xlu0 %1603
        %v1605 = vrcp.pop %v1601
        %v1606 = vrcp.pop %v1604
        %v1607 = vmul.f32 %v1596, %v1605
        %v1608 = vmul.f32 %v1598, %v1606
        %v1609 = vpack.c.bf16 %v1607, %v1607
        %v1610 = vpack.c.bf16 %v1608, %v1608
        %1611 = vrot.lane.b32.xlu0 %v1256, 96
        %v1612 = vpop.permute.xlu0 %1611
        %v1614 = vsel %vm1365, %v1609, 0
        %v1617 = vsel %vm1393, %v1612, 0
        %1619 = vmatprep.subr.bf16.mxu0 0
        %1620 = vmatpush1.bf16.msra.mxu0 %v1617
        %1621 = vmatprep.subr.bf16.mxu0 0
        %1622 = vmatpush1.bf16.msra.mxu0 0
        %1623 = vmatprep.subr.bf16.mxu0 0
        %1624 = vmatpush1.bf16.msra.mxu0 0
        %1625 = vmatprep.subr.bf16.mxu0 0
        %1626 = vmatpush1.bf16.msra.mxu0 0
        %1627 = vmatprep.subr.bf16.mxu0 0
        %1628 = vmatpush1.bf16.msra.mxu0 0
        %1629 = vmatprep.subr.bf16.mxu0 0
        %1630 = vmatpush1.bf16.msra.mxu0 0
        %1631 = vmatprep.subr.bf16.mxu0 0
        %1632 = vmatpush1.bf16.msra.mxu0 0
        %1633 = vmatprep.subr.bf16.mxu0 0
        %1634 = vmatpush1.bf16.msra.mxu0 0
        %1635 = vmatprep.subr.bf16.mxu0 0
        %1636 = vmatpush1.bf16.msra.mxu0 0
        %1637 = vmatprep.subr.bf16.mxu0 0
        %1638 = vmatpush1.bf16.msra.mxu0 0
        %1639 = vmatprep.subr.bf16.mxu0 0
        %1640 = vmatpush1.bf16.msra.mxu0 0
        %1641 = vmatprep.subr.bf16.mxu0 0
        %1642 = vmatpush1.bf16.msra.mxu0 0
        %1643 = vmatprep.subr.bf16.mxu0 0
        %1644 = vmatpush1.bf16.msra.mxu0 0
        %1645 = vmatprep.subr.bf16.mxu0 0
        %1646 = vmatpush1.bf16.msra.mxu0 0
        %1647 = vmatprep.subr.bf16.mxu0 0
        %1648 = vmatpush1.bf16.msra.mxu0 0
        %1649 = vmatprep.subr.bf16.mxu0 0
        %1650 = vmatpush1.bf16.msra.mxu0 0
        %1651 = vmatprep.mubr.bf16.mxu0 0
        %1652 = vmatmul.mubr.bf16.gmra.mrb[0].mxu0 %v1614
        %v1653 = vpop.f32.mrb[0].mxu0
        %v1654 = vadd.f32 0.0, %v1653
        %v1655 = vpop.f32.mrb[0].mxu0
        %v1656 = vpop.f32.mrb[0].mxu0
        %v1657 = vpop.f32.mrb[0].mxu0
        %1658 = vdwg.mxu0
        %1659 = vrot.lane.b32.xlu0 %v1257, 96
        %v1660 = vpop.permute.xlu0 %1659
        %v1662 = vsel %vm1365, %v1610, 0
        %v1665 = vsel %vm1393, %v1660, 0
        %1667 = vmatprep.subr.bf16.mxu0 0
        %1668 = vmatpush1.bf16.msra.mxu0 %v1665
        %1669 = vmatprep.subr.bf16.mxu0 0
        %1670 = vmatpush1.bf16.msra.mxu0 0
        %1671 = vmatprep.subr.bf16.mxu0 0
        %1672 = vmatpush1.bf16.msra.mxu0 0
        %1673 = vmatprep.subr.bf16.mxu0 0
        %1674 = vmatpush1.bf16.msra.mxu0 0
        %1675 = vmatprep.subr.bf16.mxu0 0
        %1676 = vmatpush1.bf16.msra.mxu0 0
        %1677 = vmatprep.subr.bf16.mxu0 0
        %1678 = vmatpush1.bf16.msra.mxu0 0
        %1679 = vmatprep.subr.bf16.mxu0 0
        %1680 = vmatpush1.bf16.msra.mxu0 0
        %1681 = vmatprep.subr.bf16.mxu0 0
        %1682 = vmatpush1.bf16.msra.mxu0 0
        %1683 = vmatprep.subr.bf16.mxu0 0
        %1684 = vmatpush1.bf16.msra.mxu0 0
        %1685 = vmatprep.subr.bf16.mxu0 0
        %1686 = vmatpush1.bf16.msra.mxu0 0
        %1687 = vmatprep.subr.bf16.mxu0 0
        %1688 = vmatpush1.bf16.msra.mxu0 0
        %1689 = vmatprep.subr.bf16.mxu0 0
        %1690 = vmatpush1.bf16.msra.mxu0 0
        %1691 = vmatprep.subr.bf16.mxu0 0
        %1692 = vmatpush1.bf16.msra.mxu0 0
        %1693 = vmatprep.subr.bf16.mxu0 0
        %1694 = vmatpush1.bf16.msra.mxu0 0
        %1695 = vmatprep.subr.bf16.mxu0 0
        %1696 = vmatpush1.bf16.msra.mxu0 0
        %1697 = vmatprep.subr.bf16.mxu0 0
        %1698 = vmatpush1.bf16.msra.mxu0 0
        %1699 = vmatprep.mubr.bf16.mxu0 0
        %1700 = vmatmul.mubr.bf16.gmra.mrb[0].mxu0 %v1662
        %v1701 = vpop.f32.mrb[0].mxu0
        %v1702 = vadd.f32 0.0, %v1701
        %v1703 = vpop.f32.mrb[0].mxu0
        %v1704 = vpop.f32.mrb[0].mxu0
        %v1705 = vpop.f32.mrb[0].mxu0
        %1706 = vdwg.mxu0
        %1707 = vrot.lane.b32.xlu0 %v1246, 64
        %v1708 = vpop.permute.xlu0 %1707
        %1709 = vrot.lane.b32.xlu0 %v1251, 64
        %v1710 = vpop.permute.xlu0 %1709
        %v1712 = vsel %vm1258, %v1708, 0
        %v1715 = vsel %vm1258, %v1710, 0
        %1717 = vmatprep.subr.bf16.mxu0 0
        %1718 = vmatpush1.bf16.xpose.msra.mxu0 %v1715
        %1719 = vmatprep.subr.bf16.mxu0 0
        %1720 = vmatpush1.bf16.xpose.msra.mxu0 0
        %1721 = vmatprep.subr.bf16.mxu0 0
        %1722 = vmatpush1.bf16.xpose.msra.mxu0 0
        %1723 = vmatprep.subr.bf16.mxu0 0
        %1724 = vmatpush1.bf16.xpose.msra.mxu0 0
        %1725 = vmatprep.subr.bf16.mxu0 0
        %1726 = vmatpush1.bf16.xpose.msra.mxu0 0
        %1727 = vmatprep.subr.bf16.mxu0 0
        %1728 = vmatpush1.bf16.xpose.msra.mxu0 0
        %1729 = vmatprep.subr.bf16.mxu0 0
        %1730 = vmatpush1.bf16.xpose.msra.mxu0 0
        %1731 = vmatprep.subr.bf16.mxu0 0
        %1732 = vmatpush1.bf16.xpose.msra.mxu0 0
        %1733 = vmatprep.subr.bf16.mxu0 0
        %1734 = vmatpush1.bf16.xpose.msra.mxu0 0
        %1735 = vmatprep.subr.bf16.mxu0 0
        %1736 = vmatpush1.bf16.xpose.msra.mxu0 0
        %1737 = vmatprep.subr.bf16.mxu0 0
        %1738 = vmatpush1.bf16.xpose.msra.mxu0 0
        %1739 = vmatprep.subr.bf16.mxu0 0
        %1740 = vmatpush1.bf16.xpose.msra.mxu0 0
        %1741 = vmatprep.subr.bf16.mxu0 0
        %1742 = vmatpush1.bf16.xpose.msra.mxu0 0
        %1743 = vmatprep.subr.bf16.mxu0 0
        %1744 = vmatpush1.bf16.xpose.msra.mxu0 0
        %1745 = vmatprep.subr.bf16.mxu0 0
        %1746 = vmatpush1.bf16.xpose.msra.mxu0 0
        %1747 = vmatprep.subr.bf16.mxu0 0
        %1748 = vmatpush1.bf16.xpose.msra.mxu0 0
        %1749 = vmatprep.mubr.bf16.mxu0 0
        %1750 = vmatmul.mubr.bf16.gmra.mrb[0].mxu0 %v1712
        %v1751 = vpop.f32.mrb[0].mxu0
        %v1752 = vadd.f32 0.0, %v1751
        %v1753 = vpop.f32.mrb[0].mxu0
        %v1754 = vpop.f32.mrb[0].mxu0
        %v1755 = vpop.f32.mrb[0].mxu0
        %1756 = vdwg.mxu0
        %1757 = vrot.lane.b32.xlu0 %v1247, 64
        %v1758 = vpop.permute.xlu0 %1757
        %1759 = vrot.lane.b32.xlu0 %v1252, 64
        %v1760 = vpop.permute.xlu0 %1759
        %v1762 = vsel %vm1258, %v1758, 0
        %v1765 = vsel %vm1258, %v1760, 0
        %1767 = vmatprep.subr.bf16.mxu0 0
        %1768 = vmatpush1.bf16.xpose.msra.mxu0 %v1765
        %1769 = vmatprep.subr.bf16.mxu0 0
        %1770 = vmatpush1.bf16.xpose.msra.mxu0 0
        %1771 = vmatprep.subr.bf16.mxu0 0
        %1772 = vmatpush1.bf16.xpose.msra.mxu0 0
        %1773 = vmatprep.subr.bf16.mxu0 0
        %1774 = vmatpush1.bf16.xpose.msra.mxu0 0
        %1775 = vmatprep.subr.bf16.mxu0 0
        %1776 = vmatpush1.bf16.xpose.msra.mxu0 0
        %1777 = vmatprep.subr.bf16.mxu0 0
        %1778 = vmatpush1.bf16.xpose.msra.mxu0 0
        %1779 = vmatprep.subr.bf16.mxu0 0
        %1780 = vmatpush1.bf16.xpose.msra.mxu0 0
        %1781 = vmatprep.subr.bf16.mxu0 0
        %1782 = vmatpush1.bf16.xpose.msra.mxu0 0
        %1783 = vmatprep.subr.bf16.mxu0 0
        %1784 = vmatpush1.bf16.xpose.msra.mxu0 0
        %1785 = vmatprep.subr.bf16.mxu0 0
        %1786 = vmatpush1.bf16.xpose.msra.mxu0 0
        %1787 = vmatprep.subr.bf16.mxu0 0
        %1788 = vmatpush1.bf16.xpose.msra.mxu0 0
        %1789 = vmatprep.subr.bf16.mxu0 0
        %1790 = vmatpush1.bf16.xpose.msra.mxu0 0
        %1791 = vmatprep.subr.bf16.mxu0 0
        %1792 = vmatpush1.bf16.xpose.msra.mxu0 0
        %1793 = vmatprep.subr.bf16.mxu0 0
        %1794 = vmatpush1.bf16.xpose.msra.mxu0 0
        %1795 = vmatprep.subr.bf16.mxu0 0
        %1796 = vmatpush1.bf16.xpose.msra.mxu0 0
        %1797 = vmatprep.subr.bf16.mxu0 0
        %1798 = vmatpush1.bf16.xpose.msra.mxu0 0
        %1799 = vmatprep.mubr.bf16.mxu0 0
        %1800 = vmatmul.mubr.bf16.gmra.mrb[0].mxu0 %v1762
        %v1801 = vpop.f32.mrb[0].mxu0
        %v1802 = vadd.f32 0.0, %v1801
        %v1803 = vpop.f32.mrb[0].mxu0
        %v1804 = vpop.f32.mrb[0].mxu0
        %v1805 = vpop.f32.mrb[0].mxu0
        %1806 = vdwg.mxu0
        %v1807 = vmul.f32 %v1752, 0.17677669
        %v1808 = vmul.f32 %v1802, 0.17677669
        %v1809 = vadd.f32 %v1807, %v1356
        %v1810 = vadd.f32 %v1808, %v1360
        %v1811 = vsel %vm1365, %v1809, -inf
        %1812 = vmax.xlane.f32.xlu0 %v1811
        %v1813 = vpop.xlane.xlu0 %1812
        %v1814 = vsel %vm1365, %v1810, -inf
        %1815 = vmax.xlane.f32.xlu0 %v1814
        %v1816 = vpop.xlane.xlu0 %1815
        %v1817 = vsub.f32 %v1809, %v1813
        %v1818 = vsub.f32 %v1810, %v1816
        %v1819 = vmul.f32 %v1817, 1.442695
        %v1820 = vpow.pop %v1819
        %v1821 = vmul.f32 %v1818, 1.442695
        %v1822 = vpow.pop %v1821
        %v1823 = vsel %vm1365, %v1820, 0.0
        %1824 = vadd.xlane.f32.xlu0 %v1823
        %v1825 = vpop.xlane.xlu0 %1824
        %v1826 = vsel %vm1365, %v1822, 0.0
        %1827 = vadd.xlane.f32.xlu0 %v1826
        %v1828 = vpop.xlane.xlu0 %1827
        %v1829 = vrcp.pop %v1825
        %v1830 = vrcp.pop %v1828
        %v1831 = vmul.f32 %v1820, %v1829
        %v1832 = vmul.f32 %v1822, %v1830
        %v1833 = vpack.c.bf16 %v1831, %v1831
        %v1834 = vpack.c.bf16 %v1832, %v1832
        %1835 = vrot.lane.b32.xlu0 %v1256, 64
        %v1836 = vpop.permute.xlu0 %1835
        %v1838 = vsel %vm1365, %v1833, 0
        %v1841 = vsel %vm1393, %v1836, 0
        %1843 = vmatprep.subr.bf16.mxu0 0
        %1844 = vmatpush1.bf16.msra.mxu0 %v1841
        %1845 = vmatprep.subr.bf16.mxu0 0
        %1846 = vmatpush1.bf16.msra.mxu0 0
        %1847 = vmatprep.subr.bf16.mxu0 0
        %1848 = vmatpush1.bf16.msra.mxu0 0
        %1849 = vmatprep.subr.bf16.mxu0 0
        %1850 = vmatpush1.bf16.msra.mxu0 0
        %1851 = vmatprep.subr.bf16.mxu0 0
        %1852 = vmatpush1.bf16.msra.mxu0 0
        %1853 = vmatprep.subr.bf16.mxu0 0
        %1854 = vmatpush1.bf16.msra.mxu0 0
        %1855 = vmatprep.subr.bf16.mxu0 0
        %1856 = vmatpush1.bf16.msra.mxu0 0
        %1857 = vmatprep.subr.bf16.mxu0 0
        %1858 = vmatpush1.bf16.msra.mxu0 0
        %1859 = vmatprep.subr.bf16.mxu0 0
        %1860 = vmatpush1.bf16.msra.mxu0 0
        %1861 = vmatprep.subr.bf16.mxu0 0
        %1862 = vmatpush1.bf16.msra.mxu0 0
        %1863 = vmatprep.subr.bf16.mxu0 0
        %1864 = vmatpush1.bf16.msra.mxu0 0
        %1865 = vmatprep.subr.bf16.mxu0 0
        %1866 = vmatpush1.bf16.msra.mxu0 0
        %1867 = vmatprep.subr.bf16.mxu0 0
        %1868 = vmatpush1.bf16.msra.mxu0 0
        %1869 = vmatprep.subr.bf16.mxu0 0
        %1870 = vmatpush1.bf16.msra.mxu0 0
        %1871 = vmatprep.subr.bf16.mxu0 0
        %1872 = vmatpush1.bf16.msra.mxu0 0
        %1873 = vmatprep.subr.bf16.mxu0 0
        %1874 = vmatpush1.bf16.msra.mxu0 0
        %1875 = vmatprep.mubr.bf16.mxu0 0
        %1876 = vmatmul.mubr.bf16.gmra.mrb[0].mxu0 %v1838
        %v1877 = vpop.f32.mrb[0].mxu0
        %v1878 = vadd.f32 0.0, %v1877
        %v1879 = vpop.f32.mrb[0].mxu0
        %v1880 = vpop.f32.mrb[0].mxu0
        %v1881 = vpop.f32.mrb[0].mxu0
        %1882 = vdwg.mxu0
        %1883 = vrot.lane.b32.xlu0 %v1257, 64
        %v1884 = vpop.permute.xlu0 %1883
        %v1886 = vsel %vm1365, %v1834, 0
        %v1889 = vsel %vm1393, %v1884, 0
        %1891 = vmatprep.subr.bf16.mxu0 0
        %1892 = vmatpush1.bf16.msra.mxu0 %v1889
        %1893 = vmatprep.subr.bf16.mxu0 0
        %1894 = vmatpush1.bf16.msra.mxu0 0
        %1895 = vmatprep.subr.bf16.mxu0 0
        %1896 = vmatpush1.bf16.msra.mxu0 0
        %1897 = vmatprep.subr.bf16.mxu0 0
        %1898 = vmatpush1.bf16.msra.mxu0 0
        %1899 = vmatprep.subr.bf16.mxu0 0
        %1900 = vmatpush1.bf16.msra.mxu0 0
        %1901 = vmatprep.subr.bf16.mxu0 0
        %1902 = vmatpush1.bf16.msra.mxu0 0
        %1903 = vmatprep.subr.bf16.mxu0 0
        %1904 = vmatpush1.bf16.msra.mxu0 0
        %1905 = vmatprep.subr.bf16.mxu0 0
        %1906 = vmatpush1.bf16.msra.mxu0 0
        %1907 = vmatprep.subr.bf16.mxu0 0
        %1908 = vmatpush1.bf16.msra.mxu0 0
        %1909 = vmatprep.subr.bf16.mxu0 0
        %1910 = vmatpush1.bf16.msra.mxu0 0
        %1911 = vmatprep.subr.bf16.mxu0 0
        %1912 = vmatpush1.bf16.msra.mxu0 0
        %1913 = vmatprep.subr.bf16.mxu0 0
        %1914 = vmatpush1.bf16.msra.mxu0 0
        %1915 = vmatprep.subr.bf16.mxu0 0
        %1916 = vmatpush1.bf16.msra.mxu0 0
        %1917 = vmatprep.subr.bf16.mxu0 0
        %1918 = vmatpush1.bf16.msra.mxu0 0
        %1919 = vmatprep.subr.bf16.mxu0 0
        %1920 = vmatpush1.bf16.msra.mxu0 0
        %1921 = vmatprep.subr.bf16.mxu0 0
        %1922 = vmatpush1.bf16.msra.mxu0 0
        %1923 = vmatprep.mubr.bf16.mxu0 0
        %1924 = vmatmul.mubr.bf16.gmra.mrb[0].mxu0 %v1886
        %v1925 = vpop.f32.mrb[0].mxu0
        %v1926 = vadd.f32 0.0, %v1925
        %v1927 = vpop.f32.mrb[0].mxu0
        %v1928 = vpop.f32.mrb[0].mxu0
        %v1929 = vpop.f32.mrb[0].mxu0
        %1930 = vdwg.mxu0
        %1931 = vrot.lane.b32.xlu0 %v1246, 32
        %v1932 = vpop.permute.xlu0 %1931
        %1933 = vrot.lane.b32.xlu0 %v1251, 32
        %v1934 = vpop.permute.xlu0 %1933
        %v1936 = vsel %vm1258, %v1932, 0
        %v1939 = vsel %vm1258, %v1934, 0
        %1941 = vmatprep.subr.bf16.mxu0 0
        %1942 = vmatpush1.bf16.xpose.msra.mxu0 %v1939
        %1943 = vmatprep.subr.bf16.mxu0 0
        %1944 = vmatpush1.bf16.xpose.msra.mxu0 0
        %1945 = vmatprep.subr.bf16.mxu0 0
        %1946 = vmatpush1.bf16.xpose.msra.mxu0 0
        %1947 = vmatprep.subr.bf16.mxu0 0
        %1948 = vmatpush1.bf16.xpose.msra.mxu0 0
        %1949 = vmatprep.subr.bf16.mxu0 0
        %1950 = vmatpush1.bf16.xpose.msra.mxu0 0
        %1951 = vmatprep.subr.bf16.mxu0 0
        %1952 = vmatpush1.bf16.xpose.msra.mxu0 0
        %1953 = vmatprep.subr.bf16.mxu0 0
        %1954 = vmatpush1.bf16.xpose.msra.mxu0 0
        %1955 = vmatprep.subr.bf16.mxu0 0
        %1956 = vmatpush1.bf16.xpose.msra.mxu0 0
        %1957 = vmatprep.subr.bf16.mxu0 0
        %1958 = vmatpush1.bf16.xpose.msra.mxu0 0
        %1959 = vmatprep.subr.bf16.mxu0 0
        %1960 = vmatpush1.bf16.xpose.msra.mxu0 0
        %1961 = vmatprep.subr.bf16.mxu0 0
        %1962 = vmatpush1.bf16.xpose.msra.mxu0 0
        %1963 = vmatprep.subr.bf16.mxu0 0
        %1964 = vmatpush1.bf16.xpose.msra.mxu0 0
        %1965 = vmatprep.subr.bf16.mxu0 0
        %1966 = vmatpush1.bf16.xpose.msra.mxu0 0
        %1967 = vmatprep.subr.bf16.mxu0 0
        %1968 = vmatpush1.bf16.xpose.msra.mxu0 0
        %1969 = vmatprep.subr.bf16.mxu0 0
        %1970 = vmatpush1.bf16.xpose.msra.mxu0 0
        %1971 = vmatprep.subr.bf16.mxu0 0
        %1972 = vmatpush1.bf16.xpose.msra.mxu0 0
        %1973 = vmatprep.mubr.bf16.mxu0 0
        %1974 = vmatmul.mubr.bf16.gmra.mrb[0].mxu0 %v1936
        %v1975 = vpop.f32.mrb[0].mxu0
        %v1976 = vadd.f32 0.0, %v1975
        %v1977 = vpop.f32.mrb[0].mxu0
        %v1978 = vpop.f32.mrb[0].mxu0
        %v1979 = vpop.f32.mrb[0].mxu0
        %1980 = vdwg.mxu0
        %1981 = vrot.lane.b32.xlu0 %v1247, 32
        %v1982 = vpop.permute.xlu0 %1981
        %1983 = vrot.lane.b32.xlu0 %v1252, 32
        %v1984 = vpop.permute.xlu0 %1983
        %v1986 = vsel %vm1258, %v1982, 0
        %v1989 = vsel %vm1258, %v1984, 0
        %1991 = vmatprep.subr.bf16.mxu0 0
        %1992 = vmatpush1.bf16.xpose.msra.mxu0 %v1989
        %1993 = vmatprep.subr.bf16.mxu0 0
        %1994 = vmatpush1.bf16.xpose.msra.mxu0 0
        %1995 = vmatprep.subr.bf16.mxu0 0
        %1996 = vmatpush1.bf16.xpose.msra.mxu0 0
        %1997 = vmatprep.subr.bf16.mxu0 0
        %1998 = vmatpush1.bf16.xpose.msra.mxu0 0
        %1999 = vmatprep.subr.bf16.mxu0 0
        %2000 = vmatpush1.bf16.xpose.msra.mxu0 0
        %2001 = vmatprep.subr.bf16.mxu0 0
        %2002 = vmatpush1.bf16.xpose.msra.mxu0 0
        %2003 = vmatprep.subr.bf16.mxu0 0
        %2004 = vmatpush1.bf16.xpose.msra.mxu0 0
        %2005 = vmatprep.subr.bf16.mxu0 0
        %2006 = vmatpush1.bf16.xpose.msra.mxu0 0
        %2007 = vmatprep.subr.bf16.mxu0 0
        %2008 = vmatpush1.bf16.xpose.msra.mxu0 0
        %2009 = vmatprep.subr.bf16.mxu0 0
        %2010 = vmatpush1.bf16.xpose.msra.mxu0 0
        %2011 = vmatprep.subr.bf16.mxu0 0
        %2012 = vmatpush1.bf16.xpose.msra.mxu0 0
        %2013 = vmatprep.subr.bf16.mxu0 0
        %2014 = vmatpush1.bf16.xpose.msra.mxu0 0
        %2015 = vmatprep.subr.bf16.mxu0 0
        %2016 = vmatpush1.bf16.xpose.msra.mxu0 0
        %2017 = vmatprep.subr.bf16.mxu0 0
        %2018 = vmatpush1.bf16.xpose.msra.mxu0 0
        %2019 = vmatprep.subr.bf16.mxu0 0
        %2020 = vmatpush1.bf16.xpose.msra.mxu0 0
        %2021 = vmatprep.subr.bf16.mxu0 0
        %2022 = vmatpush1.bf16.xpose.msra.mxu0 0
        %2023 = vmatprep.mubr.bf16.mxu0 0
        %2024 = vmatmul.mubr.bf16.gmra.mrb[0].mxu0 %v1986
        %v2025 = vpop.f32.mrb[0].mxu0
        %v2026 = vadd.f32 0.0, %v2025
        %v2027 = vpop.f32.mrb[0].mxu0
        %v2028 = vpop.f32.mrb[0].mxu0
        %v2029 = vpop.f32.mrb[0].mxu0
        %2030 = vdwg.mxu0
        %v2031 = vmul.f32 %v1976, 0.17677669
        %v2032 = vmul.f32 %v2026, 0.17677669
        %v2033 = vadd.f32 %v2031, %v1356
        %v2034 = vadd.f32 %v2032, %v1360
        %v2035 = vsel %vm1365, %v2033, -inf
        %2036 = vmax.xlane.f32.xlu0 %v2035
        %v2037 = vpop.xlane.xlu0 %2036
        %v2038 = vsel %vm1365, %v2034, -inf
        %2039 = vmax.xlane.f32.xlu0 %v2038
        %v2040 = vpop.xlane.xlu0 %2039
        %v2041 = vsub.f32 %v2033, %v2037
        %v2042 = vsub.f32 %v2034, %v2040
        %v2043 = vmul.f32 %v2041, 1.442695
        %v2044 = vpow.pop %v2043
        %v2045 = vmul.f32 %v2042, 1.442695
        %v2046 = vpow.pop %v2045
        %v2047 = vsel %vm1365, %v2044, 0.0
        %2048 = vadd.xlane.f32.xlu0 %v2047
        %v2049 = vpop.xlane.xlu0 %2048
        %v2050 = vsel %vm1365, %v2046, 0.0
        %2051 = vadd.xlane.f32.xlu0 %v2050
        %v2052 = vpop.xlane.xlu0 %2051
        %v2053 = vrcp.pop %v2049
        %v2054 = vrcp.pop %v2052
        %v2055 = vmul.f32 %v2044, %v2053
        %v2056 = vmul.f32 %v2046, %v2054
        %v2057 = vpack.c.bf16 %v2055, %v2055
        %v2058 = vpack.c.bf16 %v2056, %v2056
        %2059 = vrot.lane.b32.xlu0 %v1256, 32
        %v2060 = vpop.permute.xlu0 %2059
        %v2062 = vsel %vm1365, %v2057, 0
        %v2065 = vsel %vm1393, %v2060, 0
        %2067 = vmatprep.subr.bf16.mxu0 0
        %2068 = vmatpush1.bf16.msra.mxu0 %v2065
        %2069 = vmatprep.subr.bf16.mxu0 0
        %2070 = vmatpush1.bf16.msra.mxu0 0
        %2071 = vmatprep.subr.bf16.mxu0 0
        %2072 = vmatpush1.bf16.msra.mxu0 0
        %2073 = vmatprep.subr.bf16.mxu0 0
        %2074 = vmatpush1.bf16.msra.mxu0 0
        %2075 = vmatprep.subr.bf16.mxu0 0
        %2076 = vmatpush1.bf16.msra.mxu0 0
        %2077 = vmatprep.subr.bf16.mxu0 0
        %2078 = vmatpush1.bf16.msra.mxu0 0
        %2079 = vmatprep.subr.bf16.mxu0 0
        %2080 = vmatpush1.bf16.msra.mxu0 0
        %2081 = vmatprep.subr.bf16.mxu0 0
        %2082 = vmatpush1.bf16.msra.mxu0 0
        %2083 = vmatprep.subr.bf16.mxu0 0
        %2084 = vmatpush1.bf16.msra.mxu0 0
        %2085 = vmatprep.subr.bf16.mxu0 0
        %2086 = vmatpush1.bf16.msra.mxu0 0
        %2087 = vmatprep.subr.bf16.mxu0 0
        %2088 = vmatpush1.bf16.msra.mxu0 0
        %2089 = vmatprep.subr.bf16.mxu0 0
        %2090 = vmatpush1.bf16.msra.mxu0 0
        %2091 = vmatprep.subr.bf16.mxu0 0
        %2092 = vmatpush1.bf16.msra.mxu0 0
        %2093 = vmatprep.subr.bf16.mxu0 0
        %2094 = vmatpush1.bf16.msra.mxu0 0
        %2095 = vmatprep.subr.bf16.mxu0 0
        %2096 = vmatpush1.bf16.msra.mxu0 0
        %2097 = vmatprep.subr.bf16.mxu0 0
        %2098 = vmatpush1.bf16.msra.mxu0 0
        %2099 = vmatprep.mubr.bf16.mxu0 0
        %2100 = vmatmul.mubr.bf16.gmra.mrb[0].mxu0 %v2062
        %v2101 = vpop.f32.mrb[0].mxu0
        %v2102 = vadd.f32 0.0, %v2101
        %v2103 = vpop.f32.mrb[0].mxu0
        %v2104 = vpop.f32.mrb[0].mxu0
        %v2105 = vpop.f32.mrb[0].mxu0
        %2106 = vdwg.mxu0
        %2107 = vrot.lane.b32.xlu0 %v1257, 32
        %v2108 = vpop.permute.xlu0 %2107
        %v2110 = vsel %vm1365, %v2058, 0
        %v2113 = vsel %vm1393, %v2108, 0
        %2115 = vmatprep.subr.bf16.mxu0 0
        %2116 = vmatpush1.bf16.msra.mxu0 %v2113
        %2117 = vmatprep.subr.bf16.mxu0 0
        %2118 = vmatpush1.bf16.msra.mxu0 0
        %2119 = vmatprep.subr.bf16.mxu0 0
        %2120 = vmatpush1.bf16.msra.mxu0 0
        %2121 = vmatprep.subr.bf16.mxu0 0
        %2122 = vmatpush1.bf16.msra.mxu0 0
        %2123 = vmatprep.subr.bf16.mxu0 0
        %2124 = vmatpush1.bf16.msra.mxu0 0
        %2125 = vmatprep.subr.bf16.mxu0 0
        %2126 = vmatpush1.bf16.msra.mxu0 0
        %2127 = vmatprep.subr.bf16.mxu0 0
        %2128 = vmatpush1.bf16.msra.mxu0 0
        %2129 = vmatprep.subr.bf16.mxu0 0
        %2130 = vmatpush1.bf16.msra.mxu0 0
        %2131 = vmatprep.subr.bf16.mxu0 0
        %2132 = vmatpush1.bf16.msra.mxu0 0
        %2133 = vmatprep.subr.bf16.mxu0 0
        %2134 = vmatpush1.bf16.msra.mxu0 0
        %2135 = vmatprep.subr.bf16.mxu0 0
        %2136 = vmatpush1.bf16.msra.mxu0 0
        %2137 = vmatprep.subr.bf16.mxu0 0
        %2138 = vmatpush1.bf16.msra.mxu0 0
        %2139 = vmatprep.subr.bf16.mxu0 0
        %2140 = vmatpush1.bf16.msra.mxu0 0
        %2141 = vmatprep.subr.bf16.mxu0 0
        %2142 = vmatpush1.bf16.msra.mxu0 0
        %2143 = vmatprep.subr.bf16.mxu0 0
        %2144 = vmatpush1.bf16.msra.mxu0 0
        %2145 = vmatprep.subr.bf16.mxu0 0
        %2146 = vmatpush1.bf16.msra.mxu0 0
        %2147 = vmatprep.mubr.bf16.mxu0 0
        %2148 = vmatmul.mubr.bf16.gmra.mrb[0].mxu0 %v2110
        %v2149 = vpop.f32.mrb[0].mxu0
        %v2150 = vadd.f32 0.0, %v2149
        %v2151 = vpop.f32.mrb[0].mxu0
        %v2152 = vpop.f32.mrb[0].mxu0
        %v2153 = vpop.f32.mrb[0].mxu0
        %2154 = vdwg.mxu0
        %2157 = vrot.lane.b32.xlu0 %v1654, 32
        %v2158 = vpop.permute.xlu0 %2157
        %2159 = vrot.lane.b32.xlu0 %v1702, 32
        %v2160 = vpop.permute.xlu0 %2159
        %2165 = vrot.lane.b32.xlu0 %v1878, 64
        %v2166 = vpop.permute.xlu0 %2165
        %2167 = vrot.lane.b32.xlu0 %v1926, 64
        %v2168 = vpop.permute.xlu0 %2167
        %2173 = vrot.lane.b32.xlu0 %v2102, 96
        %v2174 = vpop.permute.xlu0 %2173
        %2175 = vrot.lane.b32.xlu0 %v2150, 96
        %v2176 = vpop.permute.xlu0 %2175
        %v2179 = vsel %vm1258, %v1432, %v2158
        %v2180 = vsel %vm1258, %v1478, %v2160
        %vm2181 = vcmask 523264
        %v2182 = vsel %vm2181, %v2179, %v2166
        %v2183 = vsel %vm2181, %v2180, %v2168
        %vm2184 = vcmask 785408
        %v2185 = vsel %vm2184, %v2182, %v2174
        %v2186 = vsel %vm2184, %v2183, %v2176
        %v2187 = vpack.c.bf16 %v2186, %v2185
        %v2188 = vld [vmem:[%s736] sm:$0xf]
        %v2189 = vld [vmem:[%s736 + $0x4] sm:$0xf]
        %v2190 = vld [vmem:[%s736 + $0x8] sm:$0xf]
        %v2191 = vld [vmem:[%s736 + $0xc] sm:$0xf]
        %v2192 = vld [vmem:[%s736 + $0x10] sm:$0xf]
        %v2193 = vld [vmem:[%s736 + $0x14] sm:$0xf]
        %v2194 = vld [vmem:[%s736 + $0x18] sm:$0xf]
        %v2195 = vld [vmem:[%s736 + $0x1c] sm:$0xf]
        %v2196 = vld [vmem:[%s736 + $0x20] sm:$0xf]
        %v2197 = vld [vmem:[%s736 + $0x24] sm:$0xf]
        %v2198 = vld [vmem:[%s736 + $0x28] sm:$0xf]
        %v2199 = vld [vmem:[%s736 + $0x2c] sm:$0xf]
        %v2200 = vld [vmem:[%s736 + $0x30] sm:$0xf]
        %v2201 = vld [vmem:[%s736 + $0x34] sm:$0xf]
        %v2202 = vld [vmem:[%s736 + $0x38] sm:$0xf]
        %v2203 = vld [vmem:[%s736 + $0x3c] sm:$0xf]
        %v2204 = vld [vmem:[%s744] sm:$0x1]
        %v2206 = vlaneseq
        %v2207 = vshrl.u32 %v2206, 7
        %v2208 = vsub.s32 0, %v2207
        %v2209 = vrot.slane %v2204, %v2208
        %v2227 = vunpack.c.l.b16 %v2188
        %v2228 = vunpack.c.l.b16 %v2189
        %v2229 = vunpack.c.l.b16 %v2190
        %v2230 = vunpack.c.l.b16 %v2191
        %v2231 = vunpack.c.l.b16 %v2192
        %v2232 = vunpack.c.l.b16 %v2193
        %v2233 = vunpack.c.l.b16 %v2194
        %v2234 = vunpack.c.l.b16 %v2195
        %v2235 = vunpack.c.l.b16 %v2196
        %v2236 = vunpack.c.l.b16 %v2197
        %v2237 = vunpack.c.l.b16 %v2198
        %v2238 = vunpack.c.l.b16 %v2199
        %v2239 = vunpack.c.l.b16 %v2200
        %v2240 = vunpack.c.l.b16 %v2201
        %v2241 = vunpack.c.l.b16 %v2202
        %v2242 = vunpack.c.l.b16 %v2203
        %v2243 = vpack.c.b16 %v2228, %v2227
        %v2244 = vpack.c.b16 %v2230, %v2229
        %v2245 = vpack.c.b16 %v2232, %v2231
        %v2246 = vpack.c.b16 %v2234, %v2233
        %v2247 = vpack.c.b16 %v2236, %v2235
        %v2248 = vpack.c.b16 %v2238, %v2237
        %v2249 = vpack.c.b16 %v2240, %v2239
        %v2250 = vpack.c.b16 %v2242, %v2241
        %2259 = vmatprep.subr.bf16.mxu0 0
        %2260 = vmatpush1.bf16.msra.mxu0 %v2243
        %2261 = vmatprep.subr.bf16.mxu0 0
        %2262 = vmatpush1.bf16.msra.mxu0 %v2244
        %2263 = vmatprep.subr.bf16.mxu0 0
        %2264 = vmatpush1.bf16.msra.mxu0 %v2245
        %2265 = vmatprep.subr.bf16.mxu0 0
        %2266 = vmatpush1.bf16.msra.mxu0 %v2246
        %2267 = vmatprep.subr.bf16.mxu0 0
        %2268 = vmatpush1.bf16.msra.mxu0 %v2247
        %2269 = vmatprep.subr.bf16.mxu0 0
        %2270 = vmatpush1.bf16.msra.mxu0 %v2248
        %2271 = vmatprep.subr.bf16.mxu0 0
        %2272 = vmatpush1.bf16.msra.mxu0 %v2249
        %2273 = vmatprep.subr.bf16.mxu0 0
        %2274 = vmatpush1.bf16.msra.mxu0 %v2250
        %2275 = vmatprep.subr.bf16.mxu0 0
        %2276 = vmatpush1.bf16.msra.mxu0 0
        %2277 = vmatprep.subr.bf16.mxu0 0
        %2278 = vmatpush1.bf16.msra.mxu0 0
        %2279 = vmatprep.subr.bf16.mxu0 0
        %2280 = vmatpush1.bf16.msra.mxu0 0
        %2281 = vmatprep.subr.bf16.mxu0 0
        %2282 = vmatpush1.bf16.msra.mxu0 0
        %2283 = vmatprep.subr.bf16.mxu0 0
        %2284 = vmatpush1.bf16.msra.mxu0 0
        %2285 = vmatprep.subr.bf16.mxu0 0
        %2286 = vmatpush1.bf16.msra.mxu0 0
        %2287 = vmatprep.subr.bf16.mxu0 0
        %2288 = vmatpush1.bf16.msra.mxu0 0
        %2289 = vmatprep.subr.bf16.mxu0 0
        %2290 = vmatpush1.bf16.msra.mxu0 0
        %2291 = vmatprep.mubr.bf16.mxu0 0
        %2292 = vmatmul.mubr.bf16.gmra.mrb[0].mxu0 %v2187
        %v2293 = vpop.f32.mrb[0].mxu0
        %v2294 = vadd.f32 %v2209, %v2293
        %v2295 = vpop.f32.mrb[0].mxu0
        %v2296 = vpop.f32.mrb[0].mxu0
        %v2297 = vadd.f32 %v2209, %v2296
        %v2298 = vpop.f32.mrb[0].mxu0
        %2299 = vdwg.mxu0
        %v2300 = vadd.f32 %v950, %v2294
        %v2301 = vadd.f32 %v951, %v2297
        %v2302 = vld [vmem:[%s752] sm:$0x1]
        %v2303 = vld [vmem:[%s760] sm:$0x1]
        %2304 = vadd.xlane.f32.xlu0 %v2300
        %v2305 = vpop.xlane.xlu0 %2304
        %2306 = vadd.xlane.f32.xlu0 %v2301
        %v2307 = vpop.xlane.xlu0 %2306
        %v2308 = vrcp.pop 128.0
        %v2309 = vmul.f32 %v2305, %v2308
        %v2310 = vmul.f32 %v2307, %v2308
        %v2311 = vsub.f32 %v2300, %v2309
        %v2312 = vsub.f32 %v2301, %v2310
        %v2313 = vmul.f32 %v2311, %v2311
        %v2314 = vmul.f32 %v2312, %v2312
        %2315 = vadd.xlane.f32.xlu0 %v2313
        %v2316 = vpop.xlane.xlu0 %2315
        %2317 = vadd.xlane.f32.xlu0 %v2314
        %v2318 = vpop.xlane.xlu0 %2317
        %v2319 = vmul.f32 %v2316, %v2308
        %v2320 = vmul.f32 %v2318, %v2308
        %v2321 = vadd.f32 %v2319, 1e-12
        %v2322 = vadd.f32 %v2320, 1e-12
        %v2323 = vrsqrt.pop %v2321
        %v2324 = vrsqrt.pop %v2322
        %v2325 = vmul.f32 %v2311, %v2323
        %v2326 = vmul.f32 %v2312, %v2324
        %v2328 = vlaneseq
        %v2329 = vshrl.u32 %v2328, 7
        %v2330 = vsub.s32 0, %v2329
        %v2331 = vrot.slane %v2302, %v2330
        %v2333 = vmul.f32 %v2325, %v2331
        %v2334 = vmul.f32 %v2326, %v2331
        %v2336 = vlaneseq
        %v2337 = vshrl.u32 %v2336, 7
        %v2338 = vsub.s32 0, %v2337
        %v2339 = vrot.slane %v2303, %v2338
        %v2341 = vadd.f32 %v2333, %v2339
        %v2342 = vadd.f32 %v2334, %v2339
        %v2343 = vpack.c.bf16 %v2342, %v2341
        %v2344 = vld [vmem:[%s899] sm:$0xff]
        %v2345 = vld [vmem:[%s899 + $0x8] sm:$0xff]
        %v2346 = vld [vmem:[%s899 + $0x10] sm:$0xff]
        %v2347 = vld [vmem:[%s899 + $0x18] sm:$0xff]
        %v2348 = vld [vmem:[%s899 + $0x20] sm:$0xff]
        %v2349 = vld [vmem:[%s899 + $0x28] sm:$0xff]
        %v2350 = vld [vmem:[%s899 + $0x30] sm:$0xff]
        %v2351 = vld [vmem:[%s899 + $0x38] sm:$0xff]
        %v2352 = vld [vmem:[%s899 + $0x40] sm:$0xff]
        %v2353 = vld [vmem:[%s899 + $0x48] sm:$0xff]
        %v2354 = vld [vmem:[%s899 + $0x50] sm:$0xff]
        %v2355 = vld [vmem:[%s899 + $0x58] sm:$0xff]
        %v2356 = vld [vmem:[%s899 + $0x60] sm:$0xff]
        %v2357 = vld [vmem:[%s899 + $0x68] sm:$0xff]
        %v2358 = vld [vmem:[%s899 + $0x70] sm:$0xff]
        %v2359 = vld [vmem:[%s899 + $0x78] sm:$0xff]
        %v2360 = vld [vmem:[%s769] sm:$0x3]
        %v2362 = vlaneseq
        %v2363 = vshrl.u32 %v2362, 7
        %v2364 = vsub.s32 0, %v2363
        %v2365 = vrot.slane %v2360, %v2364
        %v2366 = vlaneseq
        %v2367 = vshrl.u32 %v2366, 7
        %v2368 = vsub.s32 1, %v2367
        %v2369 = vrot.slane %v2360, %v2368
        %v2388 = vunpack.c.l.b16 %v2344
        %v2389 = vunpack.c.h.b16 %v2344
        %v2390 = vunpack.c.l.b16 %v2345
        %v2391 = vunpack.c.h.b16 %v2345
        %v2392 = vunpack.c.l.b16 %v2346
        %v2393 = vunpack.c.h.b16 %v2346
        %v2394 = vunpack.c.l.b16 %v2347
        %v2395 = vunpack.c.h.b16 %v2347
        %v2396 = vunpack.c.l.b16 %v2348
        %v2397 = vunpack.c.h.b16 %v2348
        %v2398 = vunpack.c.l.b16 %v2349
        %v2399 = vunpack.c.h.b16 %v2349
        %v2400 = vunpack.c.l.b16 %v2350
        %v2401 = vunpack.c.h.b16 %v2350
        %v2402 = vunpack.c.l.b16 %v2351
        %v2403 = vunpack.c.h.b16 %v2351
        %v2404 = vunpack.c.l.b16 %v2352
        %v2405 = vunpack.c.h.b16 %v2352
        %v2406 = vunpack.c.l.b16 %v2353
        %v2407 = vunpack.c.h.b16 %v2353
        %v2408 = vunpack.c.l.b16 %v2354
        %v2409 = vunpack.c.h.b16 %v2354
        %v2410 = vunpack.c.l.b16 %v2355
        %v2411 = vunpack.c.h.b16 %v2355
        %v2412 = vunpack.c.l.b16 %v2356
        %v2413 = vunpack.c.h.b16 %v2356
        %v2414 = vunpack.c.l.b16 %v2357
        %v2415 = vunpack.c.h.b16 %v2357
        %v2416 = vunpack.c.l.b16 %v2358
        %v2417 = vunpack.c.h.b16 %v2358
        %v2418 = vunpack.c.l.b16 %v2359
        %v2419 = vunpack.c.h.b16 %v2359
        %v2420 = vpack.c.b16 %v2390, %v2388
        %v2421 = vpack.c.b16 %v2391, %v2389
        %v2422 = vpack.c.b16 %v2394, %v2392
        %v2423 = vpack.c.b16 %v2395, %v2393
        %v2424 = vpack.c.b16 %v2398, %v2396
        %v2425 = vpack.c.b16 %v2399, %v2397
        %v2426 = vpack.c.b16 %v2402, %v2400
        %v2427 = vpack.c.b16 %v2403, %v2401
        %v2428 = vpack.c.b16 %v2406, %v2404
        %v2429 = vpack.c.b16 %v2407, %v2405
        %v2430 = vpack.c.b16 %v2410, %v2408
        %v2431 = vpack.c.b16 %v2411, %v2409
        %v2432 = vpack.c.b16 %v2414, %v2412
        %v2433 = vpack.c.b16 %v2415, %v2413
        %v2434 = vpack.c.b16 %v2418, %v2416
        %v2435 = vpack.c.b16 %v2419, %v2417
        %2452 = vmatprep.subr.bf16.mxu0 %v2421
        %2453 = vmatpush1.bf16.msra.mxu0 %v2420
        %2454 = vmatprep.subr.bf16.mxu0 %v2423
        %2455 = vmatpush1.bf16.msra.mxu0 %v2422
        %2456 = vmatprep.subr.bf16.mxu0 %v2425
        %2457 = vmatpush1.bf16.msra.mxu0 %v2424
        %2458 = vmatprep.subr.bf16.mxu0 %v2427
        %2459 = vmatpush1.bf16.msra.mxu0 %v2426
        %2460 = vmatprep.subr.bf16.mxu0 %v2429
        %2461 = vmatpush1.bf16.msra.mxu0 %v2428
        %2462 = vmatprep.subr.bf16.mxu0 %v2431
        %2463 = vmatpush1.bf16.msra.mxu0 %v2430
        %2464 = vmatprep.subr.bf16.mxu0 %v2433
        %2465 = vmatpush1.bf16.msra.mxu0 %v2432
        %2466 = vmatprep.subr.bf16.mxu0 %v2435
        %2467 = vmatpush1.bf16.msra.mxu0 %v2434
        %2468 = vmatprep.subr.bf16.mxu0 0
        %2469 = vmatpush1.bf16.msra.mxu0 0
        %2470 = vmatprep.subr.bf16.mxu0 0
        %2471 = vmatpush1.bf16.msra.mxu0 0
        %2472 = vmatprep.subr.bf16.mxu0 0
        %2473 = vmatpush1.bf16.msra.mxu0 0
        %2474 = vmatprep.subr.bf16.mxu0 0
        %2475 = vmatpush1.bf16.msra.mxu0 0
        %2476 = vmatprep.subr.bf16.mxu0 0
        %2477 = vmatpush1.bf16.msra.mxu0 0
        %2478 = vmatprep.subr.bf16.mxu0 0
        %2479 = vmatpush1.bf16.msra.mxu0 0
        %2480 = vmatprep.subr.bf16.mxu0 0
        %2481 = vmatpush1.bf16.msra.mxu0 0
        %2482 = vmatprep.subr.bf16.mxu0 0
        %2483 = vmatpush1.bf16.msra.mxu0 0
        %2484 = vmatprep.mubr.bf16.mxu0 0
        %2485 = vmatmul.mubr.bf16.gmra.mrb[0].mxu0 %v2343
        %v2486 = vpop.f32.mrb[0].mxu0
        %v2487 = vadd.f32 %v2365, %v2486
        %v2488 = vpop.f32.mrb[0].mxu0
        %v2489 = vadd.f32 %v2369, %v2488
        %v2490 = vpop.f32.mrb[0].mxu0
        %v2491 = vadd.f32 %v2365, %v2490
        %v2492 = vpop.f32.mrb[0].mxu0
        %v2493 = vadd.f32 %v2369, %v2492
        %2494 = vdwg.mxu0
        %v2495 = vmul.f32 %v2487, 0.5
        %v2496 = vmul.f32 %v2489, 0.5
        %v2497 = vmul.f32 %v2491, 0.5
        %v2498 = vmul.f32 %v2493, 0.5
        %v2499 = vmul.f32 %v2487, 0.70710677
        %v2500 = vmul.f32 %v2489, 0.70710677
        %v2501 = vmul.f32 %v2491, 0.70710677
        %v2502 = vmul.f32 %v2493, 0.70710677
        %v2503 = verf.f32.pop %v2499
        %v2504 = verf.f32.pop %v2500
        %v2505 = verf.f32.pop %v2501
        %v2506 = verf.f32.pop %v2502
        %v2507 = vadd.f32 %v2503, 1.0
        %v2508 = vadd.f32 %v2504, 1.0
        %v2509 = vadd.f32 %v2505, 1.0
        %v2510 = vadd.f32 %v2506, 1.0
        %v2511 = vmul.f32 %v2495, %v2507
        %v2512 = vmul.f32 %v2496, %v2508
        %v2513 = vmul.f32 %v2497, %v2509
        %v2514 = vmul.f32 %v2498, %v2510
        %v2515 = vpack.c.bf16 %v2513, %v2511
        %v2516 = vpack.c.bf16 %v2514, %v2512
        %v2517 = vld [vmem:[%s778] sm:$0xf]
        %v2518 = vld [vmem:[%s778 + $0x4] sm:$0xf]
        %v2519 = vld [vmem:[%s778 + $0x8] sm:$0xf]
        %v2520 = vld [vmem:[%s778 + $0xc] sm:$0xf]
        %v2521 = vld [vmem:[%s778 + $0x10] sm:$0xf]
        %v2522 = vld [vmem:[%s778 + $0x14] sm:$0xf]
        %v2523 = vld [vmem:[%s778 + $0x18] sm:$0xf]
        %v2524 = vld [vmem:[%s778 + $0x1c] sm:$0xf]
        %v2525 = vld [vmem:[%s778 + $0x20] sm:$0xf]
        %v2526 = vld [vmem:[%s778 + $0x24] sm:$0xf]
        %v2527 = vld [vmem:[%s778 + $0x28] sm:$0xf]
        %v2528 = vld [vmem:[%s778 + $0x2c] sm:$0xf]
        %v2529 = vld [vmem:[%s778 + $0x30] sm:$0xf]
        %v2530 = vld [vmem:[%s778 + $0x34] sm:$0xf]
        %v2531 = vld [vmem:[%s778 + $0x38] sm:$0xf]
        %v2532 = vld [vmem:[%s778 + $0x3c] sm:$0xf]
        %v2533 = vld [vmem:[%s778 + $0x40] sm:$0xf]
        %v2534 = vld [vmem:[%s778 + $0x44] sm:$0xf]
        %v2535 = vld [vmem:[%s778 + $0x48] sm:$0xf]
        %v2536 = vld [vmem:[%s778 + $0x4c] sm:$0xf]
        %v2537 = vld [vmem:[%s778 + $0x50] sm:$0xf]
        %v2538 = vld [vmem:[%s778 + $0x54] sm:$0xf]
        %v2539 = vld [vmem:[%s778 + $0x58] sm:$0xf]
        %v2540 = vld [vmem:[%s778 + $0x5c] sm:$0xf]
        %v2541 = vld [vmem:[%s778 + $0x60] sm:$0xf]
        %v2542 = vld [vmem:[%s778 + $0x64] sm:$0xf]
        %v2543 = vld [vmem:[%s778 + $0x68] sm:$0xf]
        %v2544 = vld [vmem:[%s778 + $0x6c] sm:$0xf]
        %v2545 = vld [vmem:[%s778 + $0x70] sm:$0xf]
        %v2546 = vld [vmem:[%s778 + $0x74] sm:$0xf]
        %v2547 = vld [vmem:[%s778 + $0x78] sm:$0xf]
        %v2548 = vld [vmem:[%s778 + $0x7c] sm:$0xf]
        %v2549 = vld [vmem:[%s786] sm:$0x1]
        %v2551 = vlaneseq
        %v2552 = vshrl.u32 %v2551, 7
        %v2553 = vsub.s32 0, %v2552
        %v2554 = vrot.slane %v2549, %v2553
        %v2588 = vunpack.c.l.b16 %v2517
        %v2589 = vunpack.c.l.b16 %v2518
        %v2590 = vunpack.c.l.b16 %v2519
        %v2591 = vunpack.c.l.b16 %v2520
        %v2592 = vunpack.c.l.b16 %v2521
        %v2593 = vunpack.c.l.b16 %v2522
        %v2594 = vunpack.c.l.b16 %v2523
        %v2595 = vunpack.c.l.b16 %v2524
        %v2596 = vunpack.c.l.b16 %v2525
        %v2597 = vunpack.c.l.b16 %v2526
        %v2598 = vunpack.c.l.b16 %v2527
        %v2599 = vunpack.c.l.b16 %v2528
        %v2600 = vunpack.c.l.b16 %v2529
        %v2601 = vunpack.c.l.b16 %v2530
        %v2602 = vunpack.c.l.b16 %v2531
        %v2603 = vunpack.c.l.b16 %v2532
        %v2604 = vunpack.c.l.b16 %v2533
        %v2605 = vunpack.c.l.b16 %v2534
        %v2606 = vunpack.c.l.b16 %v2535
        %v2607 = vunpack.c.l.b16 %v2536
        %v2608 = vunpack.c.l.b16 %v2537
        %v2609 = vunpack.c.l.b16 %v2538
        %v2610 = vunpack.c.l.b16 %v2539
        %v2611 = vunpack.c.l.b16 %v2540
        %v2612 = vunpack.c.l.b16 %v2541
        %v2613 = vunpack.c.l.b16 %v2542
        %v2614 = vunpack.c.l.b16 %v2543
        %v2615 = vunpack.c.l.b16 %v2544
        %v2616 = vunpack.c.l.b16 %v2545
        %v2617 = vunpack.c.l.b16 %v2546
        %v2618 = vunpack.c.l.b16 %v2547
        %v2619 = vunpack.c.l.b16 %v2548
        %v2620 = vpack.c.b16 %v2589, %v2588
        %v2621 = vpack.c.b16 %v2591, %v2590
        %v2622 = vpack.c.b16 %v2593, %v2592
        %v2623 = vpack.c.b16 %v2595, %v2594
        %v2624 = vpack.c.b16 %v2597, %v2596
        %v2625 = vpack.c.b16 %v2599, %v2598
        %v2626 = vpack.c.b16 %v2601, %v2600
        %v2627 = vpack.c.b16 %v2603, %v2602
        %v2628 = vpack.c.b16 %v2605, %v2604
        %v2629 = vpack.c.b16 %v2607, %v2606
        %v2630 = vpack.c.b16 %v2609, %v2608
        %v2631 = vpack.c.b16 %v2611, %v2610
        %v2632 = vpack.c.b16 %v2613, %v2612
        %v2633 = vpack.c.b16 %v2615, %v2614
        %v2634 = vpack.c.b16 %v2617, %v2616
        %v2635 = vpack.c.b16 %v2619, %v2618
        %2652 = vmatprep.subr.bf16.mxu0 0
        %2653 = vmatpush1.bf16.msra.mxu0 %v2620
        %2654 = vmatprep.subr.bf16.mxu0 0
        %2655 = vmatpush1.bf16.msra.mxu0 %v2621
        %2656 = vmatprep.subr.bf16.mxu0 0
        %2657 = vmatpush1.bf16.msra.mxu0 %v2622
        %2658 = vmatprep.subr.bf16.mxu0 0
        %2659 = vmatpush1.bf16.msra.mxu0 %v2623
        %2660 = vmatprep.subr.bf16.mxu0 0
        %2661 = vmatpush1.bf16.msra.mxu0 %v2624
        %2662 = vmatprep.subr.bf16.mxu0 0
        %2663 = vmatpush1.bf16.msra.mxu0 %v2625
        %2664 = vmatprep.subr.bf16.mxu0 0
        %2665 = vmatpush1.bf16.msra.mxu0 %v2626
        %2666 = vmatprep.subr.bf16.mxu0 0
        %2667 = vmatpush1.bf16.msra.mxu0 %v2627
        %2668 = vmatprep.subr.bf16.mxu0 0
        %2669 = vmatpush1.bf16.msra.mxu0 %v2628
        %2670 = vmatprep.subr.bf16.mxu0 0
        %2671 = vmatpush1.bf16.msra.mxu0 %v2629
        %2672 = vmatprep.subr.bf16.mxu0 0
        %2673 = vmatpush1.bf16.msra.mxu0 %v2630
        %2674 = vmatprep.subr.bf16.mxu0 0
        %2675 = vmatpush1.bf16.msra.mxu0 %v2631
        %2676 = vmatprep.subr.bf16.mxu0 0
        %2677 = vmatpush1.bf16.msra.mxu0 %v2632
        %2678 = vmatprep.subr.bf16.mxu0 0
        %2679 = vmatpush1.bf16.msra.mxu0 %v2633
        %2680 = vmatprep.subr.bf16.mxu0 0
        %2681 = vmatpush1.bf16.msra.mxu0 %v2634
        %2682 = vmatprep.subr.bf16.mxu0 0
        %2683 = vmatpush1.bf16.msra.mxu0 %v2635
        %2684 = vmatprep.mubr.bf16.mxu0 %v2516
        %2685 = vmatmul.mubr.bf16.gmra.mrb[0].mxu0 %v2515
        %v2686 = vpop.f32.mrb[0].mxu0
        %v2687 = vadd.f32 %v2554, %v2686
        %v2688 = vpop.f32.mrb[0].mxu0
        %v2689 = vpop.f32.mrb[0].mxu0
        %v2690 = vadd.f32 %v2554, %v2689
        %v2691 = vpop.f32.mrb[0].mxu0
        %2692 = vdwg.mxu0
        %v2693 = vadd.f32 %v2341, %v2687
        %v2694 = vadd.f32 %v2342, %v2690
        %v2695 = vld [vmem:[%s794] sm:$0x1]
        %v2696 = vld [vmem:[%s802] sm:$0x1]
        %2697 = vadd.xlane.f32.xlu0 %v2693
        %v2698 = vpop.xlane.xlu0 %2697
        %2699 = vadd.xlane.f32.xlu0 %v2694
        %v2700 = vpop.xlane.xlu0 %2699
        %v2701 = vmul.f32 %v2698, %v2308
        %v2702 = vmul.f32 %v2700, %v2308
        %v2703 = vsub.f32 %v2693, %v2701
        %v2704 = vsub.f32 %v2694, %v2702
        %v2705 = vmul.f32 %v2703, %v2703
        %v2706 = vmul.f32 %v2704, %v2704
        %2707 = vadd.xlane.f32.xlu0 %v2705
        %v2708 = vpop.xlane.xlu0 %2707
        %2709 = vadd.xlane.f32.xlu0 %v2706
        %v2710 = vpop.xlane.xlu0 %2709
        %v2711 = vmul.f32 %v2708, %v2308
        %v2712 = vmul.f32 %v2710, %v2308
        %v2713 = vadd.f32 %v2711, 1e-12
        %v2714 = vadd.f32 %v2712, 1e-12
        %v2715 = vrsqrt.pop %v2713
        %v2716 = vrsqrt.pop %v2714
        %v2717 = vmul.f32 %v2703, %v2715
        %v2718 = vmul.f32 %v2704, %v2716
        %v2720 = vlaneseq
        %v2721 = vshrl.u32 %v2720, 7
        %v2722 = vsub.s32 0, %v2721
        %v2723 = vrot.slane %v2695, %v2722
        %v2725 = vmul.f32 %v2717, %v2723
        %v2726 = vmul.f32 %v2718, %v2723
        %v2728 = vlaneseq
        %v2729 = vshrl.u32 %v2728, 7
        %v2730 = vsub.s32 0, %v2729
        %v2731 = vrot.slane %v2696, %v2730
        %v2733 = vadd.f32 %v2725, %v2731
        %v2734 = vadd.f32 %v2726, %v2731
        %2735 = vst [vmem:[%s16] sm:$0xff] %v2733
        %2736 = vst [vmem:[%s16 + $0x8] sm:$0xff] %v2734
        // Predicated region
        $region141: #{class_bert_forward.1} parent=83 // pred_check
          %p2737 = pneg %p438
        $region142: #{class_bert_forward.1} parent=83 // pred_check_branch
          %2739 = sbr.rel (%p2737) target = $region144
        $region143: #{class_bert_forward.1} parent=83 // pred_region
          _
        $region144: #{class_bert_forward.1} parent=83 // pred_fallthru
          _
        // Predicated region
        $region145: #{class_bert_forward.1} parent=83 // pred_check
          %p2740 = pneg %p438
        $region146: #{class_bert_forward.1} parent=83 // pred_check_branch
          %2742 = sbr.rel (%p2740) target = $region148
        $region147: #{class_bert_forward.1} parent=83 // pred_region
          _
        $region148: #{class_bert_forward.1} parent=83 // pred_fallthru
          _
      $region84: #{class_bert_forward.1} parent=5 // pred_fallthru
        _
      %p2743 = scmp.le.s32.totalorder 2, %s24
      // Predicated region
      $region149: #{class_bert_forward.1} parent=5 // pred_check
        %p2744 = pneg %p2743
      $region150: #{class_bert_forward.1} parent=5 // pred_check_branch
        %2746 = sbr.rel (%p2744) target = $region152
      $region151: #{class_bert_forward.1} parent=5 // pred_region
        %s2747 = ssub.s32 %s24, 2
      $region152: #{class_bert_forward.1} parent=5 // pred_fallthru
        _
    $region6: #{class_bert_forward.1} parent=1 // loop_footer
      %s28 = sadd.s32 1, %s24
    $region7: #{class_bert_forward.1} parent=1 // loop_footer_branch
      %23 = sbr.rel target = $region3
    $region8: #{class_bert_forward.1} parent=1 // loop_exit
      _
    %2748 = vsyncpa [#allocation3], 1
    %s2749 = scalar_lea.sflag [#allocation3], 1
    %2750 = vsyncpa %s2749, 1
    %2751 = vsyncpa [#allocation5], 1

</llo_original>
